<compile_context>
chip_gen: v7x
topology: tpu7x:2x2x1
jax: 0.10.0
libtpu: 0.0.40
codegen_flags: <defaults>
</compile_context>

<pallas_src>
import collections
import math

import jax
import jax.numpy as jnp
from jax.experimental import pallas as pl
from jax.experimental.pallas import tpu as pltpu

Seq2SeqLMOutputs = collections.namedtuple("Seq2SeqLMOutputs", ["logits", "hidden_states"])

_VMEM_LIMIT = 32 * 1024 * 1024  # fits v7x (64 MiB physical) and v5e/v6e


def _pick_tile(dim, target, multiple):
    """Largest divisor of `dim` that is <= target and a multiple of `multiple`;
    falls back to the full dim (a full-extent block is always legal)."""
    best = None
    for t in range(multiple, min(dim, target) + 1, multiple):
        if dim % t == 0:
            best = t
    return best if best is not None else dim


def _vocab_tile(V, H):
    """Lane-dense vocab tile; keep the double-buffered bf16 emb tile ~<= 4 MiB."""
    budget = 4 * 1024 * 1024
    cap = max(128, (budget // (2 * 2 * H)) // 128 * 128)
    return _pick_tile(V, min(1024, cap), 128)


def _gelu_layernorm(y, gamma, beta):
    """tanh-GELU followed by LayerNorm over the last axis, all in f32."""
    # TODO(synk): PyTorch F.gelu default is exact erf-GELU; tanh approx differs ~1e-3.
    c = 0.7978845608028654  # sqrt(2/pi)
    y = 0.5 * y * (1.0 + jnp.tanh(c * (y + 0.044715 * y * y * y)))
    mean = jnp.mean(y, axis=-1, keepdims=True)
    var = jnp.mean((y - mean) * (y - mean), axis=-1, keepdims=True)
    return (y - mean) * jax.lax.rsqrt(var + 1e-5) * gamma + beta


# ----------------------------------------------------------------------------
# Kernel 1: encoder transform fused with cross-attention K/V projections.
#   enc_h = LayerNorm(GELU(x @ W_enc + b_enc)) ; k = enc_h @ Wk ; v = enc_h @ Wv
# Grid: (M_enc // tm,) over flattened [B*S_enc, H].
# ----------------------------------------------------------------------------
def _encoder_kernel(x_ref, wenc_ref, benc_ref, g_ref, b_ref, wk_ref, wv_ref,
                    h_ref, k_ref, v_ref):
    x = x_ref[...]                                                 # [tm, H] bf16
    y = jnp.dot(x, wenc_ref[...], preferred_element_type=jnp.float32)
    y = y + benc_ref[...].astype(jnp.float32)
    h = _gelu_layernorm(y, g_ref[...].astype(jnp.float32),
                        b_ref[...].astype(jnp.float32))            # f32
    h_bf = h.astype(jnp.bfloat16)
    h_ref[...] = h_bf
    k_ref[...] = jnp.dot(h_bf, wk_ref[...],
                         preferred_element_type=jnp.float32).astype(k_ref.dtype)
    v_ref[...] = jnp.dot(h_bf, wv_ref[...],
                         preferred_element_type=jnp.float32).astype(v_ref.dtype)


# K/V-only projection, used when encoder_hidden_states is supplied externally.
def _kv_proj_kernel(h_ref, wk_ref, wv_ref, k_ref, v_ref):
    h = h_ref[...]
    k_ref[...] = jnp.dot(h, wk_ref[...],
                         preferred_element_type=jnp.float32).astype(k_ref.dtype)
    v_ref[...] = jnp.dot(h, wv_ref[...],
                         preferred_element_type=jnp.float32).astype(v_ref.dtype)


# ----------------------------------------------------------------------------
# Kernel 2: fused decoder (cross-attention + FFN transform) + tied vocab head.
# Grid: (B, S_dec // tq, V // tv). Hidden tile is computed once at vocab tile 0
# into a bf16 VMEM scratch, then reused for every vocab tile (no HBM round trip).
# ----------------------------------------------------------------------------
def _decoder_logits_kernel(xd_ref, k_ref, v_ref, wq_ref, wo_ref, wdec_ref,
                           bdec_ref, gdec_ref, betadec_ref, emb_ref, bv_ref,
                           hid_ref, logits_ref, h_bf_scratch):
    vj = pl.program_id(2)

    @pl.when(vj == 0)
    def _compute_hidden():
        x = xd_ref[0]                                              # [tq, H]  bf16
        k = k_ref[0]                                               # [Se, H]  bf16
        v = v_ref[0]                                               # [Se, H]  bf16

        q = jnp.dot(x, wq_ref[...], preferred_element_type=jnp.float32)
        scale = 1.0 / (x.shape[-1] ** 0.5)
        scores = jax.lax.dot_general(                              # q @ k.T
            q.astype(jnp.bfloat16), k, (((1,), (1,)), ((), ())),
            preferred_element_type=jnp.float32) * scale            # [tq, Se] f32
        m = jnp.max(scores, axis=-1, keepdims=True)
        p = jnp.exp(scores - m)
        denom = jnp.sum(p, axis=-1, keepdims=True)
        inv_denom = pl.reciprocal(denom, approx=True)              # EUP slot
        attn = jnp.dot(p.astype(jnp.bfloat16), v,
                       preferred_element_type=jnp.float32) * inv_denom  # [tq, H]
        ctx = jnp.dot(attn.astype(jnp.bfloat16), wo_ref[...],
                      preferred_element_type=jnp.float32)
        pre = x.astype(jnp.float32) + ctx                          # residual
        y = jnp.dot(pre.astype(jnp.bfloat16), wdec_ref[...],
                    preferred_element_type=jnp.float32)
        y = y + bdec_ref[...].astype(jnp.float32)
        h = _gelu_layernorm(y, gdec_ref[...].astype(jnp.float32),
                            betadec_ref[...].astype(jnp.float32))  # [tq, H] f32
        hid_ref[...] = h[None, :, :].astype(hid_ref.dtype)
        h_bf_scratch[...] = h.astype(jnp.bfloat16)                 # cast once

    # Tied vocab projection against the raw embedding tile (trans_b contraction).
    logits = jax.lax.dot_general(
        h_bf_scratch[...], emb_ref[...], (((1,), (1,)), ((), ())),
        preferred_element_type=jnp.float32)                        # [tq, tv]
    logits = logits + bv_ref[...].astype(jnp.float32)
    logits_ref[...] = logits[None, :, :].astype(logits_ref.dtype)


# ----------------------------------------------------------------------------
# Forward wrapper
# ----------------------------------------------------------------------------
@jax.jit
def seq2seq_lm_forward(input_ids, decoder_input_ids, params,
                       encoder_hidden_states=None):
    """input_ids:[B,Se] int32, decoder_input_ids:[B,Sd] int32 -> Seq2SeqLMOutputs."""
    # TODO(synk): use_cache / start_pos incremental KV-cache decoding not implemented.
    emb_bf = params["embedding"].astype(jnp.bfloat16)              # [V, H]
    V, H = emb_bf.shape
    B, Se = input_ids.shape
    _, Sd = decoder_input_ids.shape

    to_bf = lambda n: params[n].astype(jnp.bfloat16)
    row = lambda n: params[n].astype(jnp.float32).reshape(1, -1)

    tm = _pick_tile(B * Se, 256, 8)
    enc_row = pl.BlockSpec((tm, H), lambda i: (i, 0))
    enc_mat = pl.BlockSpec((H, H), lambda i: (0, 0))
    enc_vec = pl.BlockSpec((1, H), lambda i: (0, 0))
    enc_params = pltpu.CompilerParams(dimension_semantics=("parallel",),
                                      vmem_limit_bytes=_VMEM_LIMIT)

    # ---- encoder (skipped if encoder_hidden_states is supplied) ------------
    # TODO(synk): embedding gather stays in XLA (jnp.take); a manual DMA gather
    # pipeline would remove the [M,H] HBM round trip for large vocab.
    if encoder_hidden_states is None:
        x_enc = jnp.take(emb_bf, input_ids.reshape(-1), axis=0)    # [B*Se, H] bf16
        enc_h, k_enc, v_enc = pl.pallas_call(
            _encoder_kernel,
            out_shape=tuple(jax.ShapeDtypeStruct((B * Se, H), jnp.bfloat16)
                            for _ in range(3)),
            grid_spec=pltpu.PrefetchScalarGridSpec(
                num_scalar_prefetch=0,
                grid=(B * Se // tm,),
                in_specs=[enc_row, enc_mat, enc_vec, enc_vec, enc_vec,
                          enc_mat, enc_mat],
                out_specs=(enc_row, enc_row, enc_row)),
            compiler_params=enc_params,
        )(x_enc, to_bf("w_enc"), row("b_enc"), row("ln_enc_g"), row("ln_enc_b"),
          to_bf("w_k"), to_bf("w_v"))
    else:
        enc_h = encoder_hidden_states.reshape(B * Se, H).astype(jnp.bfloat16)
        k_enc, v_enc = pl.pallas_call(
            _kv_proj_kernel,
            out_shape=tuple(jax.ShapeDtypeStruct((B * Se, H), jnp.bfloat16)
                            for _ in range(2)),
            grid_spec=pltpu.PrefetchScalarGridSpec(
                num_scalar_prefetch=0,
                grid=(B * Se // tm,),
                in_specs=[enc_row, enc_mat, enc_mat],
                out_specs=(enc_row, enc_row)),
            compiler_params=enc_params,
        )(enc_h, to_bf("w_k"), to_bf("w_v"))

    k_enc = k_enc.reshape(B, Se, H)
    v_enc = v_enc.reshape(B, Se, H)

    # ---- fused decoder + tied vocab projection ------------------------------
    x_dec = jnp.take(emb_bf, decoder_input_ids.reshape(-1), axis=0).reshape(B, Sd, H)
    tq = _pick_tile(Sd, 256, 8)
    tv = _vocab_tile(V, H)

    hidden, logits = pl.pallas_call(
        _decoder_logits_kernel,
        out_shape=(jax.ShapeDtypeStruct((B, Sd, H), jnp.float32),
                   jax.ShapeDtypeStruct((B, Sd, V), jnp.float32)),
        grid_spec=pltpu.PrefetchScalarGridSpec(
            num_scalar_prefetch=0,
            grid=(B, Sd // tq, V // tv),
            in_specs=[
                pl.BlockSpec((1, tq, H), lambda b, q, v: (b, q, 0)),   # x_dec
                pl.BlockSpec((1, Se, H), lambda b, q, v: (b, 0, 0)),   # k_enc
                pl.BlockSpec((1, Se, H), lambda b, q, v: (b, 0, 0)),   # v_enc
                pl.BlockSpec((H, H),     lambda b, q, v: (0, 0)),      # w_q
                pl.BlockSpec((H, H),     lambda b, q, v: (0, 0)),      # w_o
                pl.BlockSpec((H, H),     lambda b, q, v: (0, 0)),      # w_dec
                pl.BlockSpec((1, H),     lambda b, q, v: (0, 0)),      # b_dec
                pl.BlockSpec((1, H),     lambda b, q, v: (0, 0)),      # ln gamma
                pl.BlockSpec((1, H),     lambda b, q, v: (0, 0)),      # ln beta
                pl.BlockSpec((tv, H),    lambda b, q, v: (v, 0)),      # tied emb tile
                pl.BlockSpec((1, tv),    lambda b, q, v: (0, v)),      # b_vocab tile
            ],
            out_specs=(
                pl.BlockSpec((1, tq, H),  lambda b, q, v: (b, q, 0)),  # hidden (resident over v)
                pl.BlockSpec((1, tq, tv), lambda b, q, v: (b, q, v)),  # logits
            ),
            scratch_shapes=[pltpu.VMEM((tq, H), jnp.bfloat16)]),
        compiler_params=pltpu.CompilerParams(
            dimension_semantics=("parallel", "parallel", "arbitrary"),
            vmem_limit_bytes=_VMEM_LIMIT),
    )(x_dec, k_enc, v_enc, to_bf("w_q"), to_bf("w_o"), to_bf("w_dec"),
      row("b_dec"), row("ln_dec_g"), row("ln_dec_b"), emb_bf, row("b_vocab"))

    return Seq2SeqLMOutputs(logits=logits, hidden_states=hidden)


# ----------------------------------------------------------------------------
# Params + pure-JAX reference (same bf16 matmul flow) for correctness checks
# ----------------------------------------------------------------------------
def init_params(key, vocab_size, hidden_size):
    ks = jax.random.split(key, 8)
    s = 1.0 / math.sqrt(hidden_size)
    w = lambda k: jax.random.normal(k, (hidden_size, hidden_size), jnp.float32) * s
    return dict(
        embedding=jax.random.normal(ks[0], (vocab_size, hidden_size), jnp.float32) * 0.02,
        w_enc=w(ks[1]), b_enc=jnp.zeros((hidden_size,), jnp.float32),
        ln_enc_g=jnp.ones((hidden_size,), jnp.float32),
        ln_enc_b=jnp.zeros((hidden_size,), jnp.float32),
        w_q=w(ks[2]), w_k=w(ks[3]), w_v=w(ks[4]), w_o=w(ks[5]),
        w_dec=w(ks[6]), b_dec=jnp.zeros((hidden_size,), jnp.float32),
        ln_dec_g=jnp.ones((hidden_size,), jnp.float32),
        ln_dec_b=jnp.zeros((hidden_size,), jnp.float32),
        b_vocab=jax.random.normal(ks[7], (vocab_size,), jnp.float32) * 0.01,
    )


def _reference_forward(input_ids, decoder_input_ids, params):
    bf16, f32 = jnp.bfloat16, jnp.float32
    emb_b = params["embedding"].astype(bf16)
    V, H = emb_b.shape
    B, Se = input_ids.shape
    _, Sd = decoder_input_ids.shape

    def mm(a, w):
        return jnp.dot(a.astype(bf16), w.astype(bf16), preferred_element_type=f32)

    # encoder
    x_enc = jnp.take(emb_b, input_ids.reshape(-1), axis=0)
    enc_h = _gelu_layernorm(mm(x_enc, params["w_enc"]) + params["b_enc"],
                            params["ln_enc_g"], params["ln_enc_b"])
    enc_h_bf = enc_h.astype(bf16)
    k = mm(enc_h_bf, params["w_k"]).astype(bf16).reshape(B, Se, H)
    v = mm(enc_h_bf, params["w_v"]).astype(bf16).reshape(B, Se, H)

    # decoder
    x_dec = jnp.take(emb_b, decoder_input_ids.reshape(-1), axis=0).reshape(B, Sd, H)
    q = jnp.einsum("bsh,hd->bsd", x_dec, params["w_q"].astype(bf16),
                   preferred_element_type=f32).astype(bf16)
    scores = jnp.einsum("bqh,bkh->bqk", q, k, preferred_element_type=f32) / (H ** 0.5)
    m = scores.max(-1, keepdims=True)
    p = jnp.exp(scores - m)
    denom = p.sum(-1, keepdims=True)
    attn = jnp.einsum("bqk,bkh->bqh", p.astype(bf16), v,
                      preferred_element_type=f32) / denom
    ctx = jnp.einsum("bqh,hd->bqd", attn.astype(bf16), params["w_o"].astype(bf16),
                     preferred_element_type=f32)
    pre = x_dec.astype(f32) + ctx
    y = jnp.einsum("bqh,hd->bqd", pre.astype(bf16), params["w_dec"].astype(bf16),
                   preferred_element_type=f32) + params["b_dec"]
    hidden = _gelu_layernorm(y, params["ln_dec_g"], params["ln_dec_b"])
    logits = jnp.einsum("bqh,vh->bqv", hidden.astype(bf16), emb_b,
                        preferred_element_type=f32) + params["b_vocab"]
    return Seq2SeqLMOutputs(logits=logits, hidden_states=hidden)


if __name__ == "__main__":
    # Small but lane-dense shapes: H multiple of 128, V multiple of 128.
    B, S_ENC, S_DEC, H, V = 2, 16, 8, 256, 1024

    key = jax.random.PRNGKey(0)
    pkey, ekey, dkey = jax.random.split(key, 3)
    params = init_params(pkey, V, H)
    input_ids = jax.random.randint(ekey, (B, S_ENC), 0, V, dtype=jnp.int32)
    decoder_input_ids = jax.random.randint(dkey, (B, S_DEC), 0, V, dtype=jnp.int32)

    out = seq2seq_lm_forward(input_ids, decoder_input_ids, params)
    jax.block_until_ready(out.logits)
    jax.block_until_ready(out.hidden_states)

    assert out.logits.shape == (B, S_DEC, V), out.logits.shape
    assert out.hidden_states.shape == (B, S_DEC, H), out.hidden_states.shape
    assert bool(jnp.all(jnp.isfinite(out.logits)))
    assert bool(jnp.all(jnp.isfinite(out.hidden_states)))

    ref = _reference_forward(input_ids, decoder_input_ids, params)
    assert bool(jnp.allclose(out.hidden_states, ref.hidden_states, atol=5e-2, rtol=5e-2)), \
        float(jnp.max(jnp.abs(out.hidden_states - ref.hidden_states)))
    assert bool(jnp.allclose(out.logits, ref.logits, atol=5e-2, rtol=5e-2)), \
        float(jnp.max(jnp.abs(out.logits - ref.logits)))

    print("KERNEL_OK")
</pallas_src>

<mosaic_0001>
module attributes {stable_mosaic.version = 11 : i64} {
  func.func @_encoder_kernel(%arg0: i32, %arg1: memref<32x256xbf16, #tpu.memory_space<vmem>>, %arg2: memref<256x256xbf16, #tpu.memory_space<vmem>>, %arg3: memref<1x256xf32, #tpu.memory_space<vmem>>, %arg4: memref<1x256xf32, #tpu.memory_space<vmem>>, %arg5: memref<1x256xf32, #tpu.memory_space<vmem>>, %arg6: memref<256x256xbf16, #tpu.memory_space<vmem>>, %arg7: memref<256x256xbf16, #tpu.memory_space<vmem>>, %arg8: memref<32x256xbf16, #tpu.memory_space<vmem>>, %arg9: memref<32x256xbf16, #tpu.memory_space<vmem>>, %arg10: memref<32x256xbf16, #tpu.memory_space<vmem>>) attributes {dimension_semantics = [#tpu.dimension_semantics<parallel>], iteration_bounds = array<i64: 1>, scalar_prefetch = 0 : i64, scratch_operands = 0 : i64, tpu.core_type = #tpu.core_type<tc>, window_params = [{transform_indices = @transform_0, window_bounds = array<i64: 32, 256>}, {pipeline_mode = #tpu.pipeline_mode<synchronous>, transform_indices = @transform_1, window_bounds = array<i64: 256, 256>}, {pipeline_mode = #tpu.pipeline_mode<synchronous>, transform_indices = @transform_2, window_bounds = array<i64: 1, 256>}, {pipeline_mode = #tpu.pipeline_mode<synchronous>, transform_indices = @transform_3, window_bounds = array<i64: 1, 256>}, {pipeline_mode = #tpu.pipeline_mode<synchronous>, transform_indices = @transform_4, window_bounds = array<i64: 1, 256>}, {pipeline_mode = #tpu.pipeline_mode<synchronous>, transform_indices = @transform_5, window_bounds = array<i64: 256, 256>}, {pipeline_mode = #tpu.pipeline_mode<synchronous>, transform_indices = @transform_6, window_bounds = array<i64: 256, 256>}, {transform_indices = @transform_7, window_bounds = array<i64: 32, 256>}, {transform_indices = @transform_8, window_bounds = array<i64: 32, 256>}, {transform_indices = @transform_9, window_bounds = array<i64: 32, 256>}]} {
    %c0 = arith.constant 0 : index
    %c0_0 = arith.constant 0 : index
    %0 = vector.load %arg1[%c0, %c0_0] : memref<32x256xbf16, #tpu.memory_space<vmem>>, vector<32x256xbf16>
    %c0_1 = arith.constant 0 : index
    %c0_2 = arith.constant 0 : index
    %1 = vector.load %arg2[%c0_1, %c0_2] : memref<256x256xbf16, #tpu.memory_space<vmem>>, vector<256x256xbf16>
    %cst = arith.constant dense<0.000000e+00> : vector<32x256xf32>
    %2 = tpu.matmul %0, %1, %cst {dimension_numbers = #tpu.dot_dimension_numbers<[1], [0], [0], [1], [0, 0, 1, 1], [], []>} : vector<32x256xbf16>, vector<256x256xbf16>, vector<32x256xf32> -> vector<32x256xf32>
    %c0_3 = arith.constant 0 : index
    %c0_4 = arith.constant 0 : index
    %3 = vector.load %arg3[%c0_3, %c0_4] : memref<1x256xf32, #tpu.memory_space<vmem>>, vector<1x256xf32>
    %4 = vector.broadcast %3 : vector<1x256xf32> to vector<32x256xf32>
    %5 = arith.addf %2, %4 : vector<32x256xf32>
    %c0_5 = arith.constant 0 : index
    %c0_6 = arith.constant 0 : index
    %6 = vector.load %arg4[%c0_5, %c0_6] : memref<1x256xf32, #tpu.memory_space<vmem>>, vector<1x256xf32>
    %c0_7 = arith.constant 0 : index
    %c0_8 = arith.constant 0 : index
    %7 = vector.load %arg5[%c0_7, %c0_8] : memref<1x256xf32, #tpu.memory_space<vmem>>, vector<1x256xf32>
    %cst_9 = arith.constant 5.000000e-01 : f32
    %8 = vector.broadcast %cst_9 : f32 to vector<32x256xf32>
    %9 = arith.mulf %8, %5 : vector<32x256xf32>
    %cst_10 = arith.constant 4.471500e-02 : f32
    %10 = vector.broadcast %cst_10 : f32 to vector<32x256xf32>
    %11 = arith.mulf %10, %5 : vector<32x256xf32>
    %12 = arith.mulf %11, %5 : vector<32x256xf32>
    %13 = arith.mulf %12, %5 : vector<32x256xf32>
    %14 = arith.addf %5, %13 : vector<32x256xf32>
    %cst_11 = arith.constant 0.797884583 : f32
    %15 = vector.broadcast %cst_11 : f32 to vector<32x256xf32>
    %16 = arith.mulf %15, %14 : vector<32x256xf32>
    %17 = math.tanh %16 : vector<32x256xf32>
    %cst_12 = arith.constant 1.000000e+00 : f32
    %18 = vector.broadcast %cst_12 : f32 to vector<32x256xf32>
    %19 = arith.addf %18, %17 : vector<32x256xf32>
    %20 = arith.mulf %9, %19 : vector<32x256xf32>
    %cst_13 = arith.constant dense<0.000000e+00> : vector<32xf32>
    %21 = vector.multi_reduction <add>, %20, %cst_13 [1] : vector<32x256xf32> to vector<32xf32>
    %22 = vector.shape_cast %21 : vector<32xf32> to vector<32x1xf32>
    %cst_14 = arith.constant 2.560000e+02 : f32
    %23 = vector.broadcast %cst_14 : f32 to vector<32x1xf32>
    %24 = arith.divf %22, %23 : vector<32x1xf32>
    %25 = vector.broadcast %24 : vector<32x1xf32> to vector<32x256xf32>
    %26 = arith.subf %20, %25 : vector<32x256xf32>
    %27 = vector.broadcast %24 : vector<32x1xf32> to vector<32x256xf32>
    %28 = arith.subf %20, %27 : vector<32x256xf32>
    %29 = arith.mulf %26, %28 : vector<32x256xf32>
    %cst_15 = arith.constant dense<0.000000e+00> : vector<32xf32>
    %30 = vector.multi_reduction <add>, %29, %cst_15 [1] : vector<32x256xf32> to vector<32xf32>
    %31 = vector.shape_cast %30 : vector<32xf32> to vector<32x1xf32>
    %cst_16 = arith.constant 2.560000e+02 : f32
    %32 = vector.broadcast %cst_16 : f32 to vector<32x1xf32>
    %33 = arith.divf %31, %32 : vector<32x1xf32>
    %34 = vector.broadcast %24 : vector<32x1xf32> to vector<32x256xf32>
    %35 = arith.subf %20, %34 : vector<32x256xf32>
    %cst_17 = arith.constant 9.99999974E-6 : f32
    %36 = vector.broadcast %cst_17 : f32 to vector<32x1xf32>
    %37 = arith.addf %33, %36 : vector<32x1xf32>
    %38 = math.rsqrt %37 : vector<32x1xf32>
    %39 = vector.broadcast %38 : vector<32x1xf32> to vector<32x256xf32>
    %40 = arith.mulf %35, %39 : vector<32x256xf32>
    %41 = vector.broadcast %6 : vector<1x256xf32> to vector<32x256xf32>
    %42 = arith.mulf %40, %41 : vector<32x256xf32>
    %43 = vector.broadcast %7 : vector<1x256xf32> to vector<32x256xf32>
    %44 = arith.addf %42, %43 : vector<32x256xf32>
    %45 = arith.truncf %44 : vector<32x256xf32> to vector<32x256xbf16>
    %c0_18 = arith.constant 0 : index
    %c0_19 = arith.constant 0 : index
    %46 = vector.load %arg8[%c0_18, %c0_19] : memref<32x256xbf16, #tpu.memory_space<vmem>>, vector<32x256xbf16>
    tpu.vector_store %arg8[%c0_18, %c0_19], %45 {strides = array<i32>} : memref<32x256xbf16, #tpu.memory_space<vmem>>, vector<32x256xbf16>,
    %c0_20 = arith.constant 0 : index
    %c0_21 = arith.constant 0 : index
    %47 = vector.load %arg6[%c0_20, %c0_21] : memref<256x256xbf16, #tpu.memory_space<vmem>>, vector<256x256xbf16>
    %cst_22 = arith.constant dense<0.000000e+00> : vector<32x256xf32>
    %48 = tpu.matmul %45, %47, %cst_22 {dimension_numbers = #tpu.dot_dimension_numbers<[1], [0], [0], [1], [0, 0, 1, 1], [], []>} : vector<32x256xbf16>, vector<256x256xbf16>, vector<32x256xf32> -> vector<32x256xf32>
    %49 = arith.truncf %48 : vector<32x256xf32> to vector<32x256xbf16>
    %c0_23 = arith.constant 0 : index
    %c0_24 = arith.constant 0 : index
    %50 = vector.load %arg9[%c0_23, %c0_24] : memref<32x256xbf16, #tpu.memory_space<vmem>>, vector<32x256xbf16>
    tpu.vector_store %arg9[%c0_23, %c0_24], %49 {strides = array<i32>} : memref<32x256xbf16, #tpu.memory_space<vmem>>, vector<32x256xbf16>,
    %c0_25 = arith.constant 0 : index
    %c0_26 = arith.constant 0 : index
    %51 = vector.load %arg7[%c0_25, %c0_26] : memref<256x256xbf16, #tpu.memory_space<vmem>>, vector<256x256xbf16>
    %cst_27 = arith.constant dense<0.000000e+00> : vector<32x256xf32>
    %52 = tpu.matmul %45, %51, %cst_27 {dimension_numbers = #tpu.dot_dimension_numbers<[1], [0], [0], [1], [0, 0, 1, 1], [], []>} : vector<32x256xbf16>, vector<256x256xbf16>, vector<32x256xf32> -> vector<32x256xf32>
    %53 = arith.truncf %52 : vector<32x256xf32> to vector<32x256xbf16>
    %c0_28 = arith.constant 0 : index
    %c0_29 = arith.constant 0 : index
    %54 = vector.load %arg10[%c0_28, %c0_29] : memref<32x256xbf16, #tpu.memory_space<vmem>>, vector<32x256xbf16>
    tpu.vector_store %arg10[%c0_28, %c0_29], %53 {strides = array<i32>} : memref<32x256xbf16, #tpu.memory_space<vmem>>, vector<32x256xbf16>,
    return
  }
  func.func @transform_0(%arg0: i32) -> (i32, i32) {
    %c0_i32 = arith.constant 0 : i32
    %c0_i32_0 = arith.constant 0 : i32
    return %arg0, %c0_i32 : i32, i32
  }
  func.func @transform_1(%arg0: i32) -> (i32, i32) {
    %c0_i32 = arith.constant 0 : i32
    %c0_i32_0 = arith.constant 0 : i32
    %c0_i32_1 = arith.constant 0 : i32
    return %c0_i32, %c0_i32_0 : i32, i32
  }
  func.func @transform_2(%arg0: i32) -> (i32, i32) {
    %c0_i32 = arith.constant 0 : i32
    %c0_i32_0 = arith.constant 0 : i32
    %c0_i32_1 = arith.constant 0 : i32
    return %c0_i32, %c0_i32_0 : i32, i32
  }
  func.func @transform_3(%arg0: i32) -> (i32, i32) {
    %c0_i32 = arith.constant 0 : i32
    %c0_i32_0 = arith.constant 0 : i32
    %c0_i32_1 = arith.constant 0 : i32
    return %c0_i32, %c0_i32_0 : i32, i32
  }
  func.func @transform_4(%arg0: i32) -> (i32, i32) {
    %c0_i32 = arith.constant 0 : i32
    %c0_i32_0 = arith.constant 0 : i32
    %c0_i32_1 = arith.constant 0 : i32
    return %c0_i32, %c0_i32_0 : i32, i32
  }
  func.func @transform_5(%arg0: i32) -> (i32, i32) {
    %c0_i32 = arith.constant 0 : i32
    %c0_i32_0 = arith.constant 0 : i32
    %c0_i32_1 = arith.constant 0 : i32
    return %c0_i32, %c0_i32_0 : i32, i32
  }
  func.func @transform_6(%arg0: i32) -> (i32, i32) {
    %c0_i32 = arith.constant 0 : i32
    %c0_i32_0 = arith.constant 0 : i32
    %c0_i32_1 = arith.constant 0 : i32
    return %c0_i32, %c0_i32_0 : i32, i32
  }
  func.func @transform_7(%arg0: i32) -> (i32, i32) {
    %c0_i32 = arith.constant 0 : i32
    %c0_i32_0 = arith.constant 0 : i32
    return %arg0, %c0_i32 : i32, i32
  }
  func.func @transform_8(%arg0: i32) -> (i32, i32) {
    %c0_i32 = arith.constant 0 : i32
    %c0_i32_0 = arith.constant 0 : i32
    return %arg0, %c0_i32 : i32, i32
  }
  func.func @transform_9(%arg0: i32) -> (i32, i32) {
    %c0_i32 = arith.constant 0 : i32
    %c0_i32_0 = arith.constant 0 : i32
    return %arg0, %c0_i32 : i32, i32
  }
}

module attributes {stable_mosaic.version = 11 : i64} {
  func.func @_decoder_logits_kernel(%arg0: i32, %arg1: i32, %arg2: i32, %arg3: memref<1x8x256xbf16, #tpu.memory_space<vmem>>, %arg4: memref<1x16x256xbf16, #tpu.memory_space<vmem>>, %arg5: memref<1x16x256xbf16, #tpu.memory_space<vmem>>, %arg6: memref<256x256xbf16, #tpu.memory_space<vmem>>, %arg7: memref<256x256xbf16, #tpu.memory_space<vmem>>, %arg8: memref<256x256xbf16, #tpu.memory_space<vmem>>, %arg9: memref<1x256xf32, #tpu.memory_space<vmem>>, %arg10: memref<1x256xf32, #tpu.memory_space<vmem>>, %arg11: memref<1x256xf32, #tpu.memory_space<vmem>>, %arg12: memref<1024x256xbf16, #tpu.memory_space<vmem>>, %arg13: memref<1x1024xf32, #tpu.memory_space<vmem>>, %arg14: memref<1x8x256xf32, #tpu.memory_space<vmem>>, %arg15: memref<1x8x1024xf32, #tpu.memory_space<vmem>>, %arg16: memref<8x256xbf16, #tpu.memory_space<vmem>>) attributes {dimension_semantics = [#tpu.dimension_semantics<parallel>, #tpu.dimension_semantics<parallel>, #tpu.dimension_semantics<arbitrary>], iteration_bounds = array<i64: 2, 1, 1>, scalar_prefetch = 0 : i64, scratch_operands = 1 : i64, tpu.core_type = #tpu.core_type<tc>, window_params = [{transform_indices = @transform_0, window_bounds = array<i64: 1, 8, 256>}, {transform_indices = @transform_1, window_bounds = array<i64: 1, 16, 256>}, {transform_indices = @transform_2, window_bounds = array<i64: 1, 16, 256>}, {pipeline_mode = #tpu.pipeline_mode<synchronous>, transform_indices = @transform_3, window_bounds = array<i64: 256, 256>}, {pipeline_mode = #tpu.pipeline_mode<synchronous>, transform_indices = @transform_4, window_bounds = array<i64: 256, 256>}, {pipeline_mode = #tpu.pipeline_mode<synchronous>, transform_indices = @transform_5, window_bounds = array<i64: 256, 256>}, {pipeline_mode = #tpu.pipeline_mode<synchronous>, transform_indices = @transform_6, window_bounds = array<i64: 1, 256>}, {pipeline_mode = #tpu.pipeline_mode<synchronous>, transform_indices = @transform_7, window_bounds = array<i64: 1, 256>}, {pipeline_mode = #tpu.pipeline_mode<synchronous>, transform_indices = @transform_8, window_bounds = array<i64: 1, 256>}, {transform_indices = @transform_9, window_bounds = array<i64: 1024, 256>}, {transform_indices = @transform_10, window_bounds = array<i64: 1, 1024>}, {transform_indices = @transform_11, window_bounds = array<i64: 1, 8, 256>}, {transform_indices = @transform_12, window_bounds = array<i64: 1, 8, 1024>}]} {
    %c0_i32 = arith.constant 0 : i32
    %0 = arith.cmpi eq, %arg2, %c0_i32 : i32
    %1 = arith.extui %0 : i1 to i32
    %c0_i32_0 = arith.constant 0 : i32
    %2 = arith.cmpi ne, %1, %c0_i32_0 : i32
    scf.if %2 {
      %c0_9 = arith.constant 0 : index
      %c0_10 = arith.constant 0 : index
      %c0_11 = arith.constant 0 : index
      %11 = vector.load %arg3[%c0_9, %c0_10, %c0_11] : memref<1x8x256xbf16, #tpu.memory_space<vmem>>, vector<1x8x256xbf16>
      %12 = vector.shape_cast %11 : vector<1x8x256xbf16> to vector<8x256xbf16>
      %c0_12 = arith.constant 0 : index
      %c0_13 = arith.constant 0 : index
      %c0_14 = arith.constant 0 : index
      %13 = vector.load %arg4[%c0_12, %c0_13, %c0_14] : memref<1x16x256xbf16, #tpu.memory_space<vmem>>, vector<1x16x256xbf16>
      %14 = vector.shape_cast %13 : vector<1x16x256xbf16> to vector<16x256xbf16>
      %c0_15 = arith.constant 0 : index
      %c0_16 = arith.constant 0 : index
      %c0_17 = arith.constant 0 : index
      %15 = vector.load %arg5[%c0_15, %c0_16, %c0_17] : memref<1x16x256xbf16, #tpu.memory_space<vmem>>, vector<1x16x256xbf16>
      %16 = vector.shape_cast %15 : vector<1x16x256xbf16> to vector<16x256xbf16>
      %c0_18 = arith.constant 0 : index
      %c0_19 = arith.constant 0 : index
      %17 = vector.load %arg6[%c0_18, %c0_19] : memref<256x256xbf16, #tpu.memory_space<vmem>>, vector<256x256xbf16>
      %cst_20 = arith.constant dense<0.000000e+00> : vector<8x256xf32>
      %18 = tpu.matmul %12, %17, %cst_20 {dimension_numbers = #tpu.dot_dimension_numbers<[1], [0], [0], [1], [0, 0, 1, 1], [], []>} : vector<8x256xbf16>, vector<256x256xbf16>, vector<8x256xf32> -> vector<8x256xf32>
      %19 = arith.truncf %18 : vector<8x256xf32> to vector<8x256xbf16>
      %cst_21 = arith.constant dense<0.000000e+00> : vector<8x16xf32>
      %20 = tpu.matmul %19, %14, %cst_21 {dimension_numbers = #tpu.dot_dimension_numbers<[1], [1], [0], [0], [0, 0, 1, 0], [], []>} : vector<8x256xbf16>, vector<16x256xbf16>, vector<8x16xf32> -> vector<8x16xf32>
      %cst_22 = arith.constant 6.250000e-02 : f32
      %21 = vector.broadcast %cst_22 : f32 to vector<8x16xf32>
      %22 = arith.mulf %20, %21 : vector<8x16xf32>
      %cst_23 = arith.constant dense<0xFF800000> : vector<8xf32>
      %23 = vector.multi_reduction <maximumf>, %22, %cst_23 [1] : vector<8x16xf32> to vector<8xf32>
      %24 = vector.shape_cast %23 : vector<8xf32> to vector<8x1xf32>
      %25 = vector.broadcast %24 : vector<8x1xf32> to vector<8x16xf32>
      %26 = arith.subf %22, %25 : vector<8x16xf32>
      %27 = math.exp %26 : vector<8x16xf32>
      %cst_24 = arith.constant dense<0.000000e+00> : vector<8xf32>
      %28 = vector.multi_reduction <add>, %27, %cst_24 [1] : vector<8x16xf32> to vector<8xf32>
      %29 = vector.shape_cast %28 : vector<8xf32> to vector<8x1xf32>
      %30 = tpu.reciprocal %29 {approx = true} : vector<8x1xf32> -> vector<8x1xf32>
      %31 = arith.truncf %27 : vector<8x16xf32> to vector<8x16xbf16>
      %cst_25 = arith.constant dense<0.000000e+00> : vector<8x256xf32>
      %32 = tpu.matmul %31, %16, %cst_25 {dimension_numbers = #tpu.dot_dimension_numbers<[1], [0], [0], [1], [0, 0, 1, 1], [], []>} : vector<8x16xbf16>, vector<16x256xbf16>, vector<8x256xf32> -> vector<8x256xf32>
      %33 = vector.broadcast %30 : vector<8x1xf32> to vector<8x256xf32>
      %34 = arith.mulf %32, %33 : vector<8x256xf32>
      %35 = arith.truncf %34 : vector<8x256xf32> to vector<8x256xbf16>
      %c0_26 = arith.constant 0 : index
      %c0_27 = arith.constant 0 : index
      %36 = vector.load %arg7[%c0_26, %c0_27] : memref<256x256xbf16, #tpu.memory_space<vmem>>, vector<256x256xbf16>
      %cst_28 = arith.constant dense<0.000000e+00> : vector<8x256xf32>
      %37 = tpu.matmul %35, %36, %cst_28 {dimension_numbers = #tpu.dot_dimension_numbers<[1], [0], [0], [1], [0, 0, 1, 1], [], []>} : vector<8x256xbf16>, vector<256x256xbf16>, vector<8x256xf32> -> vector<8x256xf32>
      %38 = arith.extf %12 : vector<8x256xbf16> to vector<8x256xf32>
      %39 = arith.addf %38, %37 : vector<8x256xf32>
      %40 = arith.truncf %39 : vector<8x256xf32> to vector<8x256xbf16>
      %c0_29 = arith.constant 0 : index
      %c0_30 = arith.constant 0 : index
      %41 = vector.load %arg8[%c0_29, %c0_30] : memref<256x256xbf16, #tpu.memory_space<vmem>>, vector<256x256xbf16>
      %cst_31 = arith.constant dense<0.000000e+00> : vector<8x256xf32>
      %42 = tpu.matmul %40, %41, %cst_31 {dimension_numbers = #tpu.dot_dimension_numbers<[1], [0], [0], [1], [0, 0, 1, 1], [], []>} : vector<8x256xbf16>, vector<256x256xbf16>, vector<8x256xf32> -> vector<8x256xf32>
      %c0_32 = arith.constant 0 : index
      %c0_33 = arith.constant 0 : index
      %43 = vector.load %arg9[%c0_32, %c0_33] : memref<1x256xf32, #tpu.memory_space<vmem>>, vector<1x256xf32>
      %44 = vector.broadcast %43 : vector<1x256xf32> to vector<8x256xf32>
      %45 = arith.addf %42, %44 : vector<8x256xf32>
      %c0_34 = arith.constant 0 : index
      %c0_35 = arith.constant 0 : index
      %46 = vector.load %arg10[%c0_34, %c0_35] : memref<1x256xf32, #tpu.memory_space<vmem>>, vector<1x256xf32>
      %c0_36 = arith.constant 0 : index
      %c0_37 = arith.constant 0 : index
      %47 = vector.load %arg11[%c0_36, %c0_37] : memref<1x256xf32, #tpu.memory_space<vmem>>, vector<1x256xf32>
      %cst_38 = arith.constant 5.000000e-01 : f32
      %48 = vector.broadcast %cst_38 : f32 to vector<8x256xf32>
      %49 = arith.mulf %48, %45 : vector<8x256xf32>
      %cst_39 = arith.constant 4.471500e-02 : f32
      %50 = vector.broadcast %cst_39 : f32 to vector<8x256xf32>
      %51 = arith.mulf %50, %45 : vector<8x256xf32>
      %52 = arith.mulf %51, %45 : vector<8x256xf32>
      %53 = arith.mulf %52, %45 : vector<8x256xf32>
      %54 = arith.addf %45, %53 : vector<8x256xf32>
      %cst_40 = arith.constant 0.797884583 : f32
      %55 = vector.broadcast %cst_40 : f32 to vector<8x256xf32>
      %56 = arith.mulf %55, %54 : vector<8x256xf32>
      %57 = math.tanh %56 : vector<8x256xf32>
      %cst_41 = arith.constant 1.000000e+00 : f32
      %58 = vector.broadcast %cst_41 : f32 to vector<8x256xf32>
      %59 = arith.addf %58, %57 : vector<8x256xf32>
      %60 = arith.mulf %49, %59 : vector<8x256xf32>
      %cst_42 = arith.constant dense<0.000000e+00> : vector<8xf32>
      %61 = vector.multi_reduction <add>, %60, %cst_42 [1] : vector<8x256xf32> to vector<8xf32>
      %62 = vector.shape_cast %61 : vector<8xf32> to vector<8x1xf32>
      %cst_43 = arith.constant 2.560000e+02 : f32
      %63 = vector.broadcast %cst_43 : f32 to vector<8x1xf32>
      %64 = arith.divf %62, %63 : vector<8x1xf32>
      %65 = vector.broadcast %64 : vector<8x1xf32> to vector<8x256xf32>
      %66 = arith.subf %60, %65 : vector<8x256xf32>
      %67 = vector.broadcast %64 : vector<8x1xf32> to vector<8x256xf32>
      %68 = arith.subf %60, %67 : vector<8x256xf32>
      %69 = arith.mulf %66, %68 : vector<8x256xf32>
      %cst_44 = arith.constant dense<0.000000e+00> : vector<8xf32>
      %70 = vector.multi_reduction <add>, %69, %cst_44 [1] : vector<8x256xf32> to vector<8xf32>
      %71 = vector.shape_cast %70 : vector<8xf32> to vector<8x1xf32>
      %cst_45 = arith.constant 2.560000e+02 : f32
      %72 = vector.broadcast %cst_45 : f32 to vector<8x1xf32>
      %73 = arith.divf %71, %72 : vector<8x1xf32>
      %74 = vector.broadcast %64 : vector<8x1xf32> to vector<8x256xf32>
      %75 = arith.subf %60, %74 : vector<8x256xf32>
      %cst_46 = arith.constant 9.99999974E-6 : f32
      %76 = vector.broadcast %cst_46 : f32 to vector<8x1xf32>
      %77 = arith.addf %73, %76 : vector<8x1xf32>
      %78 = math.rsqrt %77 : vector<8x1xf32>
      %79 = vector.broadcast %78 : vector<8x1xf32> to vector<8x256xf32>
      %80 = arith.mulf %75, %79 : vector<8x256xf32>
      %81 = vector.broadcast %46 : vector<1x256xf32> to vector<8x256xf32>
      %82 = arith.mulf %80, %81 : vector<8x256xf32>
      %83 = vector.broadcast %47 : vector<1x256xf32> to vector<8x256xf32>
      %84 = arith.addf %82, %83 : vector<8x256xf32>
      %85 = vector.shape_cast %84 : vector<8x256xf32> to vector<1x8x256xf32>
      %c0_47 = arith.constant 0 : index
      %c0_48 = arith.constant 0 : index
      %c0_49 = arith.constant 0 : index
      %86 = vector.load %arg14[%c0_47, %c0_48, %c0_49] : memref<1x8x256xf32, #tpu.memory_space<vmem>>, vector<1x8x256xf32>
      tpu.vector_store %arg14[%c0_47, %c0_48, %c0_49], %85 {strides = array<i32>} : memref<1x8x256xf32, #tpu.memory_space<vmem>>, vector<1x8x256xf32>,
      %87 = arith.truncf %84 : vector<8x256xf32> to vector<8x256xbf16>
      %c0_50 = arith.constant 0 : index
      %c0_51 = arith.constant 0 : index
      %88 = vector.load %arg16[%c0_50, %c0_51] : memref<8x256xbf16, #tpu.memory_space<vmem>>, vector<8x256xbf16>
      tpu.vector_store %arg16[%c0_50, %c0_51], %87 {strides = array<i32>} : memref<8x256xbf16, #tpu.memory_space<vmem>>, vector<8x256xbf16>,
    } else {
    }
    %c0 = arith.constant 0 : index
    %c0_1 = arith.constant 0 : index
    %3 = vector.load %arg16[%c0, %c0_1] : memref<8x256xbf16, #tpu.memory_space<vmem>>, vector<8x256xbf16>
    %c0_2 = arith.constant 0 : index
    %c0_3 = arith.constant 0 : index
    %4 = vector.load %arg12[%c0_2, %c0_3] : memref<1024x256xbf16, #tpu.memory_space<vmem>>, vector<1024x256xbf16>
    %cst = arith.constant dense<0.000000e+00> : vector<8x1024xf32>
    %5 = tpu.matmul %3, %4, %cst {dimension_numbers = #tpu.dot_dimension_numbers<[1], [1], [0], [0], [0, 0, 1, 0], [], []>} : vector<8x256xbf16>, vector<1024x256xbf16>, vector<8x1024xf32> -> vector<8x1024xf32>
    %c0_4 = arith.constant 0 : index
    %c0_5 = arith.constant 0 : index
    %6 = vector.load %arg13[%c0_4, %c0_5] : memref<1x1024xf32, #tpu.memory_space<vmem>>, vector<1x1024xf32>
    %7 = vector.broadcast %6 : vector<1x1024xf32> to vector<8x1024xf32>
    %8 = arith.addf %5, %7 : vector<8x1024xf32>
    %9 = vector.shape_cast %8 : vector<8x1024xf32> to vector<1x8x1024xf32>
    %c0_6 = arith.constant 0 : index
    %c0_7 = arith.constant 0 : index
    %c0_8 = arith.constant 0 : index
    %10 = vector.load %arg15[%c0_6, %c0_7, %c0_8] : memref<1x8x1024xf32, #tpu.memory_space<vmem>>, vector<1x8x1024xf32>
    tpu.vector_store %arg15[%c0_6, %c0_7, %c0_8], %9 {strides = array<i32>} : memref<1x8x1024xf32, #tpu.memory_space<vmem>>, vector<1x8x1024xf32>,
    return
  }
  func.func @transform_0(%arg0: i32, %arg1: i32, %arg2: i32) -> (i32, i32, i32) {
    %c0_i32 = arith.constant 0 : i32
    %c0_i32_0 = arith.constant 0 : i32
    return %arg0, %arg1, %c0_i32 : i32, i32, i32
  }
  func.func @transform_1(%arg0: i32, %arg1: i32, %arg2: i32) -> (i32, i32, i32) {
    %c0_i32 = arith.constant 0 : i32
    %c0_i32_0 = arith.constant 0 : i32
    %c0_i32_1 = arith.constant 0 : i32
    return %arg0, %c0_i32, %c0_i32_0 : i32, i32, i32
  }
  func.func @transform_2(%arg0: i32, %arg1: i32, %arg2: i32) -> (i32, i32, i32) {
    %c0_i32 = arith.constant 0 : i32
    %c0_i32_0 = arith.constant 0 : i32
    %c0_i32_1 = arith.constant 0 : i32
    return %arg0, %c0_i32, %c0_i32_0 : i32, i32, i32
  }
  func.func @transform_3(%arg0: i32, %arg1: i32, %arg2: i32) -> (i32, i32) {
    %c0_i32 = arith.constant 0 : i32
    %c0_i32_0 = arith.constant 0 : i32
    %c0_i32_1 = arith.constant 0 : i32
    return %c0_i32, %c0_i32_0 : i32, i32
  }
  func.func @transform_4(%arg0: i32, %arg1: i32, %arg2: i32) -> (i32, i32) {
    %c0_i32 = arith.constant 0 : i32
    %c0_i32_0 = arith.constant 0 : i32
    %c0_i32_1 = arith.constant 0 : i32
    return %c0_i32, %c0_i32_0 : i32, i32
  }
  func.func @transform_5(%arg0: i32, %arg1: i32, %arg2: i32) -> (i32, i32) {
    %c0_i32 = arith.constant 0 : i32
    %c0_i32_0 = arith.constant 0 : i32
    %c0_i32_1 = arith.constant 0 : i32
    return %c0_i32, %c0_i32_0 : i32, i32
  }
  func.func @transform_6(%arg0: i32, %arg1: i32, %arg2: i32) -> (i32, i32) {
    %c0_i32 = arith.constant 0 : i32
    %c0_i32_0 = arith.constant 0 : i32
    %c0_i32_1 = arith.constant 0 : i32
    return %c0_i32, %c0_i32_0 : i32, i32
  }
  func.func @transform_7(%arg0: i32, %arg1: i32, %arg2: i32) -> (i32, i32) {
    %c0_i32 = arith.constant 0 : i32
    %c0_i32_0 = arith.constant 0 : i32
    %c0_i32_1 = arith.constant 0 : i32
    return %c0_i32, %c0_i32_0 : i32, i32
  }
  func.func @transform_8(%arg0: i32, %arg1: i32, %arg2: i32) -> (i32, i32) {
    %c0_i32 = arith.constant 0 : i32
    %c0_i32_0 = arith.constant 0 : i32
    %c0_i32_1 = arith.constant 0 : i32
    return %c0_i32, %c0_i32_0 : i32, i32
  }
  func.func @transform_9(%arg0: i32, %arg1: i32, %arg2: i32) -> (i32, i32) {
    %c0_i32 = arith.constant 0 : i32
    %c0_i32_0 = arith.constant 0 : i32
    return %arg2, %c0_i32 : i32, i32
  }
  func.func @transform_10(%arg0: i32, %arg1: i32, %arg2: i32) -> (i32, i32) {
    %c0_i32 = arith.constant 0 : i32
    %c0_i32_0 = arith.constant 0 : i32
    return %c0_i32, %arg2 : i32, i32
  }
  func.func @transform_11(%arg0: i32, %arg1: i32, %arg2: i32) -> (i32, i32, i32) {
    %c0_i32 = arith.constant 0 : i32
    %c0_i32_0 = arith.constant 0 : i32
    return %arg0, %arg1, %c0_i32 : i32, i32, i32
  }
  func.func @transform_12(%arg0: i32, %arg1: i32, %arg2: i32) -> (i32, i32, i32) {
    %c0_i32 = arith.constant 0 : i32
    return %arg0, %arg1, %arg2 : i32, i32, i32
  }
}

</mosaic_0001>

<llo_original>
// kernel: seq2seq_lm_forward.2
$region0: #{seq2seq_lm_forward.2}
  #allocation0 [shape = 'u32[]', space=smem, size = 0x4, offset = 0x4, fixed_abs, tag = 'smem constant byte address 0x4 - core index']
  #allocation1 [shape = 'u32[144,128]{1,0:T(1,128)}', space=vmem, size = 0x12000, scoped, tag = 'internal scratch']
  %s0 = inlined_call_operand.vmem [shape: bf16[32,256], index: 0, kind: input, shape index: {}]
  %s1 = inlined_call_operand.vmem [shape: bf16[256,256], index: 1, kind: input, shape index: {}]
  %s2 = inlined_call_operand.vmem [shape: f32[1,256], index: 2, kind: input, shape index: {}]
  %s3 = inlined_call_operand.vmem [shape: f32[1,256], index: 3, kind: input, shape index: {}]
  %s4 = inlined_call_operand.vmem [shape: f32[1,256], index: 4, kind: input, shape index: {}]
  %s5 = inlined_call_operand.vmem [shape: bf16[256,256], index: 5, kind: input, shape index: {}]
  %s6 = inlined_call_operand.vmem [shape: bf16[256,256], index: 6, kind: input, shape index: {}]
  %s7 = inlined_call_operand.hbm [shape: bf16[32,256], index: 7, kind: output, shape index: {0}]
  %s8 = inlined_call_operand.vmem [shape: bf16[32,256], index: 8, kind: output, shape index: {1}]
  %s9 = inlined_call_operand.vmem [shape: bf16[32,256], index: 9, kind: output, shape index: {2}]
  %10 = xla_tuple %s7, %s8, %s9
  %s11 = sld [smem:[#allocation0]]
  $region54: #{seq2seq_lm_forward.2} parent=0
    _
  %s13 = ssub.s32 1, %s11
  %s14 = scalar_select 0, %s13, %s11
  $region1: #{seq2seq_lm_forward.2} parent=0
    #allocation2 [shape = 'u8[16384]{0}', space=vmem, size = 0x4000, scoped, tag = 'output window, operand 0, single buffered']
    #allocation3 [shape = 's32[1]{0}', space=sflag, size = 0x4, scoped, tag = 'scoped memory for seq2seq_lm_forward.2']
    %15 = vsyncpa [#allocation3], 0
    // Predicated region
    $region2: #{seq2seq_lm_forward.2} parent=1 // pred_check
      _
    $region3: #{seq2seq_lm_forward.2} parent=1 // pred_check_branch
      %17 = sbr.rel (0) target = $region5
    $region4: #{seq2seq_lm_forward.2} parent=1 // pred_region
      _
    $region5: #{seq2seq_lm_forward.2} parent=1 // pred_fallthru
      _
    // Predicated region
    $region6: #{seq2seq_lm_forward.2} parent=1 // pred_check
      _
    $region7: #{seq2seq_lm_forward.2} parent=1 // pred_check_branch
      %19 = sbr.rel (0) target = $region9
    $region8: #{seq2seq_lm_forward.2} parent=1 // pred_region
      _
    $region9: #{seq2seq_lm_forward.2} parent=1 // pred_fallthru
      _
    // Predicated region
    $region10: #{seq2seq_lm_forward.2} parent=1 // pred_check
      _
    $region11: #{seq2seq_lm_forward.2} parent=1 // pred_check_branch
      %21 = sbr.rel (0) target = $region13
    $region12: #{seq2seq_lm_forward.2} parent=1 // pred_region
      _
    $region13: #{seq2seq_lm_forward.2} parent=1 // pred_fallthru
      _
    // Predicated region
    $region14: #{seq2seq_lm_forward.2} parent=1 // pred_check
      _
    $region15: #{seq2seq_lm_forward.2} parent=1 // pred_check_branch
      %23 = sbr.rel (0) target = $region17
    $region16: #{seq2seq_lm_forward.2} parent=1 // pred_region
      _
    $region17: #{seq2seq_lm_forward.2} parent=1 // pred_fallthru
      _
    // Predicated region
    $region18: #{seq2seq_lm_forward.2} parent=1 // pred_check
      _
    $region19: #{seq2seq_lm_forward.2} parent=1 // pred_check_branch
      %25 = sbr.rel (0) target = $region21
    $region20: #{seq2seq_lm_forward.2} parent=1 // pred_region
      _
    $region21: #{seq2seq_lm_forward.2} parent=1 // pred_fallthru
      _
    // Predicated region
    $region22: #{seq2seq_lm_forward.2} parent=1 // pred_check
      _
    $region23: #{seq2seq_lm_forward.2} parent=1 // pred_check_branch
      %27 = sbr.rel (0) target = $region25
    $region24: #{seq2seq_lm_forward.2} parent=1 // pred_region
      _
    $region25: #{seq2seq_lm_forward.2} parent=1 // pred_fallthru
      _
    // Predicated region
    $region26: #{seq2seq_lm_forward.2} parent=1 // pred_check
      _
    $region27: #{seq2seq_lm_forward.2} parent=1 // pred_check_branch
      %29 = sbr.rel (0) target = $region29
    $region28: #{seq2seq_lm_forward.2} parent=1 // pred_region
      _
    $region29: #{seq2seq_lm_forward.2} parent=1 // pred_fallthru
      _
    %v30 = vld [vmem:[%s0] sm:$0xff]
    %v31 = vld [vmem:[%s0 + $0x8] sm:$0xff]
    %v32 = vld [vmem:[%s0 + $0x10] sm:$0xff]
    %v33 = vld [vmem:[%s0 + $0x18] sm:$0xff]
    %v34 = vld [vmem:[%s1] sm:$0xff]
    %v35 = vld [vmem:[%s1 + $0x8] sm:$0xff]
    %v36 = vld [vmem:[%s1 + $0x10] sm:$0xff]
    %v37 = vld [vmem:[%s1 + $0x18] sm:$0xff]
    %v38 = vld [vmem:[%s1 + $0x20] sm:$0xff]
    %v39 = vld [vmem:[%s1 + $0x28] sm:$0xff]
    %v40 = vld [vmem:[%s1 + $0x30] sm:$0xff]
    %v41 = vld [vmem:[%s1 + $0x38] sm:$0xff]
    %v42 = vld [vmem:[%s1 + $0x40] sm:$0xff]
    %v43 = vld [vmem:[%s1 + $0x48] sm:$0xff]
    %v44 = vld [vmem:[%s1 + $0x50] sm:$0xff]
    %v45 = vld [vmem:[%s1 + $0x58] sm:$0xff]
    %v46 = vld [vmem:[%s1 + $0x60] sm:$0xff]
    %v47 = vld [vmem:[%s1 + $0x68] sm:$0xff]
    %v48 = vld [vmem:[%s1 + $0x70] sm:$0xff]
    %v49 = vld [vmem:[%s1 + $0x78] sm:$0xff]
    %v50 = vld [vmem:[%s1 + $0x80] sm:$0xff]
    %v51 = vld [vmem:[%s1 + $0x88] sm:$0xff]
    %v52 = vld [vmem:[%s1 + $0x90] sm:$0xff]
    %v53 = vld [vmem:[%s1 + $0x98] sm:$0xff]
    %v54 = vld [vmem:[%s1 + $0xa0] sm:$0xff]
    %v55 = vld [vmem:[%s1 + $0xa8] sm:$0xff]
    %v56 = vld [vmem:[%s1 + $0xb0] sm:$0xff]
    %v57 = vld [vmem:[%s1 + $0xb8] sm:$0xff]
    %v58 = vld [vmem:[%s1 + $0xc0] sm:$0xff]
    %v59 = vld [vmem:[%s1 + $0xc8] sm:$0xff]
    %v60 = vld [vmem:[%s1 + $0xd0] sm:$0xff]
    %v61 = vld [vmem:[%s1 + $0xd8] sm:$0xff]
    %v62 = vld [vmem:[%s1 + $0xe0] sm:$0xff]
    %v63 = vld [vmem:[%s1 + $0xe8] sm:$0xff]
    %v64 = vld [vmem:[%s1 + $0xf0] sm:$0xff]
    %v65 = vld [vmem:[%s1 + $0xf8] sm:$0xff]
    %v66 = vld [vmem:[%s2] sm:$0x3]
    %v68 = vlaneseq
    %v69 = vshrl.u32 %v68, 7
    %v70 = vsub.s32 0, %v69
    %v71 = vrot.slane %v66, %v70
    %v72 = vlaneseq
    %v73 = vshrl.u32 %v72, 7
    %v74 = vsub.s32 1, %v73
    %v75 = vrot.slane %v66, %v74
    %v82 = vunpack.c.l.b16 %v30
    %v83 = vunpack.c.h.b16 %v30
    %v84 = vunpack.c.l.b16 %v31
    %v85 = vunpack.c.h.b16 %v31
    %v86 = vunpack.c.l.b16 %v32
    %v87 = vunpack.c.h.b16 %v32
    %v88 = vunpack.c.l.b16 %v33
    %v89 = vunpack.c.h.b16 %v33
    %v90 = vpack.c.b16 %v84, %v82
    %v91 = vpack.c.b16 %v85, %v83
    %v92 = vpack.c.b16 %v88, %v86
    %v93 = vpack.c.b16 %v89, %v87
    %v130 = vunpack.c.l.b16 %v34
    %v131 = vunpack.c.h.b16 %v34
    %v132 = vunpack.c.l.b16 %v35
    %v133 = vunpack.c.h.b16 %v35
    %v134 = vunpack.c.l.b16 %v36
    %v135 = vunpack.c.h.b16 %v36
    %v136 = vunpack.c.l.b16 %v37
    %v137 = vunpack.c.h.b16 %v37
    %v138 = vunpack.c.l.b16 %v38
    %v139 = vunpack.c.h.b16 %v38
    %v140 = vunpack.c.l.b16 %v39
    %v141 = vunpack.c.h.b16 %v39
    %v142 = vunpack.c.l.b16 %v40
    %v143 = vunpack.c.h.b16 %v40
    %v144 = vunpack.c.l.b16 %v41
    %v145 = vunpack.c.h.b16 %v41
    %v146 = vunpack.c.l.b16 %v42
    %v147 = vunpack.c.h.b16 %v42
    %v148 = vunpack.c.l.b16 %v43
    %v149 = vunpack.c.h.b16 %v43
    %v150 = vunpack.c.l.b16 %v44
    %v151 = vunpack.c.h.b16 %v44
    %v152 = vunpack.c.l.b16 %v45
    %v153 = vunpack.c.h.b16 %v45
    %v154 = vunpack.c.l.b16 %v46
    %v155 = vunpack.c.h.b16 %v46
    %v156 = vunpack.c.l.b16 %v47
    %v157 = vunpack.c.h.b16 %v47
    %v158 = vunpack.c.l.b16 %v48
    %v159 = vunpack.c.h.b16 %v48
    %v160 = vunpack.c.l.b16 %v49
    %v161 = vunpack.c.h.b16 %v49
    %v162 = vunpack.c.l.b16 %v50
    %v163 = vunpack.c.h.b16 %v50
    %v164 = vunpack.c.l.b16 %v51
    %v165 = vunpack.c.h.b16 %v51
    %v166 = vunpack.c.l.b16 %v52
    %v167 = vunpack.c.h.b16 %v52
    %v168 = vunpack.c.l.b16 %v53
    %v169 = vunpack.c.h.b16 %v53
    %v170 = vunpack.c.l.b16 %v54
    %v171 = vunpack.c.h.b16 %v54
    %v172 = vunpack.c.l.b16 %v55
    %v173 = vunpack.c.h.b16 %v55
    %v174 = vunpack.c.l.b16 %v56
    %v175 = vunpack.c.h.b16 %v56
    %v176 = vunpack.c.l.b16 %v57
    %v177 = vunpack.c.h.b16 %v57
    %v178 = vunpack.c.l.b16 %v58
    %v179 = vunpack.c.h.b16 %v58
    %v180 = vunpack.c.l.b16 %v59
    %v181 = vunpack.c.h.b16 %v59
    %v182 = vunpack.c.l.b16 %v60
    %v183 = vunpack.c.h.b16 %v60
    %v184 = vunpack.c.l.b16 %v61
    %v185 = vunpack.c.h.b16 %v61
    %v186 = vunpack.c.l.b16 %v62
    %v187 = vunpack.c.h.b16 %v62
    %v188 = vunpack.c.l.b16 %v63
    %v189 = vunpack.c.h.b16 %v63
    %v190 = vunpack.c.l.b16 %v64
    %v191 = vunpack.c.h.b16 %v64
    %v192 = vunpack.c.l.b16 %v65
    %v193 = vunpack.c.h.b16 %v65
    %v194 = vpack.c.b16 %v132, %v130
    %v195 = vpack.c.b16 %v133, %v131
    %v196 = vpack.c.b16 %v136, %v134
    %v197 = vpack.c.b16 %v137, %v135
    %v198 = vpack.c.b16 %v140, %v138
    %v199 = vpack.c.b16 %v141, %v139
    %v200 = vpack.c.b16 %v144, %v142
    %v201 = vpack.c.b16 %v145, %v143
    %v202 = vpack.c.b16 %v148, %v146
    %v203 = vpack.c.b16 %v149, %v147
    %v204 = vpack.c.b16 %v152, %v150
    %v205 = vpack.c.b16 %v153, %v151
    %v206 = vpack.c.b16 %v156, %v154
    %v207 = vpack.c.b16 %v157, %v155
    %v208 = vpack.c.b16 %v160, %v158
    %v209 = vpack.c.b16 %v161, %v159
    %v210 = vpack.c.b16 %v164, %v162
    %v211 = vpack.c.b16 %v165, %v163
    %v212 = vpack.c.b16 %v168, %v166
    %v213 = vpack.c.b16 %v169, %v167
    %v214 = vpack.c.b16 %v172, %v170
    %v215 = vpack.c.b16 %v173, %v171
    %v216 = vpack.c.b16 %v176, %v174
    %v217 = vpack.c.b16 %v177, %v175
    %v218 = vpack.c.b16 %v180, %v178
    %v219 = vpack.c.b16 %v181, %v179
    %v220 = vpack.c.b16 %v184, %v182
    %v221 = vpack.c.b16 %v185, %v183
    %v222 = vpack.c.b16 %v188, %v186
    %v223 = vpack.c.b16 %v189, %v187
    %v224 = vpack.c.b16 %v192, %v190
    %v225 = vpack.c.b16 %v193, %v191
    %258 = vmatprep.subr.bf16.mxu0 %v195
    %259 = vmatpush1.bf16.msra.mxu0 %v194
    %260 = vmatprep.subr.bf16.mxu0 %v197
    %261 = vmatpush1.bf16.msra.mxu0 %v196
    %262 = vmatprep.subr.bf16.mxu0 %v199
    %263 = vmatpush1.bf16.msra.mxu0 %v198
    %264 = vmatprep.subr.bf16.mxu0 %v201
    %265 = vmatpush1.bf16.msra.mxu0 %v200
    %266 = vmatprep.subr.bf16.mxu0 %v203
    %267 = vmatpush1.bf16.msra.mxu0 %v202
    %268 = vmatprep.subr.bf16.mxu0 %v205
    %269 = vmatpush1.bf16.msra.mxu0 %v204
    %270 = vmatprep.subr.bf16.mxu0 %v207
    %271 = vmatpush1.bf16.msra.mxu0 %v206
    %272 = vmatprep.subr.bf16.mxu0 %v209
    %273 = vmatpush1.bf16.msra.mxu0 %v208
    %274 = vmatprep.subr.bf16.mxu0 %v211
    %275 = vmatpush1.bf16.msra.mxu0 %v210
    %276 = vmatprep.subr.bf16.mxu0 %v213
    %277 = vmatpush1.bf16.msra.mxu0 %v212
    %278 = vmatprep.subr.bf16.mxu0 %v215
    %279 = vmatpush1.bf16.msra.mxu0 %v214
    %280 = vmatprep.subr.bf16.mxu0 %v217
    %281 = vmatpush1.bf16.msra.mxu0 %v216
    %282 = vmatprep.subr.bf16.mxu0 %v219
    %283 = vmatpush1.bf16.msra.mxu0 %v218
    %284 = vmatprep.subr.bf16.mxu0 %v221
    %285 = vmatpush1.bf16.msra.mxu0 %v220
    %286 = vmatprep.subr.bf16.mxu0 %v223
    %287 = vmatpush1.bf16.msra.mxu0 %v222
    %288 = vmatprep.subr.bf16.mxu0 %v225
    %289 = vmatpush1.bf16.msra.mxu0 %v224
    %290 = vmatprep.mubr.bf16.mxu0 %v91
    %291 = vmatmul.mubr.bf16.gmra.mrb[0].mxu0 %v90
    %v292 = vpop.f32.mrb[0].mxu0
    %v293 = vadd.f32 %v71, %v292
    %v294 = vpop.f32.mrb[0].mxu0
    %v295 = vadd.f32 %v75, %v294
    %v296 = vpop.f32.mrb[0].mxu0
    %v297 = vadd.f32 %v71, %v296
    %v298 = vpop.f32.mrb[0].mxu0
    %v299 = vadd.f32 %v75, %v298
    %300 = vmatprep.mubr.bf16.mxu0 %v93
    %301 = vmatmul.mubr.bf16.gmra.mrb[0].mxu0 %v92
    %v302 = vpop.f32.mrb[0].mxu0
    %v303 = vadd.f32 %v71, %v302
    %v304 = vpop.f32.mrb[0].mxu0
    %v305 = vadd.f32 %v75, %v304
    %v306 = vpop.f32.mrb[0].mxu0
    %v307 = vadd.f32 %v71, %v306
    %v308 = vpop.f32.mrb[0].mxu0
    %v309 = vadd.f32 %v75, %v308
    %310 = vdwg.mxu0
    %v311 = vld [vmem:[%s3] sm:$0x3]
    %v312 = vld [vmem:[%s4] sm:$0x3]
    %v313 = vmul.f32 %v293, 0.5
    %v314 = vmul.f32 %v295, 0.5
    %v315 = vmul.f32 %v297, 0.5
    %v316 = vmul.f32 %v299, 0.5
    %v317 = vmul.f32 %v303, 0.5
    %v318 = vmul.f32 %v305, 0.5
    %v319 = vmul.f32 %v307, 0.5
    %v320 = vmul.f32 %v309, 0.5
    %v321 = vmul.f32 %v293, 0.044715
    %v322 = vmul.f32 %v295, 0.044715
    %v323 = vmul.f32 %v297, 0.044715
    %v324 = vmul.f32 %v299, 0.044715
    %v325 = vmul.f32 %v303, 0.044715
    %v326 = vmul.f32 %v305, 0.044715
    %v327 = vmul.f32 %v307, 0.044715
    %v328 = vmul.f32 %v309, 0.044715
    %v329 = vmul.f32 %v321, %v293
    %v330 = vmul.f32 %v322, %v295
    %v331 = vmul.f32 %v323, %v297
    %v332 = vmul.f32 %v324, %v299
    %v333 = vmul.f32 %v325, %v303
    %v334 = vmul.f32 %v326, %v305
    %v335 = vmul.f32 %v327, %v307
    %v336 = vmul.f32 %v328, %v309
    %v337 = vmul.f32 %v329, %v293
    %v338 = vmul.f32 %v330, %v295
    %v339 = vmul.f32 %v331, %v297
    %v340 = vmul.f32 %v332, %v299
    %v341 = vmul.f32 %v333, %v303
    %v342 = vmul.f32 %v334, %v305
    %v343 = vmul.f32 %v335, %v307
    %v344 = vmul.f32 %v336, %v309
    %v345 = vadd.f32 %v293, %v337
    %v346 = vadd.f32 %v295, %v338
    %v347 = vadd.f32 %v297, %v339
    %v348 = vadd.f32 %v299, %v340
    %v349 = vadd.f32 %v303, %v341
    %v350 = vadd.f32 %v305, %v342
    %v351 = vadd.f32 %v307, %v343
    %v352 = vadd.f32 %v309, %v344
    %v353 = vmul.f32 %v345, 0.7978846
    %v354 = vmul.f32 %v346, 0.7978846
    %v355 = vmul.f32 %v347, 0.7978846
    %v356 = vmul.f32 %v348, 0.7978846
    %v357 = vmul.f32 %v349, 0.7978846
    %v358 = vmul.f32 %v350, 0.7978846
    %v359 = vmul.f32 %v351, 0.7978846
    %v360 = vmul.f32 %v352, 0.7978846
    %v361 = vtanh.pop %v353
    %v362 = vtanh.pop %v354
    %v363 = vtanh.pop %v355
    %v364 = vtanh.pop %v356
    %v365 = vtanh.pop %v357
    %v366 = vtanh.pop %v358
    %v367 = vtanh.pop %v359
    %v368 = vtanh.pop %v360
    %v369 = vadd.f32 %v361, 1.0
    %v370 = vadd.f32 %v362, 1.0
    %v371 = vadd.f32 %v363, 1.0
    %v372 = vadd.f32 %v364, 1.0
    %v373 = vadd.f32 %v365, 1.0
    %v374 = vadd.f32 %v366, 1.0
    %v375 = vadd.f32 %v367, 1.0
    %v376 = vadd.f32 %v368, 1.0
    %v377 = vmul.f32 %v313, %v369
    %v378 = vmul.f32 %v314, %v370
    %v379 = vmul.f32 %v315, %v371
    %v380 = vmul.f32 %v316, %v372
    %v381 = vmul.f32 %v317, %v373
    %v382 = vmul.f32 %v318, %v374
    %v383 = vmul.f32 %v319, %v375
    %v384 = vmul.f32 %v320, %v376
    %v385 = vadd.f32 %v377, %v378
    %386 = vadd.xlane.f32.xlu0 %v385
    %v387 = vpop.xlane.xlu0 %386
    %v388 = vadd.f32 %v379, %v380
    %389 = vadd.xlane.f32.xlu0 %v388
    %v390 = vpop.xlane.xlu0 %389
    %v391 = vadd.f32 %v381, %v382
    %392 = vadd.xlane.f32.xlu0 %v391
    %v393 = vpop.xlane.xlu0 %392
    %v394 = vadd.f32 %v383, %v384
    %395 = vadd.xlane.f32.xlu0 %v394
    %v396 = vpop.xlane.xlu0 %395
    %v397 = vrcp.pop 256.0
    %v398 = vmul.f32 %v387, %v397
    %v399 = vmul.f32 %v390, %v397
    %v400 = vmul.f32 %v393, %v397
    %v401 = vmul.f32 %v396, %v397
    %v402 = vsub.f32 %v377, %v398
    %v403 = vsub.f32 %v378, %v398
    %v404 = vsub.f32 %v379, %v399
    %v405 = vsub.f32 %v380, %v399
    %v406 = vsub.f32 %v381, %v400
    %v407 = vsub.f32 %v382, %v400
    %v408 = vsub.f32 %v383, %v401
    %v409 = vsub.f32 %v384, %v401
    %v410 = vmul.f32 %v402, %v402
    %v411 = vmul.f32 %v403, %v403
    %v412 = vmul.f32 %v404, %v404
    %v413 = vmul.f32 %v405, %v405
    %v414 = vmul.f32 %v406, %v406
    %v415 = vmul.f32 %v407, %v407
    %v416 = vmul.f32 %v408, %v408
    %v417 = vmul.f32 %v409, %v409
    %v418 = vadd.f32 %v410, %v411
    %419 = vadd.xlane.f32.xlu0 %v418
    %v420 = vpop.xlane.xlu0 %419
    %v421 = vadd.f32 %v412, %v413
    %422 = vadd.xlane.f32.xlu0 %v421
    %v423 = vpop.xlane.xlu0 %422
    %v424 = vadd.f32 %v414, %v415
    %425 = vadd.xlane.f32.xlu0 %v424
    %v426 = vpop.xlane.xlu0 %425
    %v427 = vadd.f32 %v416, %v417
    %428 = vadd.xlane.f32.xlu0 %v427
    %v429 = vpop.xlane.xlu0 %428
    %v430 = vmul.f32 %v420, %v397
    %v431 = vmul.f32 %v423, %v397
    %v432 = vmul.f32 %v426, %v397
    %v433 = vmul.f32 %v429, %v397
    %v434 = vadd.f32 %v430, 1e-05
    %v435 = vadd.f32 %v431, 1e-05
    %v436 = vadd.f32 %v432, 1e-05
    %v437 = vadd.f32 %v433, 1e-05
    %v438 = vrsqrt.pop %v434
    %v439 = vrsqrt.pop %v435
    %v440 = vrsqrt.pop %v436
    %v441 = vrsqrt.pop %v437
    %v442 = vmul.f32 %v402, %v438
    %v443 = vmul.f32 %v403, %v438
    %v444 = vmul.f32 %v404, %v439
    %v445 = vmul.f32 %v405, %v439
    %v446 = vmul.f32 %v406, %v440
    %v447 = vmul.f32 %v407, %v440
    %v448 = vmul.f32 %v408, %v441
    %v449 = vmul.f32 %v409, %v441
    %v451 = vlaneseq
    %v452 = vshrl.u32 %v451, 7
    %v453 = vsub.s32 0, %v452
    %v454 = vrot.slane %v311, %v453
    %v455 = vlaneseq
    %v456 = vshrl.u32 %v455, 7
    %v457 = vsub.s32 1, %v456
    %v458 = vrot.slane %v311, %v457
    %v461 = vmul.f32 %v442, %v454
    %v462 = vmul.f32 %v443, %v458
    %v463 = vmul.f32 %v444, %v454
    %v464 = vmul.f32 %v445, %v458
    %v465 = vmul.f32 %v446, %v454
    %v466 = vmul.f32 %v447, %v458
    %v467 = vmul.f32 %v448, %v454
    %v468 = vmul.f32 %v449, %v458
    %v470 = vlaneseq
    %v471 = vshrl.u32 %v470, 7
    %v472 = vsub.s32 0, %v471
    %v473 = vrot.slane %v312, %v472
    %v474 = vlaneseq
    %v475 = vshrl.u32 %v474, 7
    %v476 = vsub.s32 1, %v475
    %v477 = vrot.slane %v312, %v476
    %v480 = vadd.f32 %v461, %v473
    %v481 = vadd.f32 %v462, %v477
    %v482 = vadd.f32 %v463, %v473
    %v483 = vadd.f32 %v464, %v477
    %v484 = vadd.f32 %v465, %v473
    %v485 = vadd.f32 %v466, %v477
    %v486 = vadd.f32 %v467, %v473
    %v487 = vadd.f32 %v468, %v477
    %v488 = vpack.c.bf16 %v482, %v480
    %v489 = vpack.c.bf16 %v483, %v481
    %v490 = vpack.c.bf16 %v486, %v484
    %v491 = vpack.c.bf16 %v487, %v485
    %v496 = vunpack.c.l.b16 %v488
    %v497 = vunpack.c.l.b16 %v489
    %v498 = vunpack.c.h.b16 %v488
    %v499 = vunpack.c.h.b16 %v489
    %v500 = vunpack.c.l.b16 %v490
    %v501 = vunpack.c.l.b16 %v491
    %v502 = vunpack.c.h.b16 %v490
    %v503 = vunpack.c.h.b16 %v491
    %v504 = vpack.c.b16 %v497, %v496
    %v505 = vpack.c.b16 %v499, %v498
    %v506 = vpack.c.b16 %v501, %v500
    %v507 = vpack.c.b16 %v503, %v502
    %512 = vst [vmem:[#allocation2] sm:$0xff] %v504
    %513 = vst [vmem:[#allocation2 + $0x8] sm:$0xff] %v505
    %514 = vst [vmem:[#allocation2 + $0x10] sm:$0xff] %v506
    %515 = vst [vmem:[#allocation2 + $0x18] sm:$0xff] %v507
    %v516 = vld [vmem:[%s5] sm:$0xff]
    %v517 = vld [vmem:[%s5 + $0x8] sm:$0xff]
    %v518 = vld [vmem:[%s5 + $0x10] sm:$0xff]
    %v519 = vld [vmem:[%s5 + $0x18] sm:$0xff]
    %v520 = vld [vmem:[%s5 + $0x20] sm:$0xff]
    %v521 = vld [vmem:[%s5 + $0x28] sm:$0xff]
    %v522 = vld [vmem:[%s5 + $0x30] sm:$0xff]
    %v523 = vld [vmem:[%s5 + $0x38] sm:$0xff]
    %v524 = vld [vmem:[%s5 + $0x40] sm:$0xff]
    %v525 = vld [vmem:[%s5 + $0x48] sm:$0xff]
    %v526 = vld [vmem:[%s5 + $0x50] sm:$0xff]
    %v527 = vld [vmem:[%s5 + $0x58] sm:$0xff]
    %v528 = vld [vmem:[%s5 + $0x60] sm:$0xff]
    %v529 = vld [vmem:[%s5 + $0x68] sm:$0xff]
    %v530 = vld [vmem:[%s5 + $0x70] sm:$0xff]
    %v531 = vld [vmem:[%s5 + $0x78] sm:$0xff]
    %v532 = vld [vmem:[%s5 + $0x80] sm:$0xff]
    %v533 = vld [vmem:[%s5 + $0x88] sm:$0xff]
    %v534 = vld [vmem:[%s5 + $0x90] sm:$0xff]
    %v535 = vld [vmem:[%s5 + $0x98] sm:$0xff]
    %v536 = vld [vmem:[%s5 + $0xa0] sm:$0xff]
    %v537 = vld [vmem:[%s5 + $0xa8] sm:$0xff]
    %v538 = vld [vmem:[%s5 + $0xb0] sm:$0xff]
    %v539 = vld [vmem:[%s5 + $0xb8] sm:$0xff]
    %v540 = vld [vmem:[%s5 + $0xc0] sm:$0xff]
    %v541 = vld [vmem:[%s5 + $0xc8] sm:$0xff]
    %v542 = vld [vmem:[%s5 + $0xd0] sm:$0xff]
    %v543 = vld [vmem:[%s5 + $0xd8] sm:$0xff]
    %v544 = vld [vmem:[%s5 + $0xe0] sm:$0xff]
    %v545 = vld [vmem:[%s5 + $0xe8] sm:$0xff]
    %v546 = vld [vmem:[%s5 + $0xf0] sm:$0xff]
    %v547 = vld [vmem:[%s5 + $0xf8] sm:$0xff]
    %v580 = vunpack.c.l.b16 %v516
    %v581 = vunpack.c.h.b16 %v516
    %v582 = vunpack.c.l.b16 %v517
    %v583 = vunpack.c.h.b16 %v517
    %v584 = vunpack.c.l.b16 %v518
    %v585 = vunpack.c.h.b16 %v518
    %v586 = vunpack.c.l.b16 %v519
    %v587 = vunpack.c.h.b16 %v519
    %v588 = vunpack.c.l.b16 %v520
    %v589 = vunpack.c.h.b16 %v520
    %v590 = vunpack.c.l.b16 %v521
    %v591 = vunpack.c.h.b16 %v521
    %v592 = vunpack.c.l.b16 %v522
    %v593 = vunpack.c.h.b16 %v522
    %v594 = vunpack.c.l.b16 %v523
    %v595 = vunpack.c.h.b16 %v523
    %v596 = vunpack.c.l.b16 %v524
    %v597 = vunpack.c.h.b16 %v524
    %v598 = vunpack.c.l.b16 %v525
    %v599 = vunpack.c.h.b16 %v525
    %v600 = vunpack.c.l.b16 %v526
    %v601 = vunpack.c.h.b16 %v526
    %v602 = vunpack.c.l.b16 %v527
    %v603 = vunpack.c.h.b16 %v527
    %v604 = vunpack.c.l.b16 %v528
    %v605 = vunpack.c.h.b16 %v528
    %v606 = vunpack.c.l.b16 %v529
    %v607 = vunpack.c.h.b16 %v529
    %v608 = vunpack.c.l.b16 %v530
    %v609 = vunpack.c.h.b16 %v530
    %v610 = vunpack.c.l.b16 %v531
    %v611 = vunpack.c.h.b16 %v531
    %v612 = vunpack.c.l.b16 %v532
    %v613 = vunpack.c.h.b16 %v532
    %v614 = vunpack.c.l.b16 %v533
    %v615 = vunpack.c.h.b16 %v533
    %v616 = vunpack.c.l.b16 %v534
    %v617 = vunpack.c.h.b16 %v534
    %v618 = vunpack.c.l.b16 %v535
    %v619 = vunpack.c.h.b16 %v535
    %v620 = vunpack.c.l.b16 %v536
    %v621 = vunpack.c.h.b16 %v536
    %v622 = vunpack.c.l.b16 %v537
    %v623 = vunpack.c.h.b16 %v537
    %v624 = vunpack.c.l.b16 %v538
    %v625 = vunpack.c.h.b16 %v538
    %v626 = vunpack.c.l.b16 %v539
    %v627 = vunpack.c.h.b16 %v539
    %v628 = vunpack.c.l.b16 %v540
    %v629 = vunpack.c.h.b16 %v540
    %v630 = vunpack.c.l.b16 %v541
    %v631 = vunpack.c.h.b16 %v541
    %v632 = vunpack.c.l.b16 %v542
    %v633 = vunpack.c.h.b16 %v542
    %v634 = vunpack.c.l.b16 %v543
    %v635 = vunpack.c.h.b16 %v543
    %v636 = vunpack.c.l.b16 %v544
    %v637 = vunpack.c.h.b16 %v544
    %v638 = vunpack.c.l.b16 %v545
    %v639 = vunpack.c.h.b16 %v545
    %v640 = vunpack.c.l.b16 %v546
    %v641 = vunpack.c.h.b16 %v546
    %v642 = vunpack.c.l.b16 %v547
    %v643 = vunpack.c.h.b16 %v547
    %v644 = vpack.c.b16 %v582, %v580
    %v645 = vpack.c.b16 %v583, %v581
    %v646 = vpack.c.b16 %v586, %v584
    %v647 = vpack.c.b16 %v587, %v585
    %v648 = vpack.c.b16 %v590, %v588
    %v649 = vpack.c.b16 %v591, %v589
    %v650 = vpack.c.b16 %v594, %v592
    %v651 = vpack.c.b16 %v595, %v593
    %v652 = vpack.c.b16 %v598, %v596
    %v653 = vpack.c.b16 %v599, %v597
    %v654 = vpack.c.b16 %v602, %v600
    %v655 = vpack.c.b16 %v603, %v601
    %v656 = vpack.c.b16 %v606, %v604
    %v657 = vpack.c.b16 %v607, %v605
    %v658 = vpack.c.b16 %v610, %v608
    %v659 = vpack.c.b16 %v611, %v609
    %v660 = vpack.c.b16 %v614, %v612
    %v661 = vpack.c.b16 %v615, %v613
    %v662 = vpack.c.b16 %v618, %v616
    %v663 = vpack.c.b16 %v619, %v617
    %v664 = vpack.c.b16 %v622, %v620
    %v665 = vpack.c.b16 %v623, %v621
    %v666 = vpack.c.b16 %v626, %v624
    %v667 = vpack.c.b16 %v627, %v625
    %v668 = vpack.c.b16 %v630, %v628
    %v669 = vpack.c.b16 %v631, %v629
    %v670 = vpack.c.b16 %v634, %v632
    %v671 = vpack.c.b16 %v635, %v633
    %v672 = vpack.c.b16 %v638, %v636
    %v673 = vpack.c.b16 %v639, %v637
    %v674 = vpack.c.b16 %v642, %v640
    %v675 = vpack.c.b16 %v643, %v641
    %708 = vmatprep.subr.bf16.mxu0 %v645
    %709 = vmatpush1.bf16.msra.mxu0 %v644
    %710 = vmatprep.subr.bf16.mxu0 %v647
    %711 = vmatpush1.bf16.msra.mxu0 %v646
    %712 = vmatprep.subr.bf16.mxu0 %v649
    %713 = vmatpush1.bf16.msra.mxu0 %v648
    %714 = vmatprep.subr.bf16.mxu0 %v651
    %715 = vmatpush1.bf16.msra.mxu0 %v650
    %716 = vmatprep.subr.bf16.mxu0 %v653
    %717 = vmatpush1.bf16.msra.mxu0 %v652
    %718 = vmatprep.subr.bf16.mxu0 %v655
    %719 = vmatpush1.bf16.msra.mxu0 %v654
    %720 = vmatprep.subr.bf16.mxu0 %v657
    %721 = vmatpush1.bf16.msra.mxu0 %v656
    %722 = vmatprep.subr.bf16.mxu0 %v659
    %723 = vmatpush1.bf16.msra.mxu0 %v658
    %724 = vmatprep.subr.bf16.mxu0 %v661
    %725 = vmatpush1.bf16.msra.mxu0 %v660
    %726 = vmatprep.subr.bf16.mxu0 %v663
    %727 = vmatpush1.bf16.msra.mxu0 %v662
    %728 = vmatprep.subr.bf16.mxu0 %v665
    %729 = vmatpush1.bf16.msra.mxu0 %v664
    %730 = vmatprep.subr.bf16.mxu0 %v667
    %731 = vmatpush1.bf16.msra.mxu0 %v666
    %732 = vmatprep.subr.bf16.mxu0 %v669
    %733 = vmatpush1.bf16.msra.mxu0 %v668
    %734 = vmatprep.subr.bf16.mxu0 %v671
    %735 = vmatpush1.bf16.msra.mxu0 %v670
    %736 = vmatprep.subr.bf16.mxu0 %v673
    %737 = vmatpush1.bf16.msra.mxu0 %v672
    %738 = vmatprep.subr.bf16.mxu0 %v675
    %739 = vmatpush1.bf16.msra.mxu0 %v674
    %740 = vmatprep.mubr.bf16.mxu0 %v489
    %741 = vmatmul.mubr.bf16.gmra.mrb[0].mxu0 %v488
    %v742 = vpop.f32.mrb[0].mxu0
    %v743 = vadd.f32 0.0, %v742
    %v744 = vpop.f32.mrb[0].mxu0
    %v745 = vadd.f32 0.0, %v744
    %v746 = vpop.f32.mrb[0].mxu0
    %v747 = vadd.f32 0.0, %v746
    %v748 = vpop.f32.mrb[0].mxu0
    %v749 = vadd.f32 0.0, %v748
    %750 = vmatprep.mubr.bf16.mxu0 %v491
    %751 = vmatmul.mubr.bf16.gmra.mrb[0].mxu0 %v490
    %v752 = vpop.f32.mrb[0].mxu0
    %v753 = vadd.f32 0.0, %v752
    %v754 = vpop.f32.mrb[0].mxu0
    %v755 = vadd.f32 0.0, %v754
    %v756 = vpop.f32.mrb[0].mxu0
    %v757 = vadd.f32 0.0, %v756
    %v758 = vpop.f32.mrb[0].mxu0
    %v759 = vadd.f32 0.0, %v758
    %760 = vdwg.mxu0
    %v761 = vpack.c.bf16 %v747, %v743
    %v762 = vpack.c.bf16 %v749, %v745
    %v763 = vpack.c.bf16 %v757, %v753
    %v764 = vpack.c.bf16 %v759, %v755
    %v769 = vunpack.c.l.b16 %v761
    %v770 = vunpack.c.l.b16 %v762
    %v771 = vunpack.c.h.b16 %v761
    %v772 = vunpack.c.h.b16 %v762
    %v773 = vunpack.c.l.b16 %v763
    %v774 = vunpack.c.l.b16 %v764
    %v775 = vunpack.c.h.b16 %v763
    %v776 = vunpack.c.h.b16 %v764
    %v777 = vpack.c.b16 %v770, %v769
    %v778 = vpack.c.b16 %v772, %v771
    %v779 = vpack.c.b16 %v774, %v773
    %v780 = vpack.c.b16 %v776, %v775
    %785 = vst [vmem:[%s8] sm:$0xff] %v777
    %786 = vst [vmem:[%s8 + $0x8] sm:$0xff] %v778
    %787 = vst [vmem:[%s8 + $0x10] sm:$0xff] %v779
    %788 = vst [vmem:[%s8 + $0x18] sm:$0xff] %v780
    %v789 = vld [vmem:[%s6] sm:$0xff]
    %v790 = vld [vmem:[%s6 + $0x8] sm:$0xff]
    %v791 = vld [vmem:[%s6 + $0x10] sm:$0xff]
    %v792 = vld [vmem:[%s6 + $0x18] sm:$0xff]
    %v793 = vld [vmem:[%s6 + $0x20] sm:$0xff]
    %v794 = vld [vmem:[%s6 + $0x28] sm:$0xff]
    %v795 = vld [vmem:[%s6 + $0x30] sm:$0xff]
    %v796 = vld [vmem:[%s6 + $0x38] sm:$0xff]
    %v797 = vld [vmem:[%s6 + $0x40] sm:$0xff]
    %v798 = vld [vmem:[%s6 + $0x48] sm:$0xff]
    %v799 = vld [vmem:[%s6 + $0x50] sm:$0xff]
    %v800 = vld [vmem:[%s6 + $0x58] sm:$0xff]
    %v801 = vld [vmem:[%s6 + $0x60] sm:$0xff]
    %v802 = vld [vmem:[%s6 + $0x68] sm:$0xff]
    %v803 = vld [vmem:[%s6 + $0x70] sm:$0xff]
    %v804 = vld [vmem:[%s6 + $0x78] sm:$0xff]
    %v805 = vld [vmem:[%s6 + $0x80] sm:$0xff]
    %v806 = vld [vmem:[%s6 + $0x88] sm:$0xff]
    %v807 = vld [vmem:[%s6 + $0x90] sm:$0xff]
    %v808 = vld [vmem:[%s6 + $0x98] sm:$0xff]
    %v809 = vld [vmem:[%s6 + $0xa0] sm:$0xff]
    %v810 = vld [vmem:[%s6 + $0xa8] sm:$0xff]
    %v811 = vld [vmem:[%s6 + $0xb0] sm:$0xff]
    %v812 = vld [vmem:[%s6 + $0xb8] sm:$0xff]
    %v813 = vld [vmem:[%s6 + $0xc0] sm:$0xff]
    %v814 = vld [vmem:[%s6 + $0xc8] sm:$0xff]
    %v815 = vld [vmem:[%s6 + $0xd0] sm:$0xff]
    %v816 = vld [vmem:[%s6 + $0xd8] sm:$0xff]
    %v817 = vld [vmem:[%s6 + $0xe0] sm:$0xff]
    %v818 = vld [vmem:[%s6 + $0xe8] sm:$0xff]
    %v819 = vld [vmem:[%s6 + $0xf0] sm:$0xff]
    %v820 = vld [vmem:[%s6 + $0xf8] sm:$0xff]
    %v853 = vunpack.c.l.b16 %v789
    %v854 = vunpack.c.h.b16 %v789
    %v855 = vunpack.c.l.b16 %v790
    %v856 = vunpack.c.h.b16 %v790
    %v857 = vunpack.c.l.b16 %v791
    %v858 = vunpack.c.h.b16 %v791
    %v859 = vunpack.c.l.b16 %v792
    %v860 = vunpack.c.h.b16 %v792
    %v861 = vunpack.c.l.b16 %v793
    %v862 = vunpack.c.h.b16 %v793
    %v863 = vunpack.c.l.b16 %v794
    %v864 = vunpack.c.h.b16 %v794
    %v865 = vunpack.c.l.b16 %v795
    %v866 = vunpack.c.h.b16 %v795
    %v867 = vunpack.c.l.b16 %v796
    %v868 = vunpack.c.h.b16 %v796
    %v869 = vunpack.c.l.b16 %v797
    %v870 = vunpack.c.h.b16 %v797
    %v871 = vunpack.c.l.b16 %v798
    %v872 = vunpack.c.h.b16 %v798
    %v873 = vunpack.c.l.b16 %v799
    %v874 = vunpack.c.h.b16 %v799
    %v875 = vunpack.c.l.b16 %v800
    %v876 = vunpack.c.h.b16 %v800
    %v877 = vunpack.c.l.b16 %v801
    %v878 = vunpack.c.h.b16 %v801
    %v879 = vunpack.c.l.b16 %v802
    %v880 = vunpack.c.h.b16 %v802
    %v881 = vunpack.c.l.b16 %v803
    %v882 = vunpack.c.h.b16 %v803
    %v883 = vunpack.c.l.b16 %v804
    %v884 = vunpack.c.h.b16 %v804
    %v885 = vunpack.c.l.b16 %v805
    %v886 = vunpack.c.h.b16 %v805
    %v887 = vunpack.c.l.b16 %v806
    %v888 = vunpack.c.h.b16 %v806
    %v889 = vunpack.c.l.b16 %v807
    %v890 = vunpack.c.h.b16 %v807
    %v891 = vunpack.c.l.b16 %v808
    %v892 = vunpack.c.h.b16 %v808
    %v893 = vunpack.c.l.b16 %v809
    %v894 = vunpack.c.h.b16 %v809
    %v895 = vunpack.c.l.b16 %v810
    %v896 = vunpack.c.h.b16 %v810
    %v897 = vunpack.c.l.b16 %v811
    %v898 = vunpack.c.h.b16 %v811
    %v899 = vunpack.c.l.b16 %v812
    %v900 = vunpack.c.h.b16 %v812
    %v901 = vunpack.c.l.b16 %v813
    %v902 = vunpack.c.h.b16 %v813
    %v903 = vunpack.c.l.b16 %v814
    %v904 = vunpack.c.h.b16 %v814
    %v905 = vunpack.c.l.b16 %v815
    %v906 = vunpack.c.h.b16 %v815
    %v907 = vunpack.c.l.b16 %v816
    %v908 = vunpack.c.h.b16 %v816
    %v909 = vunpack.c.l.b16 %v817
    %v910 = vunpack.c.h.b16 %v817
    %v911 = vunpack.c.l.b16 %v818
    %v912 = vunpack.c.h.b16 %v818
    %v913 = vunpack.c.l.b16 %v819
    %v914 = vunpack.c.h.b16 %v819
    %v915 = vunpack.c.l.b16 %v820
    %v916 = vunpack.c.h.b16 %v820
    %v917 = vpack.c.b16 %v855, %v853
    %v918 = vpack.c.b16 %v856, %v854
    %v919 = vpack.c.b16 %v859, %v857
    %v920 = vpack.c.b16 %v860, %v858
    %v921 = vpack.c.b16 %v863, %v861
    %v922 = vpack.c.b16 %v864, %v862
    %v923 = vpack.c.b16 %v867, %v865
    %v924 = vpack.c.b16 %v868, %v866
    %v925 = vpack.c.b16 %v871, %v869
    %v926 = vpack.c.b16 %v872, %v870
    %v927 = vpack.c.b16 %v875, %v873
    %v928 = vpack.c.b16 %v876, %v874
    %v929 = vpack.c.b16 %v879, %v877
    %v930 = vpack.c.b16 %v880, %v878
    %v931 = vpack.c.b16 %v883, %v881
    %v932 = vpack.c.b16 %v884, %v882
    %v933 = vpack.c.b16 %v887, %v885
    %v934 = vpack.c.b16 %v888, %v886
    %v935 = vpack.c.b16 %v891, %v889
    %v936 = vpack.c.b16 %v892, %v890
    %v937 = vpack.c.b16 %v895, %v893
    %v938 = vpack.c.b16 %v896, %v894
    %v939 = vpack.c.b16 %v899, %v897
    %v940 = vpack.c.b16 %v900, %v898
    %v941 = vpack.c.b16 %v903, %v901
    %v942 = vpack.c.b16 %v904, %v902
    %v943 = vpack.c.b16 %v907, %v905
    %v944 = vpack.c.b16 %v908, %v906
    %v945 = vpack.c.b16 %v911, %v909
    %v946 = vpack.c.b16 %v912, %v910
    %v947 = vpack.c.b16 %v915, %v913
    %v948 = vpack.c.b16 %v916, %v914
    %981 = vmatprep.subr.bf16.mxu0 %v918
    %982 = vmatpush1.bf16.msra.mxu0 %v917
    %983 = vmatprep.subr.bf16.mxu0 %v920
    %984 = vmatpush1.bf16.msra.mxu0 %v919
    %985 = vmatprep.subr.bf16.mxu0 %v922
    %986 = vmatpush1.bf16.msra.mxu0 %v921
    %987 = vmatprep.subr.bf16.mxu0 %v924
    %988 = vmatpush1.bf16.msra.mxu0 %v923
    %989 = vmatprep.subr.bf16.mxu0 %v926
    %990 = vmatpush1.bf16.msra.mxu0 %v925
    %991 = vmatprep.subr.bf16.mxu0 %v928
    %992 = vmatpush1.bf16.msra.mxu0 %v927
    %993 = vmatprep.subr.bf16.mxu0 %v930
    %994 = vmatpush1.bf16.msra.mxu0 %v929
    %995 = vmatprep.subr.bf16.mxu0 %v932
    %996 = vmatpush1.bf16.msra.mxu0 %v931
    %997 = vmatprep.subr.bf16.mxu0 %v934
    %998 = vmatpush1.bf16.msra.mxu0 %v933
    %999 = vmatprep.subr.bf16.mxu0 %v936
    %1000 = vmatpush1.bf16.msra.mxu0 %v935
    %1001 = vmatprep.subr.bf16.mxu0 %v938
    %1002 = vmatpush1.bf16.msra.mxu0 %v937
    %1003 = vmatprep.subr.bf16.mxu0 %v940
    %1004 = vmatpush1.bf16.msra.mxu0 %v939
    %1005 = vmatprep.subr.bf16.mxu0 %v942
    %1006 = vmatpush1.bf16.msra.mxu0 %v941
    %1007 = vmatprep.subr.bf16.mxu0 %v944
    %1008 = vmatpush1.bf16.msra.mxu0 %v943
    %1009 = vmatprep.subr.bf16.mxu0 %v946
    %1010 = vmatpush1.bf16.msra.mxu0 %v945
    %1011 = vmatprep.subr.bf16.mxu0 %v948
    %1012 = vmatpush1.bf16.msra.mxu0 %v947
    %1013 = vmatprep.mubr.bf16.mxu0 %v489
    %1014 = vmatmul.mubr.bf16.gmra.mrb[0].mxu0 %v488
    %v1015 = vpop.f32.mrb[0].mxu0
    %v1016 = vadd.f32 0.0, %v1015
    %v1017 = vpop.f32.mrb[0].mxu0
    %v1018 = vadd.f32 0.0, %v1017
    %v1019 = vpop.f32.mrb[0].mxu0
    %v1020 = vadd.f32 0.0, %v1019
    %v1021 = vpop.f32.mrb[0].mxu0
    %v1022 = vadd.f32 0.0, %v1021
    %1023 = vmatprep.mubr.bf16.mxu0 %v491
    %1024 = vmatmul.mubr.bf16.gmra.mrb[0].mxu0 %v490
    %v1025 = vpop.f32.mrb[0].mxu0
    %v1026 = vadd.f32 0.0, %v1025
    %v1027 = vpop.f32.mrb[0].mxu0
    %v1028 = vadd.f32 0.0, %v1027
    %v1029 = vpop.f32.mrb[0].mxu0
    %v1030 = vadd.f32 0.0, %v1029
    %v1031 = vpop.f32.mrb[0].mxu0
    %v1032 = vadd.f32 0.0, %v1031
    %1033 = vdwg.mxu0
    %v1034 = vpack.c.bf16 %v1020, %v1016
    %v1035 = vpack.c.bf16 %v1022, %v1018
    %v1036 = vpack.c.bf16 %v1030, %v1026
    %v1037 = vpack.c.bf16 %v1032, %v1028
    %v1042 = vunpack.c.l.b16 %v1034
    %v1043 = vunpack.c.l.b16 %v1035
    %v1044 = vunpack.c.h.b16 %v1034
    %v1045 = vunpack.c.h.b16 %v1035
    %v1046 = vunpack.c.l.b16 %v1036
    %v1047 = vunpack.c.l.b16 %v1037
    %v1048 = vunpack.c.h.b16 %v1036
    %v1049 = vunpack.c.h.b16 %v1037
    %v1050 = vpack.c.b16 %v1043, %v1042
    %v1051 = vpack.c.b16 %v1045, %v1044
    %v1052 = vpack.c.b16 %v1047, %v1046
    %v1053 = vpack.c.b16 %v1049, %v1048
    %1058 = vst [vmem:[%s9] sm:$0xff] %v1050
    %1059 = vst [vmem:[%s9 + $0x8] sm:$0xff] %v1051
    %1060 = vst [vmem:[%s9 + $0x10] sm:$0xff] %v1052
    %1061 = vst [vmem:[%s9 + $0x18] sm:$0xff] %v1053
    // Predicated region
    $region30: #{seq2seq_lm_forward.2} parent=1 // pred_check
      _
    $region31: #{seq2seq_lm_forward.2} parent=1 // pred_check_branch
      %1063 = sbr.rel (0) target = $region33
    $region32: #{seq2seq_lm_forward.2} parent=1 // pred_region
      %s1065 = ssub.s32 512, 512
      %1066 = vsyncadd [#allocation3], %s1065
      %s1067 = sshll.u32 [#allocation2], 4
      %s1068 = int_to_ptr.vmem [resolvable:$true] %s1067
      %1073 = dma.vmem_to_hbm [thread:$0]  %s1068, 512, %s7, [#allocation3], 128, 128, 8
    $region33: #{seq2seq_lm_forward.2} parent=1 // pred_fallthru
      _
    // Predicated region
    $region34: #{seq2seq_lm_forward.2} parent=1 // pred_check
      _
    $region35: #{seq2seq_lm_forward.2} parent=1 // pred_check_branch
      %1075 = sbr.rel (0) target = $region37
    $region36: #{seq2seq_lm_forward.2} parent=1 // pred_region
      _
    $region37: #{seq2seq_lm_forward.2} parent=1 // pred_fallthru
      _
    // Predicated region
    $region38: #{seq2seq_lm_forward.2} parent=1 // pred_check
      _
    $region39: #{seq2seq_lm_forward.2} parent=1 // pred_check_branch
      %1077 = sbr.rel (0) target = $region41
    $region40: #{seq2seq_lm_forward.2} parent=1 // pred_region
      _
    $region41: #{seq2seq_lm_forward.2} parent=1 // pred_fallthru
      _
    // Predicated region
    $region42: #{seq2seq_lm_forward.2} parent=1 // pred_check
      _
    $region43: #{seq2seq_lm_forward.2} parent=1 // pred_check_branch
      %1079 = sbr.rel (0) target = $region45
    $region44: #{seq2seq_lm_forward.2} parent=1 // pred_region
      %1080 = dma.done [#allocation3], 512
    $region45: #{seq2seq_lm_forward.2} parent=1 // pred_fallthru
      _
    // Predicated region
    $region46: #{seq2seq_lm_forward.2} parent=1 // pred_check
      _
    $region47: #{seq2seq_lm_forward.2} parent=1 // pred_check_branch
      %1082 = sbr.rel (0) target = $region49
    $region48: #{seq2seq_lm_forward.2} parent=1 // pred_region
      _
    $region49: #{seq2seq_lm_forward.2} parent=1 // pred_fallthru
      _
    // Predicated region
    $region50: #{seq2seq_lm_forward.2} parent=1 // pred_check
      _
    $region51: #{seq2seq_lm_forward.2} parent=1 // pred_check_branch
      %1084 = sbr.rel (0) target = $region53
    $region52: #{seq2seq_lm_forward.2} parent=1 // pred_region
      _
    $region53: #{seq2seq_lm_forward.2} parent=1 // pred_fallthru
      _
    %1085 = vsyncpa [#allocation3], 1

// kernel: seq2seq_lm_forward.3
$region0: #{seq2seq_lm_forward.3}
  #allocation0 [shape = 'u32[]', space=smem, size = 0x4, offset = 0x4, fixed_abs, tag = 'smem constant byte address 0x4 - core index']
  #allocation1 [shape = 'u32[144,128]{1,0:T(1,128)}', space=vmem, size = 0x12000, scoped, tag = 'internal scratch']
  #allocation2 [shape = 'bf16[8,256]{1,0:T(8,128)(2,1)}', space=vmem, size = 0x1000, scoped, tag = 'scratch operand']
  %s0 = inlined_call_operand.vmem [shape: bf16[2,8,256], index: 0, kind: input, shape index: {}]
  %s1 = inlined_call_operand.vmem [shape: bf16[2,16,256], index: 1, kind: input, shape index: {}]
  %s2 = inlined_call_operand.vmem [shape: bf16[2,16,256], index: 2, kind: input, shape index: {}]
  %s3 = inlined_call_operand.vmem [shape: bf16[256,256], index: 3, kind: input, shape index: {}]
  %s4 = inlined_call_operand.vmem [shape: bf16[256,256], index: 4, kind: input, shape index: {}]
  %s5 = inlined_call_operand.vmem [shape: bf16[256,256], index: 5, kind: input, shape index: {}]
  %s6 = inlined_call_operand.vmem [shape: f32[1,256], index: 6, kind: input, shape index: {}]
  %s7 = inlined_call_operand.vmem [shape: f32[1,256], index: 7, kind: input, shape index: {}]
  %s8 = inlined_call_operand.vmem [shape: f32[1,256], index: 8, kind: input, shape index: {}]
  %s9 = inlined_call_operand.vmem [shape: bf16[1024,256], index: 9, kind: input, shape index: {}]
  %s10 = inlined_call_operand.vmem [shape: f32[1,1024], index: 10, kind: input, shape index: {}]
  %s11 = inlined_call_operand.hbm [shape: f32[2,8,256], index: 11, kind: output, shape index: {0}]
  %s12 = inlined_call_operand.hbm [shape: f32[2,8,1024], index: 12, kind: output, shape index: {1}]
  %13 = xla_tuple %s11, %s12
  %s14 = sld [smem:[#allocation0]]
  $region89: #{seq2seq_lm_forward.3} parent=0
    _
  %s16 = ssub.s32 1, %s14
  %s17 = scalar_select 0, %s16, %s14
  $region1: #{seq2seq_lm_forward.3} parent=0
    #allocation3 [shape = 'u8[16384]{0}', space=vmem, size = 0x4000, scoped, tag = 'output window, operand 0']
    #allocation4 [shape = 's32[2]{0}', space=sflag, size = 0x8, scoped, tag = 'scoped memory for seq2seq_lm_forward.3']
    #allocation5 [shape = 'u8[65536]{0}', space=vmem, size = 0x10000, scoped, tag = 'output window, operand 1']
    #allocation6 [shape = 's32[2]{0}', space=sflag, size = 0x8, scoped, tag = 'scoped memory for seq2seq_lm_forward.3']
    %18 = vsyncpa [#allocation4], 0
    %s19 = scalar_lea.sflag [#allocation4], 1
    %20 = vsyncpa %s19, 0
    %21 = vsyncpa [#allocation6], 0
    %s22 = scalar_lea.sflag [#allocation6], 1
    %23 = vsyncpa %s22, 0
    loop: start=0, step=1, limit=4
    $region2: #{seq2seq_lm_forward.3} parent=1 // loop_pre_header
      _
    $region3: #{seq2seq_lm_forward.3} parent=1 // loop_header
      %s25 = sphi 0, %s29
      %p26 = scmp.ge.s32.totalorder %s25, 4
      %s32 = sphi 0, %s51
      %s33 = sphi 0, %s47
      %s34 = sphi 0, %s43
      %s35 = sphi 0, %s32
      %s36 = sphi 0, %s33
      %s37 = sphi 0, %s34
      %s38 = sphi 0, %s35
      %s39 = sphi 0, %s36
      %s40 = sphi 0, %s37
      %s56 = sphi 0, %s58
      %s59 = sphi 0, %s56
      %s60 = sphi 0, %s59
      %s76 = sphi 0, %s60
      %s82 = sphi 0, %s84
      %s85 = sphi 0, %s82
      %s86 = sphi 0, %s85
      %s102 = sphi 0, %s86
      %s108 = sphi 0, %s110
      %s111 = sphi 0, %s108
      %s112 = sphi 0, %s111
      %s128 = sphi 0, %s112
      %s132 = sphi 0, %s132
      %s134 = sphi 0, %s132
      %s135 = sphi 0, %s134
      %s149 = sphi 0, %s135
      %s153 = sphi 0, %s153
      %s155 = sphi 0, %s153
      %s156 = sphi 0, %s155
      %s170 = sphi 0, %s156
      %s174 = sphi 0, %s174
      %s176 = sphi 0, %s174
      %s177 = sphi 0, %s176
      %s191 = sphi 0, %s177
      %s195 = sphi 0, %s195
      %s197 = sphi 0, %s195
      %s198 = sphi 0, %s197
      %s212 = sphi 0, %s198
      %s216 = sphi 0, %s216
      %s218 = sphi 0, %s216
      %s219 = sphi 0, %s218
      %s233 = sphi 0, %s219
      %s237 = sphi 0, %s237
      %s239 = sphi 0, %s237
      %s240 = sphi 0, %s239
      %s254 = sphi 0, %s240
      %s260 = sphi 0, %s262
      %s263 = sphi 0, %s260
      %s264 = sphi 0, %s263
      %s280 = sphi 0, %s264
      %s286 = sphi 0, %s288
      %s289 = sphi 0, %s286
      %s290 = sphi 0, %s289
      %s306 = sphi 0, %s290
      %s314 = sphi 0, %s316
      %s317 = sphi 0, %s314
      %s318 = sphi 0, %s317
      %s334 = sphi 0, %s318
      %s344 = sphi 0, %s346
      %s347 = sphi 0, %s344
      %s348 = sphi 0, %s347
      %s364 = sphi 0, %s348
    $region4: #{seq2seq_lm_forward.3} parent=1 // loop_header_branch
      %28 = sbr.rel (%p26) target = $region8
    $region5: #{seq2seq_lm_forward.3} parent=1 // loop_body
      %s30 = ssub.s32 %s25, 1
      %s31 = ssub.s32 %s25, 2
      %s41 = sadd.s32 1, %s34
      %p42 = scmp.ge.s32.totalorder %s41, 1
      %s43 = scalar_select %p42, 0, %s41
      %s44 = sadd.s32 1, %s33
      %s45 = scalar_select %p42, %s44, %s33
      %p46 = scmp.ge.s32.totalorder %s45, 1
      %s47 = scalar_select %p46, 0, %s45
      %s48 = sadd.s32 1, %s32
      %s49 = scalar_select %p46, %s48, %s32
      %p50 = scmp.ge.s32.totalorder %s49, 2
      %s51 = scalar_select %p50, 0, %s49
      %s52 = ssub.s32 %s32, %s51
      %s53 = ssub.s32 %s33, %s47
      %s54 = sor.u32 %s52, %s53
      %p55 = scmp.eq.s32.totalorder %s54, 0
      %s57 = sadd.s32 %s56, 1
      %s58 = scalar_select %p55, %s56, %s57
      %p61 = pneg %p55
      %p62 = scmp.eq.s32.totalorder %s25, 1
      %p63 = por %p61, %p62
      %p64 = scmp.ne.s32.totalorder %s56, %s59
      %p65 = scmp.eq.s32.totalorder %s25, 0
      %p66 = por %p64, %p65
      %p67 = scmp.ne.s32.totalorder %s56, %s59
      %p68 = scmp.eq.s32.totalorder %s30, 1
      %p69 = por %p67, %p68
      %p70 = scmp.ne.s32.totalorder %s59, %s60
      %p71 = scmp.eq.s32.totalorder %s30, 0
      %p72 = por %p70, %p71
      %p73 = scmp.ne.s32.totalorder %s59, %s60
      %p74 = scmp.eq.s32.totalorder %s31, 1
      %p75 = por %p73, %p74
      %p77 = scmp.ne.s32.totalorder %s60, %s76
      %p78 = scmp.eq.s32.totalorder %s31, 0
      %p79 = por %p77, %p78
      %s80 = ssub.s32 %s32, %s51
      %p81 = scmp.eq.s32.totalorder %s80, 0
      %s83 = sadd.s32 %s82, 1
      %s84 = scalar_select %p81, %s82, %s83
      %p87 = pneg %p81
      %p88 = scmp.eq.s32.totalorder %s25, 1
      %p89 = por %p87, %p88
      %p90 = scmp.ne.s32.totalorder %s82, %s85
      %p91 = scmp.eq.s32.totalorder %s25, 0
      %p92 = por %p90, %p91
      %p93 = scmp.ne.s32.totalorder %s82, %s85
      %p94 = scmp.eq.s32.totalorder %s30, 1
      %p95 = por %p93, %p94
      %p96 = scmp.ne.s32.totalorder %s85, %s86
      %p97 = scmp.eq.s32.totalorder %s30, 0
      %p98 = por %p96, %p97
      %p99 = scmp.ne.s32.totalorder %s85, %s86
      %p100 = scmp.eq.s32.totalorder %s31, 1
      %p101 = por %p99, %p100
      %p103 = scmp.ne.s32.totalorder %s86, %s102
      %p104 = scmp.eq.s32.totalorder %s31, 0
      %p105 = por %p103, %p104
      %s106 = ssub.s32 %s32, %s51
      %p107 = scmp.eq.s32.totalorder %s106, 0
      %s109 = sadd.s32 %s108, 1
      %s110 = scalar_select %p107, %s108, %s109
      %p113 = pneg %p107
      %p114 = scmp.eq.s32.totalorder %s25, 1
      %p115 = por %p113, %p114
      %p116 = scmp.ne.s32.totalorder %s108, %s111
      %p117 = scmp.eq.s32.totalorder %s25, 0
      %p118 = por %p116, %p117
      %p119 = scmp.ne.s32.totalorder %s108, %s111
      %p120 = scmp.eq.s32.totalorder %s30, 1
      %p121 = por %p119, %p120
      %p122 = scmp.ne.s32.totalorder %s111, %s112
      %p123 = scmp.eq.s32.totalorder %s30, 0
      %p124 = por %p122, %p123
      %p125 = scmp.ne.s32.totalorder %s111, %s112
      %p126 = scmp.eq.s32.totalorder %s31, 1
      %p127 = por %p125, %p126
      %p129 = scmp.ne.s32.totalorder %s112, %s128
      %p130 = scmp.eq.s32.totalorder %s31, 0
      %p131 = por %p129, %p130
      %s133 = sadd.s32 %s132, 1
      %p136 = scmp.eq.s32.totalorder %s25, 1
      %p137 = scmp.ne.s32.totalorder %s132, %s134
      %p138 = scmp.eq.s32.totalorder %s25, 0
      %p139 = por %p137, %p138
      %p140 = scmp.ne.s32.totalorder %s132, %s134
      %p141 = scmp.eq.s32.totalorder %s30, 1
      %p142 = por %p140, %p141
      %p143 = scmp.ne.s32.totalorder %s134, %s135
      %p144 = scmp.eq.s32.totalorder %s30, 0
      %p145 = por %p143, %p144
      %p146 = scmp.ne.s32.totalorder %s134, %s135
      %p147 = scmp.eq.s32.totalorder %s31, 1
      %p148 = por %p146, %p147
      %p150 = scmp.ne.s32.totalorder %s135, %s149
      %p151 = scmp.eq.s32.totalorder %s31, 0
      %p152 = por %p150, %p151
      %s154 = sadd.s32 %s153, 1
      %p157 = scmp.eq.s32.totalorder %s25, 1
      %p158 = scmp.ne.s32.totalorder %s153, %s155
      %p159 = scmp.eq.s32.totalorder %s25, 0
      %p160 = por %p158, %p159
      %p161 = scmp.ne.s32.totalorder %s153, %s155
      %p162 = scmp.eq.s32.totalorder %s30, 1
      %p163 = por %p161, %p162
      %p164 = scmp.ne.s32.totalorder %s155, %s156
      %p165 = scmp.eq.s32.totalorder %s30, 0
      %p166 = por %p164, %p165
      %p167 = scmp.ne.s32.totalorder %s155, %s156
      %p168 = scmp.eq.s32.totalorder %s31, 1
      %p169 = por %p167, %p168
      %p171 = scmp.ne.s32.totalorder %s156, %s170
      %p172 = scmp.eq.s32.totalorder %s31, 0
      %p173 = por %p171, %p172
      %s175 = sadd.s32 %s174, 1
      %p178 = scmp.eq.s32.totalorder %s25, 1
      %p179 = scmp.ne.s32.totalorder %s174, %s176
      %p180 = scmp.eq.s32.totalorder %s25, 0
      %p181 = por %p179, %p180
      %p182 = scmp.ne.s32.totalorder %s174, %s176
      %p183 = scmp.eq.s32.totalorder %s30, 1
      %p184 = por %p182, %p183
      %p185 = scmp.ne.s32.totalorder %s176, %s177
      %p186 = scmp.eq.s32.totalorder %s30, 0
      %p187 = por %p185, %p186
      %p188 = scmp.ne.s32.totalorder %s176, %s177
      %p189 = scmp.eq.s32.totalorder %s31, 1
      %p190 = por %p188, %p189
      %p192 = scmp.ne.s32.totalorder %s177, %s191
      %p193 = scmp.eq.s32.totalorder %s31, 0
      %p194 = por %p192, %p193
      %s196 = sadd.s32 %s195, 1
      %p199 = scmp.eq.s32.totalorder %s25, 1
      %p200 = scmp.ne.s32.totalorder %s195, %s197
      %p201 = scmp.eq.s32.totalorder %s25, 0
      %p202 = por %p200, %p201
      %p203 = scmp.ne.s32.totalorder %s195, %s197
      %p204 = scmp.eq.s32.totalorder %s30, 1
      %p205 = por %p203, %p204
      %p206 = scmp.ne.s32.totalorder %s197, %s198
      %p207 = scmp.eq.s32.totalorder %s30, 0
      %p208 = por %p206, %p207
      %p209 = scmp.ne.s32.totalorder %s197, %s198
      %p210 = scmp.eq.s32.totalorder %s31, 1
      %p211 = por %p209, %p210
      %p213 = scmp.ne.s32.totalorder %s198, %s212
      %p214 = scmp.eq.s32.totalorder %s31, 0
      %p215 = por %p213, %p214
      %s217 = sadd.s32 %s216, 1
      %p220 = scmp.eq.s32.totalorder %s25, 1
      %p221 = scmp.ne.s32.totalorder %s216, %s218
      %p222 = scmp.eq.s32.totalorder %s25, 0
      %p223 = por %p221, %p222
      %p224 = scmp.ne.s32.totalorder %s216, %s218
      %p225 = scmp.eq.s32.totalorder %s30, 1
      %p226 = por %p224, %p225
      %p227 = scmp.ne.s32.totalorder %s218, %s219
      %p228 = scmp.eq.s32.totalorder %s30, 0
      %p229 = por %p227, %p228
      %p230 = scmp.ne.s32.totalorder %s218, %s219
      %p231 = scmp.eq.s32.totalorder %s31, 1
      %p232 = por %p230, %p231
      %p234 = scmp.ne.s32.totalorder %s219, %s233
      %p235 = scmp.eq.s32.totalorder %s31, 0
      %p236 = por %p234, %p235
      %s238 = sadd.s32 %s237, 1
      %p241 = scmp.eq.s32.totalorder %s25, 1
      %p242 = scmp.ne.s32.totalorder %s237, %s239
      %p243 = scmp.eq.s32.totalorder %s25, 0
      %p244 = por %p242, %p243
      %p245 = scmp.ne.s32.totalorder %s237, %s239
      %p246 = scmp.eq.s32.totalorder %s30, 1
      %p247 = por %p245, %p246
      %p248 = scmp.ne.s32.totalorder %s239, %s240
      %p249 = scmp.eq.s32.totalorder %s30, 0
      %p250 = por %p248, %p249
      %p251 = scmp.ne.s32.totalorder %s239, %s240
      %p252 = scmp.eq.s32.totalorder %s31, 1
      %p253 = por %p251, %p252
      %p255 = scmp.ne.s32.totalorder %s240, %s254
      %p256 = scmp.eq.s32.totalorder %s31, 0
      %p257 = por %p255, %p256
      %s258 = ssub.s32 %s34, %s43
      %p259 = scmp.eq.s32.totalorder %s258, 0
      %s261 = sadd.s32 %s260, 1
      %s262 = scalar_select %p259, %s260, %s261
      %p265 = pneg %p259
      %p266 = scmp.eq.s32.totalorder %s25, 1
      %p267 = por %p265, %p266
      %p268 = scmp.ne.s32.totalorder %s260, %s263
      %p269 = scmp.eq.s32.totalorder %s25, 0
      %p270 = por %p268, %p269
      %p271 = scmp.ne.s32.totalorder %s260, %s263
      %p272 = scmp.eq.s32.totalorder %s30, 1
      %p273 = por %p271, %p272
      %p274 = scmp.ne.s32.totalorder %s263, %s264
      %p275 = scmp.eq.s32.totalorder %s30, 0
      %p276 = por %p274, %p275
      %p277 = scmp.ne.s32.totalorder %s263, %s264
      %p278 = scmp.eq.s32.totalorder %s31, 1
      %p279 = por %p277, %p278
      %p281 = scmp.ne.s32.totalorder %s264, %s280
      %p282 = scmp.eq.s32.totalorder %s31, 0
      %p283 = por %p281, %p282
      %s284 = ssub.s32 %s34, %s43
      %p285 = scmp.eq.s32.totalorder %s284, 0
      %s287 = sadd.s32 %s286, 1
      %s288 = scalar_select %p285, %s286, %s287
      %p291 = pneg %p285
      %p292 = scmp.eq.s32.totalorder %s25, 1
      %p293 = por %p291, %p292
      %p294 = scmp.ne.s32.totalorder %s286, %s289
      %p295 = scmp.eq.s32.totalorder %s25, 0
      %p296 = por %p294, %p295
      %p297 = scmp.ne.s32.totalorder %s286, %s289
      %p298 = scmp.eq.s32.totalorder %s30, 1
      %p299 = por %p297, %p298
      %p300 = scmp.ne.s32.totalorder %s289, %s290
      %p301 = scmp.eq.s32.totalorder %s30, 0
      %p302 = por %p300, %p301
      %p303 = scmp.ne.s32.totalorder %s289, %s290
      %p304 = scmp.eq.s32.totalorder %s31, 1
      %p305 = por %p303, %p304
      %p307 = scmp.ne.s32.totalorder %s290, %s306
      %p308 = scmp.eq.s32.totalorder %s31, 0
      %p309 = por %p307, %p308
      %s310 = ssub.s32 %s32, %s51
      %s311 = ssub.s32 %s33, %s47
      %s312 = sor.u32 %s310, %s311
      %p313 = scmp.eq.s32.totalorder %s312, 0
      %s315 = sadd.s32 %s314, 1
      %s316 = scalar_select %p313, %s314, %s315
      %p319 = pneg %p313
      %p320 = scmp.eq.s32.totalorder %s25, 1
      %p321 = por %p319, %p320
      %p322 = scmp.ne.s32.totalorder %s314, %s317
      %p323 = scmp.eq.s32.totalorder %s25, 0
      %p324 = por %p322, %p323
      %p325 = scmp.ne.s32.totalorder %s314, %s317
      %p326 = scmp.eq.s32.totalorder %s30, 1
      %p327 = por %p325, %p326
      %p328 = scmp.ne.s32.totalorder %s317, %s318
      %p329 = scmp.eq.s32.totalorder %s30, 0
      %p330 = por %p328, %p329
      %p331 = scmp.ne.s32.totalorder %s317, %s318
      %p332 = scmp.eq.s32.totalorder %s31, 1
      %p333 = por %p331, %p332
      %p335 = scmp.ne.s32.totalorder %s318, %s334
      %p336 = scmp.eq.s32.totalorder %s31, 0
      %p337 = por %p335, %p336
      %s338 = ssub.s32 %s32, %s51
      %s339 = ssub.s32 %s33, %s47
      %s340 = sor.u32 %s338, %s339
      %s341 = ssub.s32 %s34, %s43
      %s342 = sor.u32 %s340, %s341
      %p343 = scmp.eq.s32.totalorder %s342, 0
      %s345 = sadd.s32 %s344, 1
      %s346 = scalar_select %p343, %s344, %s345
      %p349 = pneg %p343
      %p350 = scmp.eq.s32.totalorder %s25, 1
      %p351 = por %p349, %p350
      %p352 = scmp.ne.s32.totalorder %s344, %s347
      %p353 = scmp.eq.s32.totalorder %s25, 0
      %p354 = por %p352, %p353
      %p355 = scmp.ne.s32.totalorder %s344, %s347
      %p356 = scmp.eq.s32.totalorder %s30, 1
      %p357 = por %p355, %p356
      %p358 = scmp.ne.s32.totalorder %s347, %s348
      %p359 = scmp.eq.s32.totalorder %s30, 0
      %p360 = por %p358, %p359
      %p361 = scmp.ne.s32.totalorder %s347, %s348
      %p362 = scmp.eq.s32.totalorder %s31, 1
      %p363 = por %p361, %p362
      %p365 = scmp.ne.s32.totalorder %s348, %s364
      %p366 = scmp.eq.s32.totalorder %s31, 0
      %p367 = por %p365, %p366
      %p368 = scmp.le.s32.totalorder 1, %s25
      %p369 = scmp.lt.s32.totalorder %s25, 3
      %p370 = pnand %p368, %p369
      %p371 = pneg %p370
      // Predicated region
      $region9: #{seq2seq_lm_forward.3} parent=5 // pred_check
        _
      $region10: #{seq2seq_lm_forward.3} parent=5 // pred_check_branch
        %373 = sbr.rel (%p370) target = $region12
      $region11: #{seq2seq_lm_forward.3} parent=5 // pred_region
        %s374 = ssub.s32 %s25, 1
        // Predicated region
        $region13: #{seq2seq_lm_forward.3} parent=11 // pred_check
          %p375 = pneg %p145
        $region14: #{seq2seq_lm_forward.3} parent=11 // pred_check_branch
          %377 = sbr.rel (%p375) target = $region16
        $region15: #{seq2seq_lm_forward.3} parent=11 // pred_region
          _
        $region16: #{seq2seq_lm_forward.3} parent=11 // pred_fallthru
          _
        // Predicated region
        $region17: #{seq2seq_lm_forward.3} parent=11 // pred_check
          %p378 = pneg %p166
        $region18: #{seq2seq_lm_forward.3} parent=11 // pred_check_branch
          %380 = sbr.rel (%p378) target = $region20
        $region19: #{seq2seq_lm_forward.3} parent=11 // pred_region
          _
        $region20: #{seq2seq_lm_forward.3} parent=11 // pred_fallthru
          _
        // Predicated region
        $region21: #{seq2seq_lm_forward.3} parent=11 // pred_check
          %p381 = pneg %p187
        $region22: #{seq2seq_lm_forward.3} parent=11 // pred_check_branch
          %383 = sbr.rel (%p381) target = $region24
        $region23: #{seq2seq_lm_forward.3} parent=11 // pred_region
          _
        $region24: #{seq2seq_lm_forward.3} parent=11 // pred_fallthru
          _
        // Predicated region
        $region25: #{seq2seq_lm_forward.3} parent=11 // pred_check
          %p384 = pneg %p208
        $region26: #{seq2seq_lm_forward.3} parent=11 // pred_check_branch
          %386 = sbr.rel (%p384) target = $region28
        $region27: #{seq2seq_lm_forward.3} parent=11 // pred_region
          _
        $region28: #{seq2seq_lm_forward.3} parent=11 // pred_fallthru
          _
        // Predicated region
        $region29: #{seq2seq_lm_forward.3} parent=11 // pred_check
          %p387 = pneg %p229
        $region30: #{seq2seq_lm_forward.3} parent=11 // pred_check_branch
          %389 = sbr.rel (%p387) target = $region32
        $region31: #{seq2seq_lm_forward.3} parent=11 // pred_region
          _
        $region32: #{seq2seq_lm_forward.3} parent=11 // pred_fallthru
          _
        // Predicated region
        $region33: #{seq2seq_lm_forward.3} parent=11 // pred_check
          %p390 = pneg %p250
        $region34: #{seq2seq_lm_forward.3} parent=11 // pred_check_branch
          %392 = sbr.rel (%p390) target = $region36
        $region35: #{seq2seq_lm_forward.3} parent=11 // pred_region
          _
        $region36: #{seq2seq_lm_forward.3} parent=11 // pred_fallthru
          _
        // Predicated region
        $region37: #{seq2seq_lm_forward.3} parent=11 // pred_check
          %p393 = pneg %p276
        $region38: #{seq2seq_lm_forward.3} parent=11 // pred_check_branch
          %395 = sbr.rel (%p393) target = $region40
        $region39: #{seq2seq_lm_forward.3} parent=11 // pred_region
          %s396 = smul.u32 128, %s37
          %p397 = scmp.lt.s32.totalorder %s396, 127
          %s398 = scalar_select %p397, %s396, 127
          %s399 = smul.addr %s398, 2
          %s400 = smul.addr %s399, 4
          %s401 = scalar_lea.vmem %s9, %s400
          %s402 = smul.u32 128, %s37
        $region40: #{seq2seq_lm_forward.3} parent=11 // pred_fallthru
          _
        // Predicated region
        $region41: #{seq2seq_lm_forward.3} parent=11 // pred_check
          %p403 = pneg %p302
        $region42: #{seq2seq_lm_forward.3} parent=11 // pred_check_branch
          %405 = sbr.rel (%p403) target = $region44
        $region43: #{seq2seq_lm_forward.3} parent=11 // pred_region
          %s406 = smul.u32 8, %s37
          %p407 = scmp.lt.s32.totalorder %s406, 7
          %s408 = scalar_select %p407, %s406, 7
          %s409 = scalar_lea.vmem %s10, %s408
          %s410 = smul.u32 8, %s37
        $region44: #{seq2seq_lm_forward.3} parent=11 // pred_fallthru
          _
      $region12: #{seq2seq_lm_forward.3} parent=5 // pred_fallthru
        _
      %p411 = scmp.lt.s32.totalorder %s25, 2
      // Predicated region
      $region45: #{seq2seq_lm_forward.3} parent=5 // pred_check
        %p412 = pneg %p411
      $region46: #{seq2seq_lm_forward.3} parent=5 // pred_check_branch
        %414 = sbr.rel (%p412) target = $region48
      $region47: #{seq2seq_lm_forward.3} parent=5 // pred_region
        // Predicated region
        $region49: #{seq2seq_lm_forward.3} parent=47 // pred_check
          %p415 = pneg %p66
        $region50: #{seq2seq_lm_forward.3} parent=47 // pred_check_branch
          %417 = sbr.rel (%p415) target = $region52
        $region51: #{seq2seq_lm_forward.3} parent=47 // pred_region
          %p418 = scmp.lt.s32.totalorder %s32, 1
          %s419 = scalar_select %p418, %s32, 1
          %p420 = scmp.lt.s32.totalorder %s33, 0
          %s421 = scalar_select %p420, %s33, 0
          %s422 = smul.addr %s421, 2
          %s423 = smul.addr %s419, 2
          %s424 = sadd.s32 %s422, %s423
          %s425 = smul.addr %s424, 4
          %s426 = scalar_lea.vmem %s0, %s425
        $region52: #{seq2seq_lm_forward.3} parent=47 // pred_fallthru
          _
        // Predicated region
        $region53: #{seq2seq_lm_forward.3} parent=47 // pred_check
          %p427 = pneg %p92
        $region54: #{seq2seq_lm_forward.3} parent=47 // pred_check_branch
          %429 = sbr.rel (%p427) target = $region56
        $region55: #{seq2seq_lm_forward.3} parent=47 // pred_region
          %p430 = scmp.lt.s32.totalorder %s32, 1
          %s431 = scalar_select %p430, %s32, 1
          %s432 = smul.addr %s431, 4
          %s433 = smul.addr %s432, 4
          %s434 = scalar_lea.vmem %s1, %s433
        $region56: #{seq2seq_lm_forward.3} parent=47 // pred_fallthru
          _
        // Predicated region
        $region57: #{seq2seq_lm_forward.3} parent=47 // pred_check
          %p435 = pneg %p118
        $region58: #{seq2seq_lm_forward.3} parent=47 // pred_check_branch
          %437 = sbr.rel (%p435) target = $region60
        $region59: #{seq2seq_lm_forward.3} parent=47 // pred_region
          %p438 = scmp.lt.s32.totalorder %s32, 1
          %s439 = scalar_select %p438, %s32, 1
          %s440 = smul.addr %s439, 4
          %s441 = smul.addr %s440, 4
          %s442 = scalar_lea.vmem %s2, %s441
        $region60: #{seq2seq_lm_forward.3} parent=47 // pred_fallthru
          _
      $region48: #{seq2seq_lm_forward.3} parent=5 // pred_fallthru
        _
      %p443 = scmp.le.s32.totalorder 1, %s25
      %p444 = scmp.lt.s32.totalorder %s25, 3
      %p445 = pnand %p443, %p444
      %p446 = pneg %p445
      // Predicated region
      $region61: #{seq2seq_lm_forward.3} parent=5 // pred_check
        _
      $region62: #{seq2seq_lm_forward.3} parent=5 // pred_check_branch
        %448 = sbr.rel (%p445) target = $region64
      $region63: #{seq2seq_lm_forward.3} parent=5 // pred_region
        %s449 = ssub.s32 %s25, 1
        %p450 = scmp.lt.s32.totalorder %s35, 1
        %s451 = scalar_select %p450, %s35, 1
        %p452 = scmp.lt.s32.totalorder %s36, 0
        %s453 = scalar_select %p452, %s36, 0
        %s454 = smul.addr %s453, 2
        %s455 = smul.addr %s451, 2
        %s456 = sadd.s32 %s454, %s455
        %s457 = smul.addr %s456, 4
        %s458 = scalar_lea.vmem %s0, %s457
        %p459 = pneg %p72
        %p460 = pneg %p69
        %p461 = scmp.lt.s32.totalorder %s35, 1
        %s462 = scalar_select %p461, %s35, 1
        %s463 = smul.addr %s462, 4
        %s464 = smul.addr %s463, 4
        %s465 = scalar_lea.vmem %s1, %s464
        %p466 = pneg %p98
        %p467 = pneg %p95
        %p468 = scmp.lt.s32.totalorder %s35, 1
        %s469 = scalar_select %p468, %s35, 1
        %s470 = smul.addr %s469, 4
        %s471 = smul.addr %s470, 4
        %s472 = scalar_lea.vmem %s2, %s471
        %p473 = pneg %p124
        %p474 = pneg %p121
        %p475 = pneg %p145
        %p476 = pneg %p142
        %p477 = pneg %p166
        %p478 = pneg %p163
        %p479 = pneg %p187
        %p480 = pneg %p184
        %p481 = pneg %p208
        %p482 = pneg %p205
        %p483 = pneg %p229
        %p484 = pneg %p226
        %p485 = pneg %p250
        %p486 = pneg %p247
        %s487 = smul.u32 128, %s37
        %p488 = scmp.lt.s32.totalorder %s487, 127
        %s489 = scalar_select %p488, %s487, 127
        %s490 = smul.addr %s489, 2
        %s491 = smul.addr %s490, 4
        %s492 = scalar_lea.vmem %s9, %s491
        %p493 = pneg %p276
        %p494 = pneg %p273
        %s495 = smul.u32 8, %s37
        %p496 = scmp.lt.s32.totalorder %s495, 7
        %s497 = scalar_select %p496, %s495, 7
        %s498 = scalar_lea.vmem %s10, %s497
        %p499 = pneg %p302
        %p500 = pneg %p299
        %p501 = pneg %p330
        %p502 = pneg %p327
        %s503 = sand.u32 %s317, 1
        %s504 = scalar_lea.sflag [#allocation4], %s503
        %s505 = sand.u32 %s317, 1
        %s506 = smul.addr %s505, 16
        %s507 = scalar_lea.vmem [#allocation3], %s506
        %p508 = pneg %p360
        %p509 = pneg %p357
        %s510 = sand.u32 %s347, 1
        %s511 = scalar_lea.sflag [#allocation6], %s510
        %s512 = sand.u32 %s347, 1
        %s513 = smul.addr %s512, 64
        %s514 = scalar_lea.vmem [#allocation5], %s513
        %p515 = scmp.lt.s32.totalorder %s35, 1
        %s516 = scalar_select %p515, %s35, 1
        %p517 = scmp.lt.s32.totalorder %s36, 0
        %s518 = scalar_select %p517, %s36, 0
        %s519 = smul.addr %s518, 2
        %s520 = smul.addr %s516, 2
        %s521 = sadd.s32 %s519, %s520
        %s522 = smul.addr %s521, 4
        %s523 = scalar_lea.vmem %s0, %s522
        %p524 = scmp.lt.s32.totalorder %s35, 1
        %s525 = scalar_select %p524, %s35, 1
        %s526 = smul.addr %s525, 4
        %s527 = smul.addr %s526, 4
        %s528 = scalar_lea.vmem %s1, %s527
        %p529 = scmp.lt.s32.totalorder %s35, 1
        %s530 = scalar_select %p529, %s35, 1
        %s531 = smul.addr %s530, 4
        %s532 = smul.addr %s531, 4
        %s533 = scalar_lea.vmem %s2, %s532
        %s534 = smul.u32 128, %s37
        %p535 = scmp.lt.s32.totalorder %s534, 127
        %s536 = scalar_select %p535, %s534, 127
        %s537 = smul.addr %s536, 2
        %s538 = smul.addr %s537, 4
        %s539 = scalar_lea.vmem %s9, %s538
        %s540 = smul.u32 128, %s37
        %s541 = smul.u32 8, %s37
        %p542 = scmp.lt.s32.totalorder %s541, 7
        %s543 = scalar_select %p542, %s541, 7
        %s544 = scalar_lea.vmem %s10, %s543
        %s545 = smul.u32 8, %s37
        %s546 = smul.u32 8, %s37
        %p548 = scmp.eq.s32.totalorder %s37, 0
        // Predicated region
        $region65: #{seq2seq_lm_forward.3} parent=63 // pred_check
          %p549 = pneg %p548
        $region66: #{seq2seq_lm_forward.3} parent=63 // pred_check_branch
          %551 = sbr.rel (%p549) target = $region68
        $region67: #{seq2seq_lm_forward.3} parent=63 // pred_region
          %v552 = vld [vmem:[%s523] sm:$0xff]
          %v553 = vld [vmem:[%s528] sm:$0xff]
          %v554 = vld [vmem:[%s528 + $0x8] sm:$0xff]
          %v555 = vld [vmem:[%s533] sm:$0xff]
          %v556 = vld [vmem:[%s533 + $0x8] sm:$0xff]
          %v557 = vld [vmem:[%s3] sm:$0xff]
          %v558 = vld [vmem:[%s3 + $0x8] sm:$0xff]
          %v559 = vld [vmem:[%s3 + $0x10] sm:$0xff]
          %v560 = vld [vmem:[%s3 + $0x18] sm:$0xff]
          %v561 = vld [vmem:[%s3 + $0x20] sm:$0xff]
          %v562 = vld [vmem:[%s3 + $0x28] sm:$0xff]
          %v563 = vld [vmem:[%s3 + $0x30] sm:$0xff]
          %v564 = vld [vmem:[%s3 + $0x38] sm:$0xff]
          %v565 = vld [vmem:[%s3 + $0x40] sm:$0xff]
          %v566 = vld [vmem:[%s3 + $0x48] sm:$0xff]
          %v567 = vld [vmem:[%s3 + $0x50] sm:$0xff]
          %v568 = vld [vmem:[%s3 + $0x58] sm:$0xff]
          %v569 = vld [vmem:[%s3 + $0x60] sm:$0xff]
          %v570 = vld [vmem:[%s3 + $0x68] sm:$0xff]
          %v571 = vld [vmem:[%s3 + $0x70] sm:$0xff]
          %v572 = vld [vmem:[%s3 + $0x78] sm:$0xff]
          %v573 = vld [vmem:[%s3 + $0x80] sm:$0xff]
          %v574 = vld [vmem:[%s3 + $0x88] sm:$0xff]
          %v575 = vld [vmem:[%s3 + $0x90] sm:$0xff]
          %v576 = vld [vmem:[%s3 + $0x98] sm:$0xff]
          %v577 = vld [vmem:[%s3 + $0xa0] sm:$0xff]
          %v578 = vld [vmem:[%s3 + $0xa8] sm:$0xff]
          %v579 = vld [vmem:[%s3 + $0xb0] sm:$0xff]
          %v580 = vld [vmem:[%s3 + $0xb8] sm:$0xff]
          %v581 = vld [vmem:[%s3 + $0xc0] sm:$0xff]
          %v582 = vld [vmem:[%s3 + $0xc8] sm:$0xff]
          %v583 = vld [vmem:[%s3 + $0xd0] sm:$0xff]
          %v584 = vld [vmem:[%s3 + $0xd8] sm:$0xff]
          %v585 = vld [vmem:[%s3 + $0xe0] sm:$0xff]
          %v586 = vld [vmem:[%s3 + $0xe8] sm:$0xff]
          %v587 = vld [vmem:[%s3 + $0xf0] sm:$0xff]
          %v588 = vld [vmem:[%s3 + $0xf8] sm:$0xff]
          %v590 = vunpack.c.l.b16 %v552
          %v591 = vunpack.c.h.b16 %v552
          %v592 = vpack.c.b16 %v590, %v590
          %v593 = vpack.c.b16 %v591, %v591
          %v628 = vunpack.c.l.b16 %v557
          %v629 = vunpack.c.h.b16 %v557
          %v630 = vunpack.c.l.b16 %v558
          %v631 = vunpack.c.h.b16 %v558
          %v632 = vunpack.c.l.b16 %v559
          %v633 = vunpack.c.h.b16 %v559
          %v634 = vunpack.c.l.b16 %v560
          %v635 = vunpack.c.h.b16 %v560
          %v636 = vunpack.c.l.b16 %v561
          %v637 = vunpack.c.h.b16 %v561
          %v638 = vunpack.c.l.b16 %v562
          %v639 = vunpack.c.h.b16 %v562
          %v640 = vunpack.c.l.b16 %v563
          %v641 = vunpack.c.h.b16 %v563
          %v642 = vunpack.c.l.b16 %v564
          %v643 = vunpack.c.h.b16 %v564
          %v644 = vunpack.c.l.b16 %v565
          %v645 = vunpack.c.h.b16 %v565
          %v646 = vunpack.c.l.b16 %v566
          %v647 = vunpack.c.h.b16 %v566
          %v648 = vunpack.c.l.b16 %v567
          %v649 = vunpack.c.h.b16 %v567
          %v650 = vunpack.c.l.b16 %v568
          %v651 = vunpack.c.h.b16 %v568
          %v652 = vunpack.c.l.b16 %v569
          %v653 = vunpack.c.h.b16 %v569
          %v654 = vunpack.c.l.b16 %v570
          %v655 = vunpack.c.h.b16 %v570
          %v656 = vunpack.c.l.b16 %v571
          %v657 = vunpack.c.h.b16 %v571
          %v658 = vunpack.c.l.b16 %v572
          %v659 = vunpack.c.h.b16 %v572
          %v660 = vunpack.c.l.b16 %v573
          %v661 = vunpack.c.h.b16 %v573
          %v662 = vunpack.c.l.b16 %v574
          %v663 = vunpack.c.h.b16 %v574
          %v664 = vunpack.c.l.b16 %v575
          %v665 = vunpack.c.h.b16 %v575
          %v666 = vunpack.c.l.b16 %v576
          %v667 = vunpack.c.h.b16 %v576
          %v668 = vunpack.c.l.b16 %v577
          %v669 = vunpack.c.h.b16 %v577
          %v670 = vunpack.c.l.b16 %v578
          %v671 = vunpack.c.h.b16 %v578
          %v672 = vunpack.c.l.b16 %v579
          %v673 = vunpack.c.h.b16 %v579
          %v674 = vunpack.c.l.b16 %v580
          %v675 = vunpack.c.h.b16 %v580
          %v676 = vunpack.c.l.b16 %v581
          %v677 = vunpack.c.h.b16 %v581
          %v678 = vunpack.c.l.b16 %v582
          %v679 = vunpack.c.h.b16 %v582
          %v680 = vunpack.c.l.b16 %v583
          %v681 = vunpack.c.h.b16 %v583
          %v682 = vunpack.c.l.b16 %v584
          %v683 = vunpack.c.h.b16 %v584
          %v684 = vunpack.c.l.b16 %v585
          %v685 = vunpack.c.h.b16 %v585
          %v686 = vunpack.c.l.b16 %v586
          %v687 = vunpack.c.h.b16 %v586
          %v688 = vunpack.c.l.b16 %v587
          %v689 = vunpack.c.h.b16 %v587
          %v690 = vunpack.c.l.b16 %v588
          %v691 = vunpack.c.h.b16 %v588
          %v692 = vpack.c.b16 %v630, %v628
          %v693 = vpack.c.b16 %v631, %v629
          %v694 = vpack.c.b16 %v634, %v632
          %v695 = vpack.c.b16 %v635, %v633
          %v696 = vpack.c.b16 %v638, %v636
          %v697 = vpack.c.b16 %v639, %v637
          %v698 = vpack.c.b16 %v642, %v640
          %v699 = vpack.c.b16 %v643, %v641
          %v700 = vpack.c.b16 %v646, %v644
          %v701 = vpack.c.b16 %v647, %v645
          %v702 = vpack.c.b16 %v650, %v648
          %v703 = vpack.c.b16 %v651, %v649
          %v704 = vpack.c.b16 %v654, %v652
          %v705 = vpack.c.b16 %v655, %v653
          %v706 = vpack.c.b16 %v658, %v656
          %v707 = vpack.c.b16 %v659, %v657
          %v708 = vpack.c.b16 %v662, %v660
          %v709 = vpack.c.b16 %v663, %v661
          %v710 = vpack.c.b16 %v666, %v664
          %v711 = vpack.c.b16 %v667, %v665
          %v712 = vpack.c.b16 %v670, %v668
          %v713 = vpack.c.b16 %v671, %v669
          %v714 = vpack.c.b16 %v674, %v672
          %v715 = vpack.c.b16 %v675, %v673
          %v716 = vpack.c.b16 %v678, %v676
          %v717 = vpack.c.b16 %v679, %v677
          %v718 = vpack.c.b16 %v682, %v680
          %v719 = vpack.c.b16 %v683, %v681
          %v720 = vpack.c.b16 %v686, %v684
          %v721 = vpack.c.b16 %v687, %v685
          %v722 = vpack.c.b16 %v690, %v688
          %v723 = vpack.c.b16 %v691, %v689
          %756 = vmatprep.subr.bf16.mxu0 %v693
          %757 = vmatpush1.bf16.msra.mxu0 %v692
          %758 = vmatprep.subr.bf16.mxu0 %v695
          %759 = vmatpush1.bf16.msra.mxu0 %v694
          %760 = vmatprep.subr.bf16.mxu0 %v697
          %761 = vmatpush1.bf16.msra.mxu0 %v696
          %762 = vmatprep.subr.bf16.mxu0 %v699
          %763 = vmatpush1.bf16.msra.mxu0 %v698
          %764 = vmatprep.subr.bf16.mxu0 %v701
          %765 = vmatpush1.bf16.msra.mxu0 %v700
          %766 = vmatprep.subr.bf16.mxu0 %v703
          %767 = vmatpush1.bf16.msra.mxu0 %v702
          %768 = vmatprep.subr.bf16.mxu0 %v705
          %769 = vmatpush1.bf16.msra.mxu0 %v704
          %770 = vmatprep.subr.bf16.mxu0 %v707
          %771 = vmatpush1.bf16.msra.mxu0 %v706
          %772 = vmatprep.subr.bf16.mxu0 %v709
          %773 = vmatpush1.bf16.msra.mxu0 %v708
          %774 = vmatprep.subr.bf16.mxu0 %v711
          %775 = vmatpush1.bf16.msra.mxu0 %v710
          %776 = vmatprep.subr.bf16.mxu0 %v713
          %777 = vmatpush1.bf16.msra.mxu0 %v712
          %778 = vmatprep.subr.bf16.mxu0 %v715
          %779 = vmatpush1.bf16.msra.mxu0 %v714
          %780 = vmatprep.subr.bf16.mxu0 %v717
          %781 = vmatpush1.bf16.msra.mxu0 %v716
          %782 = vmatprep.subr.bf16.mxu0 %v719
          %783 = vmatpush1.bf16.msra.mxu0 %v718
          %784 = vmatprep.subr.bf16.mxu0 %v721
          %785 = vmatpush1.bf16.msra.mxu0 %v720
          %786 = vmatprep.subr.bf16.mxu0 %v723
          %787 = vmatpush1.bf16.msra.mxu0 %v722
          %788 = vmatprep.mubr.bf16.mxu0 %v593
          %789 = vmatmul.mubr.bf16.gmra.mrb[0].mxu0 %v592
          %v790 = vpop.f32.mrb[0].mxu0
          %v791 = vadd.f32 0.0, %v790
          %v792 = vpop.f32.mrb[0].mxu0
          %v793 = vadd.f32 0.0, %v792
          %v794 = vpop.f32.mrb[0].mxu0
          %v795 = vpop.f32.mrb[0].mxu0
          %796 = vdwg.mxu0
          %v797 = vpack.c.bf16 %v791, %v791
          %v798 = vpack.c.bf16 %v793, %v793
          %v801 = vunpack.c.l.b16 %v553
          %v802 = vunpack.c.h.b16 %v553
          %v803 = vunpack.c.l.b16 %v554
          %v804 = vunpack.c.h.b16 %v554
          %v805 = vpack.c.b16 %v803, %v801
          %v806 = vpack.c.b16 %v804, %v802
          %809 = vmatprep.subr.bf16.mxu0 %v806
          %810 = vmatpush1.bf16.xpose.msra.mxu0 %v805
          %811 = vmatprep.subr.bf16.mxu0 0
          %812 = vmatpush1.bf16.xpose.msra.mxu0 0
          %813 = vmatprep.subr.bf16.mxu0 0
          %814 = vmatpush1.bf16.xpose.msra.mxu0 0
          %815 = vmatprep.subr.bf16.mxu0 0
          %816 = vmatpush1.bf16.xpose.msra.mxu0 0
          %817 = vmatprep.subr.bf16.mxu0 0
          %818 = vmatpush1.bf16.xpose.msra.mxu0 0
          %819 = vmatprep.subr.bf16.mxu0 0
          %820 = vmatpush1.bf16.xpose.msra.mxu0 0
          %821 = vmatprep.subr.bf16.mxu0 0
          %822 = vmatpush1.bf16.xpose.msra.mxu0 0
          %823 = vmatprep.subr.bf16.mxu0 0
          %824 = vmatpush1.bf16.xpose.msra.mxu0 0
          %825 = vmatprep.subr.bf16.mxu0 0
          %826 = vmatpush1.bf16.xpose.msra.mxu0 0
          %827 = vmatprep.subr.bf16.mxu0 0
          %828 = vmatpush1.bf16.xpose.msra.mxu0 0
          %829 = vmatprep.subr.bf16.mxu0 0
          %830 = vmatpush1.bf16.xpose.msra.mxu0 0
          %831 = vmatprep.subr.bf16.mxu0 0
          %832 = vmatpush1.bf16.xpose.msra.mxu0 0
          %833 = vmatprep.subr.bf16.mxu0 0
          %834 = vmatpush1.bf16.xpose.msra.mxu0 0
          %835 = vmatprep.subr.bf16.mxu0 0
          %836 = vmatpush1.bf16.xpose.msra.mxu0 0
          %837 = vmatprep.subr.bf16.mxu0 0
          %838 = vmatpush1.bf16.xpose.msra.mxu0 0
          %839 = vmatprep.subr.bf16.mxu0 0
          %840 = vmatpush1.bf16.xpose.msra.mxu0 0
          %841 = vmatprep.mubr.bf16.mxu0 %v798
          %842 = vmatmul.mubr.bf16.gmra.mrb[0].mxu0 %v797
          %v843 = vpop.f32.mrb[0].mxu0
          %v844 = vadd.f32 0.0, %v843
          %v845 = vpop.f32.mrb[0].mxu0
          %v846 = vpop.f32.mrb[0].mxu0
          %v847 = vpop.f32.mrb[0].mxu0
          %848 = vdwg.mxu0
          %v849 = vmul.f32 %v844, 0.0625
          %vm850 = vcmask 130048
          %v851 = vsel %vm850, %v849, -inf
          %852 = vmax.xlane.f32.xlu0 %v851
          %v853 = vpop.xlane.xlu0 %852
          %v854 = vsub.f32 %v849, %v853
          %v855 = vmul.f32 %v854, 1.442695
          %v856 = vpow.pop %v855
          %v857 = vsel %vm850, %v856, 0.0
          %858 = vadd.xlane.f32.xlu0 %v857
          %v859 = vpop.xlane.xlu0 %858
          %v860 = vrcp.pop %v859
          %v861 = vpack.c.bf16 %v856, %v856
          %v864 = vunpack.c.l.b16 %v555
          %v865 = vunpack.c.h.b16 %v555
          %v866 = vunpack.c.l.b16 %v556
          %v867 = vunpack.c.h.b16 %v556
          %v868 = vpack.c.b16 %v866, %v864
          %v869 = vpack.c.b16 %v867, %v865
          %v873 = vsel %vm850, %v861, 0
          %875 = vmatprep.subr.bf16.mxu0 %v869
          %876 = vmatpush1.bf16.msra.mxu0 %v868
          %877 = vmatprep.subr.bf16.mxu0 0
          %878 = vmatpush1.bf16.msra.mxu0 0
          %879 = vmatprep.subr.bf16.mxu0 0
          %880 = vmatpush1.bf16.msra.mxu0 0
          %881 = vmatprep.subr.bf16.mxu0 0
          %882 = vmatpush1.bf16.msra.mxu0 0
          %883 = vmatprep.subr.bf16.mxu0 0
          %884 = vmatpush1.bf16.msra.mxu0 0
          %885 = vmatprep.subr.bf16.mxu0 0
          %886 = vmatpush1.bf16.msra.mxu0 0
          %887 = vmatprep.subr.bf16.mxu0 0
          %888 = vmatpush1.bf16.msra.mxu0 0
          %889 = vmatprep.subr.bf16.mxu0 0
          %890 = vmatpush1.bf16.msra.mxu0 0
          %891 = vmatprep.subr.bf16.mxu0 0
          %892 = vmatpush1.bf16.msra.mxu0 0
          %893 = vmatprep.subr.bf16.mxu0 0
          %894 = vmatpush1.bf16.msra.mxu0 0
          %895 = vmatprep.subr.bf16.mxu0 0
          %896 = vmatpush1.bf16.msra.mxu0 0
          %897 = vmatprep.subr.bf16.mxu0 0
          %898 = vmatpush1.bf16.msra.mxu0 0
          %899 = vmatprep.subr.bf16.mxu0 0
          %900 = vmatpush1.bf16.msra.mxu0 0
          %901 = vmatprep.subr.bf16.mxu0 0
          %902 = vmatpush1.bf16.msra.mxu0 0
          %903 = vmatprep.subr.bf16.mxu0 0
          %904 = vmatpush1.bf16.msra.mxu0 0
          %905 = vmatprep.subr.bf16.mxu0 0
          %906 = vmatpush1.bf16.msra.mxu0 0
          %907 = vmatprep.mubr.bf16.mxu0 0
          %908 = vmatmul.mubr.bf16.gmra.mrb[0].mxu0 %v873
          %v909 = vpop.f32.mrb[0].mxu0
          %v910 = vadd.f32 0.0, %v909
          %v911 = vpop.f32.mrb[0].mxu0
          %v912 = vadd.f32 0.0, %v911
          %v913 = vpop.f32.mrb[0].mxu0
          %v914 = vpop.f32.mrb[0].mxu0
          %915 = vdwg.mxu0
          %v916 = vmul.f32 %v910, %v860
          %v917 = vmul.f32 %v912, %v860
          %v918 = vpack.c.bf16 %v916, %v916
          %v919 = vpack.c.bf16 %v917, %v917
          %v920 = vld [vmem:[%s4] sm:$0xff]
          %v921 = vld [vmem:[%s4 + $0x8] sm:$0xff]
          %v922 = vld [vmem:[%s4 + $0x10] sm:$0xff]
          %v923 = vld [vmem:[%s4 + $0x18] sm:$0xff]
          %v924 = vld [vmem:[%s4 + $0x20] sm:$0xff]
          %v925 = vld [vmem:[%s4 + $0x28] sm:$0xff]
          %v926 = vld [vmem:[%s4 + $0x30] sm:$0xff]
          %v927 = vld [vmem:[%s4 + $0x38] sm:$0xff]
          %v928 = vld [vmem:[%s4 + $0x40] sm:$0xff]
          %v929 = vld [vmem:[%s4 + $0x48] sm:$0xff]
          %v930 = vld [vmem:[%s4 + $0x50] sm:$0xff]
          %v931 = vld [vmem:[%s4 + $0x58] sm:$0xff]
          %v932 = vld [vmem:[%s4 + $0x60] sm:$0xff]
          %v933 = vld [vmem:[%s4 + $0x68] sm:$0xff]
          %v934 = vld [vmem:[%s4 + $0x70] sm:$0xff]
          %v935 = vld [vmem:[%s4 + $0x78] sm:$0xff]
          %v936 = vld [vmem:[%s4 + $0x80] sm:$0xff]
          %v937 = vld [vmem:[%s4 + $0x88] sm:$0xff]
          %v938 = vld [vmem:[%s4 + $0x90] sm:$0xff]
          %v939 = vld [vmem:[%s4 + $0x98] sm:$0xff]
          %v940 = vld [vmem:[%s4 + $0xa0] sm:$0xff]
          %v941 = vld [vmem:[%s4 + $0xa8] sm:$0xff]
          %v942 = vld [vmem:[%s4 + $0xb0] sm:$0xff]
          %v943 = vld [vmem:[%s4 + $0xb8] sm:$0xff]
          %v944 = vld [vmem:[%s4 + $0xc0] sm:$0xff]
          %v945 = vld [vmem:[%s4 + $0xc8] sm:$0xff]
          %v946 = vld [vmem:[%s4 + $0xd0] sm:$0xff]
          %v947 = vld [vmem:[%s4 + $0xd8] sm:$0xff]
          %v948 = vld [vmem:[%s4 + $0xe0] sm:$0xff]
          %v949 = vld [vmem:[%s4 + $0xe8] sm:$0xff]
          %v950 = vld [vmem:[%s4 + $0xf0] sm:$0xff]
          %v951 = vld [vmem:[%s4 + $0xf8] sm:$0xff]
          %v984 = vunpack.c.l.b16 %v920
          %v985 = vunpack.c.h.b16 %v920
          %v986 = vunpack.c.l.b16 %v921
          %v987 = vunpack.c.h.b16 %v921
          %v988 = vunpack.c.l.b16 %v922
          %v989 = vunpack.c.h.b16 %v922
          %v990 = vunpack.c.l.b16 %v923
          %v991 = vunpack.c.h.b16 %v923
          %v992 = vunpack.c.l.b16 %v924
          %v993 = vunpack.c.h.b16 %v924
          %v994 = vunpack.c.l.b16 %v925
          %v995 = vunpack.c.h.b16 %v925
          %v996 = vunpack.c.l.b16 %v926
          %v997 = vunpack.c.h.b16 %v926
          %v998 = vunpack.c.l.b16 %v927
          %v999 = vunpack.c.h.b16 %v927
          %v1000 = vunpack.c.l.b16 %v928
          %v1001 = vunpack.c.h.b16 %v928
          %v1002 = vunpack.c.l.b16 %v929
          %v1003 = vunpack.c.h.b16 %v929
          %v1004 = vunpack.c.l.b16 %v930
          %v1005 = vunpack.c.h.b16 %v930
          %v1006 = vunpack.c.l.b16 %v931
          %v1007 = vunpack.c.h.b16 %v931
          %v1008 = vunpack.c.l.b16 %v932
          %v1009 = vunpack.c.h.b16 %v932
          %v1010 = vunpack.c.l.b16 %v933
          %v1011 = vunpack.c.h.b16 %v933
          %v1012 = vunpack.c.l.b16 %v934
          %v1013 = vunpack.c.h.b16 %v934
          %v1014 = vunpack.c.l.b16 %v935
          %v1015 = vunpack.c.h.b16 %v935
          %v1016 = vunpack.c.l.b16 %v936
          %v1017 = vunpack.c.h.b16 %v936
          %v1018 = vunpack.c.l.b16 %v937
          %v1019 = vunpack.c.h.b16 %v937
          %v1020 = vunpack.c.l.b16 %v938
          %v1021 = vunpack.c.h.b16 %v938
          %v1022 = vunpack.c.l.b16 %v939
          %v1023 = vunpack.c.h.b16 %v939
          %v1024 = vunpack.c.l.b16 %v940
          %v1025 = vunpack.c.h.b16 %v940
          %v1026 = vunpack.c.l.b16 %v941
          %v1027 = vunpack.c.h.b16 %v941
          %v1028 = vunpack.c.l.b16 %v942
          %v1029 = vunpack.c.h.b16 %v942
          %v1030 = vunpack.c.l.b16 %v943
          %v1031 = vunpack.c.h.b16 %v943
          %v1032 = vunpack.c.l.b16 %v944
          %v1033 = vunpack.c.h.b16 %v944
          %v1034 = vunpack.c.l.b16 %v945
          %v1035 = vunpack.c.h.b16 %v945
          %v1036 = vunpack.c.l.b16 %v946
          %v1037 = vunpack.c.h.b16 %v946
          %v1038 = vunpack.c.l.b16 %v947
          %v1039 = vunpack.c.h.b16 %v947
          %v1040 = vunpack.c.l.b16 %v948
          %v1041 = vunpack.c.h.b16 %v948
          %v1042 = vunpack.c.l.b16 %v949
          %v1043 = vunpack.c.h.b16 %v949
          %v1044 = vunpack.c.l.b16 %v950
          %v1045 = vunpack.c.h.b16 %v950
          %v1046 = vunpack.c.l.b16 %v951
          %v1047 = vunpack.c.h.b16 %v951
          %v1048 = vpack.c.b16 %v986, %v984
          %v1049 = vpack.c.b16 %v987, %v985
          %v1050 = vpack.c.b16 %v990, %v988
          %v1051 = vpack.c.b16 %v991, %v989
          %v1052 = vpack.c.b16 %v994, %v992
          %v1053 = vpack.c.b16 %v995, %v993
          %v1054 = vpack.c.b16 %v998, %v996
          %v1055 = vpack.c.b16 %v999, %v997
          %v1056 = vpack.c.b16 %v1002, %v1000
          %v1057 = vpack.c.b16 %v1003, %v1001
          %v1058 = vpack.c.b16 %v1006, %v1004
          %v1059 = vpack.c.b16 %v1007, %v1005
          %v1060 = vpack.c.b16 %v1010, %v1008
          %v1061 = vpack.c.b16 %v1011, %v1009
          %v1062 = vpack.c.b16 %v1014, %v1012
          %v1063 = vpack.c.b16 %v1015, %v1013
          %v1064 = vpack.c.b16 %v1018, %v1016
          %v1065 = vpack.c.b16 %v1019, %v1017
          %v1066 = vpack.c.b16 %v1022, %v1020
          %v1067 = vpack.c.b16 %v1023, %v1021
          %v1068 = vpack.c.b16 %v1026, %v1024
          %v1069 = vpack.c.b16 %v1027, %v1025
          %v1070 = vpack.c.b16 %v1030, %v1028
          %v1071 = vpack.c.b16 %v1031, %v1029
          %v1072 = vpack.c.b16 %v1034, %v1032
          %v1073 = vpack.c.b16 %v1035, %v1033
          %v1074 = vpack.c.b16 %v1038, %v1036
          %v1075 = vpack.c.b16 %v1039, %v1037
          %v1076 = vpack.c.b16 %v1042, %v1040
          %v1077 = vpack.c.b16 %v1043, %v1041
          %v1078 = vpack.c.b16 %v1046, %v1044
          %v1079 = vpack.c.b16 %v1047, %v1045
          %1112 = vmatprep.subr.bf16.mxu0 %v1049
          %1113 = vmatpush1.bf16.msra.mxu0 %v1048
          %1114 = vmatprep.subr.bf16.mxu0 %v1051
          %1115 = vmatpush1.bf16.msra.mxu0 %v1050
          %1116 = vmatprep.subr.bf16.mxu0 %v1053
          %1117 = vmatpush1.bf16.msra.mxu0 %v1052
          %1118 = vmatprep.subr.bf16.mxu0 %v1055
          %1119 = vmatpush1.bf16.msra.mxu0 %v1054
          %1120 = vmatprep.subr.bf16.mxu0 %v1057
          %1121 = vmatpush1.bf16.msra.mxu0 %v1056
          %1122 = vmatprep.subr.bf16.mxu0 %v1059
          %1123 = vmatpush1.bf16.msra.mxu0 %v1058
          %1124 = vmatprep.subr.bf16.mxu0 %v1061
          %1125 = vmatpush1.bf16.msra.mxu0 %v1060
          %1126 = vmatprep.subr.bf16.mxu0 %v1063
          %1127 = vmatpush1.bf16.msra.mxu0 %v1062
          %1128 = vmatprep.subr.bf16.mxu0 %v1065
          %1129 = vmatpush1.bf16.msra.mxu0 %v1064
          %1130 = vmatprep.subr.bf16.mxu0 %v1067
          %1131 = vmatpush1.bf16.msra.mxu0 %v1066
          %1132 = vmatprep.subr.bf16.mxu0 %v1069
          %1133 = vmatpush1.bf16.msra.mxu0 %v1068
          %1134 = vmatprep.subr.bf16.mxu0 %v1071
          %1135 = vmatpush1.bf16.msra.mxu0 %v1070
          %1136 = vmatprep.subr.bf16.mxu0 %v1073
          %1137 = vmatpush1.bf16.msra.mxu0 %v1072
          %1138 = vmatprep.subr.bf16.mxu0 %v1075
          %1139 = vmatpush1.bf16.msra.mxu0 %v1074
          %1140 = vmatprep.subr.bf16.mxu0 %v1077
          %1141 = vmatpush1.bf16.msra.mxu0 %v1076
          %1142 = vmatprep.subr.bf16.mxu0 %v1079
          %1143 = vmatpush1.bf16.msra.mxu0 %v1078
          %1144 = vmatprep.mubr.bf16.mxu0 %v919
          %1145 = vmatmul.mubr.bf16.gmra.mrb[0].mxu0 %v918
          %v1146 = vpop.f32.mrb[0].mxu0
          %v1147 = vadd.f32 0.0, %v1146
          %v1148 = vpop.f32.mrb[0].mxu0
          %v1149 = vadd.f32 0.0, %v1148
          %v1150 = vpop.f32.mrb[0].mxu0
          %v1151 = vpop.f32.mrb[0].mxu0
          %1152 = vdwg.mxu0
          %v1153 = vunpack.c.l.bf16 %v552
          %v1154 = vunpack.c.h.bf16 %v552
          %v1155 = vadd.f32 %v1153, %v1147
          %v1156 = vadd.f32 %v1154, %v1149
          %v1157 = vpack.c.bf16 %v1155, %v1155
          %v1158 = vpack.c.bf16 %v1156, %v1156
          %v1159 = vld [vmem:[%s5] sm:$0xff]
          %v1160 = vld [vmem:[%s5 + $0x8] sm:$0xff]
          %v1161 = vld [vmem:[%s5 + $0x10] sm:$0xff]
          %v1162 = vld [vmem:[%s5 + $0x18] sm:$0xff]
          %v1163 = vld [vmem:[%s5 + $0x20] sm:$0xff]
          %v1164 = vld [vmem:[%s5 + $0x28] sm:$0xff]
          %v1165 = vld [vmem:[%s5 + $0x30] sm:$0xff]
          %v1166 = vld [vmem:[%s5 + $0x38] sm:$0xff]
          %v1167 = vld [vmem:[%s5 + $0x40] sm:$0xff]
          %v1168 = vld [vmem:[%s5 + $0x48] sm:$0xff]
          %v1169 = vld [vmem:[%s5 + $0x50] sm:$0xff]
          %v1170 = vld [vmem:[%s5 + $0x58] sm:$0xff]
          %v1171 = vld [vmem:[%s5 + $0x60] sm:$0xff]
          %v1172 = vld [vmem:[%s5 + $0x68] sm:$0xff]
          %v1173 = vld [vmem:[%s5 + $0x70] sm:$0xff]
          %v1174 = vld [vmem:[%s5 + $0x78] sm:$0xff]
          %v1175 = vld [vmem:[%s5 + $0x80] sm:$0xff]
          %v1176 = vld [vmem:[%s5 + $0x88] sm:$0xff]
          %v1177 = vld [vmem:[%s5 + $0x90] sm:$0xff]
          %v1178 = vld [vmem:[%s5 + $0x98] sm:$0xff]
          %v1179 = vld [vmem:[%s5 + $0xa0] sm:$0xff]
          %v1180 = vld [vmem:[%s5 + $0xa8] sm:$0xff]
          %v1181 = vld [vmem:[%s5 + $0xb0] sm:$0xff]
          %v1182 = vld [vmem:[%s5 + $0xb8] sm:$0xff]
          %v1183 = vld [vmem:[%s5 + $0xc0] sm:$0xff]
          %v1184 = vld [vmem:[%s5 + $0xc8] sm:$0xff]
          %v1185 = vld [vmem:[%s5 + $0xd0] sm:$0xff]
          %v1186 = vld [vmem:[%s5 + $0xd8] sm:$0xff]
          %v1187 = vld [vmem:[%s5 + $0xe0] sm:$0xff]
          %v1188 = vld [vmem:[%s5 + $0xe8] sm:$0xff]
          %v1189 = vld [vmem:[%s5 + $0xf0] sm:$0xff]
          %v1190 = vld [vmem:[%s5 + $0xf8] sm:$0xff]
          %v1191 = vld [vmem:[%s6] sm:$0x3]
          %v1193 = vlaneseq
          %v1194 = vshrl.u32 %v1193, 7
          %v1195 = vsub.s32 0, %v1194
          %v1196 = vrot.slane %v1191, %v1195
          %v1197 = vlaneseq
          %v1198 = vshrl.u32 %v1197, 7
          %v1199 = vsub.s32 1, %v1198
          %v1200 = vrot.slane %v1191, %v1199
          %v1235 = vunpack.c.l.b16 %v1159
          %v1236 = vunpack.c.h.b16 %v1159
          %v1237 = vunpack.c.l.b16 %v1160
          %v1238 = vunpack.c.h.b16 %v1160
          %v1239 = vunpack.c.l.b16 %v1161
          %v1240 = vunpack.c.h.b16 %v1161
          %v1241 = vunpack.c.l.b16 %v1162
          %v1242 = vunpack.c.h.b16 %v1162
          %v1243 = vunpack.c.l.b16 %v1163
          %v1244 = vunpack.c.h.b16 %v1163
          %v1245 = vunpack.c.l.b16 %v1164
          %v1246 = vunpack.c.h.b16 %v1164
          %v1247 = vunpack.c.l.b16 %v1165
          %v1248 = vunpack.c.h.b16 %v1165
          %v1249 = vunpack.c.l.b16 %v1166
          %v1250 = vunpack.c.h.b16 %v1166
          %v1251 = vunpack.c.l.b16 %v1167
          %v1252 = vunpack.c.h.b16 %v1167
          %v1253 = vunpack.c.l.b16 %v1168
          %v1254 = vunpack.c.h.b16 %v1168
          %v1255 = vunpack.c.l.b16 %v1169
          %v1256 = vunpack.c.h.b16 %v1169
          %v1257 = vunpack.c.l.b16 %v1170
          %v1258 = vunpack.c.h.b16 %v1170
          %v1259 = vunpack.c.l.b16 %v1171
          %v1260 = vunpack.c.h.b16 %v1171
          %v1261 = vunpack.c.l.b16 %v1172
          %v1262 = vunpack.c.h.b16 %v1172
          %v1263 = vunpack.c.l.b16 %v1173
          %v1264 = vunpack.c.h.b16 %v1173
          %v1265 = vunpack.c.l.b16 %v1174
          %v1266 = vunpack.c.h.b16 %v1174
          %v1267 = vunpack.c.l.b16 %v1175
          %v1268 = vunpack.c.h.b16 %v1175
          %v1269 = vunpack.c.l.b16 %v1176
          %v1270 = vunpack.c.h.b16 %v1176
          %v1271 = vunpack.c.l.b16 %v1177
          %v1272 = vunpack.c.h.b16 %v1177
          %v1273 = vunpack.c.l.b16 %v1178
          %v1274 = vunpack.c.h.b16 %v1178
          %v1275 = vunpack.c.l.b16 %v1179
          %v1276 = vunpack.c.h.b16 %v1179
          %v1277 = vunpack.c.l.b16 %v1180
          %v1278 = vunpack.c.h.b16 %v1180
          %v1279 = vunpack.c.l.b16 %v1181
          %v1280 = vunpack.c.h.b16 %v1181
          %v1281 = vunpack.c.l.b16 %v1182
          %v1282 = vunpack.c.h.b16 %v1182
          %v1283 = vunpack.c.l.b16 %v1183
          %v1284 = vunpack.c.h.b16 %v1183
          %v1285 = vunpack.c.l.b16 %v1184
          %v1286 = vunpack.c.h.b16 %v1184
          %v1287 = vunpack.c.l.b16 %v1185
          %v1288 = vunpack.c.h.b16 %v1185
          %v1289 = vunpack.c.l.b16 %v1186
          %v1290 = vunpack.c.h.b16 %v1186
          %v1291 = vunpack.c.l.b16 %v1187
          %v1292 = vunpack.c.h.b16 %v1187
          %v1293 = vunpack.c.l.b16 %v1188
          %v1294 = vunpack.c.h.b16 %v1188
          %v1295 = vunpack.c.l.b16 %v1189
          %v1296 = vunpack.c.h.b16 %v1189
          %v1297 = vunpack.c.l.b16 %v1190
          %v1298 = vunpack.c.h.b16 %v1190
          %v1299 = vpack.c.b16 %v1237, %v1235
          %v1300 = vpack.c.b16 %v1238, %v1236
          %v1301 = vpack.c.b16 %v1241, %v1239
          %v1302 = vpack.c.b16 %v1242, %v1240
          %v1303 = vpack.c.b16 %v1245, %v1243
          %v1304 = vpack.c.b16 %v1246, %v1244
          %v1305 = vpack.c.b16 %v1249, %v1247
          %v1306 = vpack.c.b16 %v1250, %v1248
          %v1307 = vpack.c.b16 %v1253, %v1251
          %v1308 = vpack.c.b16 %v1254, %v1252
          %v1309 = vpack.c.b16 %v1257, %v1255
          %v1310 = vpack.c.b16 %v1258, %v1256
          %v1311 = vpack.c.b16 %v1261, %v1259
          %v1312 = vpack.c.b16 %v1262, %v1260
          %v1313 = vpack.c.b16 %v1265, %v1263
          %v1314 = vpack.c.b16 %v1266, %v1264
          %v1315 = vpack.c.b16 %v1269, %v1267
          %v1316 = vpack.c.b16 %v1270, %v1268
          %v1317 = vpack.c.b16 %v1273, %v1271
          %v1318 = vpack.c.b16 %v1274, %v1272
          %v1319 = vpack.c.b16 %v1277, %v1275
          %v1320 = vpack.c.b16 %v1278, %v1276
          %v1321 = vpack.c.b16 %v1281, %v1279
          %v1322 = vpack.c.b16 %v1282, %v1280
          %v1323 = vpack.c.b16 %v1285, %v1283
          %v1324 = vpack.c.b16 %v1286, %v1284
          %v1325 = vpack.c.b16 %v1289, %v1287
          %v1326 = vpack.c.b16 %v1290, %v1288
          %v1327 = vpack.c.b16 %v1293, %v1291
          %v1328 = vpack.c.b16 %v1294, %v1292
          %v1329 = vpack.c.b16 %v1297, %v1295
          %v1330 = vpack.c.b16 %v1298, %v1296
          %1363 = vmatprep.subr.bf16.mxu0 %v1300
          %1364 = vmatpush1.bf16.msra.mxu0 %v1299
          %1365 = vmatprep.subr.bf16.mxu0 %v1302
          %1366 = vmatpush1.bf16.msra.mxu0 %v1301
          %1367 = vmatprep.subr.bf16.mxu0 %v1304
          %1368 = vmatpush1.bf16.msra.mxu0 %v1303
          %1369 = vmatprep.subr.bf16.mxu0 %v1306
          %1370 = vmatpush1.bf16.msra.mxu0 %v1305
          %1371 = vmatprep.subr.bf16.mxu0 %v1308
          %1372 = vmatpush1.bf16.msra.mxu0 %v1307
          %1373 = vmatprep.subr.bf16.mxu0 %v1310
          %1374 = vmatpush1.bf16.msra.mxu0 %v1309
          %1375 = vmatprep.subr.bf16.mxu0 %v1312
          %1376 = vmatpush1.bf16.msra.mxu0 %v1311
          %1377 = vmatprep.subr.bf16.mxu0 %v1314
          %1378 = vmatpush1.bf16.msra.mxu0 %v1313
          %1379 = vmatprep.subr.bf16.mxu0 %v1316
          %1380 = vmatpush1.bf16.msra.mxu0 %v1315
          %1381 = vmatprep.subr.bf16.mxu0 %v1318
          %1382 = vmatpush1.bf16.msra.mxu0 %v1317
          %1383 = vmatprep.subr.bf16.mxu0 %v1320
          %1384 = vmatpush1.bf16.msra.mxu0 %v1319
          %1385 = vmatprep.subr.bf16.mxu0 %v1322
          %1386 = vmatpush1.bf16.msra.mxu0 %v1321
          %1387 = vmatprep.subr.bf16.mxu0 %v1324
          %1388 = vmatpush1.bf16.msra.mxu0 %v1323
          %1389 = vmatprep.subr.bf16.mxu0 %v1326
          %1390 = vmatpush1.bf16.msra.mxu0 %v1325
          %1391 = vmatprep.subr.bf16.mxu0 %v1328
          %1392 = vmatpush1.bf16.msra.mxu0 %v1327
          %1393 = vmatprep.subr.bf16.mxu0 %v1330
          %1394 = vmatpush1.bf16.msra.mxu0 %v1329
          %1395 = vmatprep.mubr.bf16.mxu0 %v1158
          %1396 = vmatmul.mubr.bf16.gmra.mrb[0].mxu0 %v1157
          %v1397 = vpop.f32.mrb[0].mxu0
          %v1398 = vadd.f32 %v1196, %v1397
          %v1399 = vpop.f32.mrb[0].mxu0
          %v1400 = vadd.f32 %v1200, %v1399
          %v1401 = vpop.f32.mrb[0].mxu0
          %v1402 = vpop.f32.mrb[0].mxu0
          %1403 = vdwg.mxu0
          %v1404 = vld [vmem:[%s7] sm:$0x3]
          %v1405 = vld [vmem:[%s8] sm:$0x3]
          %v1406 = vmul.f32 %v1398, 0.5
          %v1407 = vmul.f32 %v1400, 0.5
          %v1408 = vmul.f32 %v1398, 0.044715
          %v1409 = vmul.f32 %v1400, 0.044715
          %v1410 = vmul.f32 %v1408, %v1398
          %v1411 = vmul.f32 %v1409, %v1400
          %v1412 = vmul.f32 %v1410, %v1398
          %v1413 = vmul.f32 %v1411, %v1400
          %v1414 = vadd.f32 %v1398, %v1412
          %v1415 = vadd.f32 %v1400, %v1413
          %v1416 = vmul.f32 %v1414, 0.7978846
          %v1417 = vmul.f32 %v1415, 0.7978846
          %v1418 = vtanh.pop %v1416
          %v1419 = vtanh.pop %v1417
          %v1420 = vadd.f32 %v1418, 1.0
          %v1421 = vadd.f32 %v1419, 1.0
          %v1422 = vmul.f32 %v1406, %v1420
          %v1423 = vmul.f32 %v1407, %v1421
          %v1424 = vadd.f32 %v1422, %v1423
          %1425 = vadd.xlane.f32.xlu0 %v1424
          %v1426 = vpop.xlane.xlu0 %1425
          %v1427 = vrcp.pop 256.0
          %v1428 = vmul.f32 %v1426, %v1427
          %v1429 = vsub.f32 %v1422, %v1428
          %v1430 = vsub.f32 %v1423, %v1428
          %v1431 = vmul.f32 %v1429, %v1429
          %v1432 = vmul.f32 %v1430, %v1430
          %v1433 = vadd.f32 %v1431, %v1432
          %1434 = vadd.xlane.f32.xlu0 %v1433
          %v1435 = vpop.xlane.xlu0 %1434
          %v1436 = vmul.f32 %v1435, %v1427
          %v1437 = vadd.f32 %v1436, 1e-05
          %v1438 = vrsqrt.pop %v1437
          %v1439 = vmul.f32 %v1429, %v1438
          %v1440 = vmul.f32 %v1430, %v1438
          %v1442 = vlaneseq
          %v1443 = vshrl.u32 %v1442, 7
          %v1444 = vsub.s32 0, %v1443
          %v1445 = vrot.slane %v1404, %v1444
          %v1446 = vlaneseq
          %v1447 = vshrl.u32 %v1446, 7
          %v1448 = vsub.s32 1, %v1447
          %v1449 = vrot.slane %v1404, %v1448
          %v1452 = vmul.f32 %v1439, %v1445
          %v1453 = vmul.f32 %v1440, %v1449
          %v1455 = vlaneseq
          %v1456 = vshrl.u32 %v1455, 7
          %v1457 = vsub.s32 0, %v1456
          %v1458 = vrot.slane %v1405, %v1457
          %v1459 = vlaneseq
          %v1460 = vshrl.u32 %v1459, 7
          %v1461 = vsub.s32 1, %v1460
          %v1462 = vrot.slane %v1405, %v1461
          %v1465 = vadd.f32 %v1452, %v1458
          %v1466 = vadd.f32 %v1453, %v1462
          %1467 = vst [vmem:[%s507] sm:$0xff] %v1465
          %1468 = vst [vmem:[%s507 + $0x8] sm:$0xff] %v1466
          %v1469 = vpack.c.bf16 %v1465, %v1465
          %v1470 = vpack.c.bf16 %v1466, %v1466
          %v1473 = vunpack.c.l.b16 %v1469
          %v1474 = vunpack.c.l.b16 %v1470
          %v1475 = vpack.c.b16 %v1474, %v1473
          %1477 = vst [vmem:[#allocation2] sm:$0xff] %v1475
        $region68: #{seq2seq_lm_forward.3} parent=63 // pred_fallthru
          _
        %v1478 = vld [vmem:[#allocation2] sm:$0xff]
        %v1479 = vld [vmem:[%s539] sm:$0xff]
        %v1480 = vld [vmem:[%s539 + $0x8] sm:$0xff]
        %v1481 = vld [vmem:[%s539 + $0x10] sm:$0xff]
        %v1482 = vld [vmem:[%s539 + $0x18] sm:$0xff]
        %v1483 = vld [vmem:[%s539 + $0x20] sm:$0xff]
        %v1484 = vld [vmem:[%s539 + $0x28] sm:$0xff]
        %v1485 = vld [vmem:[%s539 + $0x30] sm:$0xff]
        %v1486 = vld [vmem:[%s539 + $0x38] sm:$0xff]
        %v1487 = vld [vmem:[%s539 + $0x40] sm:$0xff]
        %v1488 = vld [vmem:[%s539 + $0x48] sm:$0xff]
        %v1489 = vld [vmem:[%s539 + $0x50] sm:$0xff]
        %v1490 = vld [vmem:[%s539 + $0x58] sm:$0xff]
        %v1491 = vld [vmem:[%s539 + $0x60] sm:$0xff]
        %v1492 = vld [vmem:[%s539 + $0x68] sm:$0xff]
        %v1493 = vld [vmem:[%s539 + $0x70] sm:$0xff]
        %v1494 = vld [vmem:[%s539 + $0x78] sm:$0xff]
        %v1495 = vld [vmem:[%s539 + $0x80] sm:$0xff]
        %v1496 = vld [vmem:[%s539 + $0x88] sm:$0xff]
        %v1497 = vld [vmem:[%s539 + $0x90] sm:$0xff]
        %v1498 = vld [vmem:[%s539 + $0x98] sm:$0xff]
        %v1499 = vld [vmem:[%s539 + $0xa0] sm:$0xff]
        %v1500 = vld [vmem:[%s539 + $0xa8] sm:$0xff]
        %v1501 = vld [vmem:[%s539 + $0xb0] sm:$0xff]
        %v1502 = vld [vmem:[%s539 + $0xb8] sm:$0xff]
        %v1503 = vld [vmem:[%s539 + $0xc0] sm:$0xff]
        %v1504 = vld [vmem:[%s539 + $0xc8] sm:$0xff]
        %v1505 = vld [vmem:[%s539 + $0xd0] sm:$0xff]
        %v1506 = vld [vmem:[%s539 + $0xd8] sm:$0xff]
        %v1507 = vld [vmem:[%s539 + $0xe0] sm:$0xff]
        %v1508 = vld [vmem:[%s539 + $0xe8] sm:$0xff]
        %v1509 = vld [vmem:[%s539 + $0xf0] sm:$0xff]
        %v1510 = vld [vmem:[%s539 + $0xf8] sm:$0xff]
        %v1511 = vld [vmem:[%s539 + $0x100] sm:$0xff]
        %v1512 = vld [vmem:[%s539 + $0x108] sm:$0xff]
        %v1513 = vld [vmem:[%s539 + $0x110] sm:$0xff]
        %v1514 = vld [vmem:[%s539 + $0x118] sm:$0xff]
        %v1515 = vld [vmem:[%s539 + $0x120] sm:$0xff]
        %v1516 = vld [vmem:[%s539 + $0x128] sm:$0xff]
        %v1517 = vld [vmem:[%s539 + $0x130] sm:$0xff]
        %v1518 = vld [vmem:[%s539 + $0x138] sm:$0xff]
        %v1519 = vld [vmem:[%s539 + $0x140] sm:$0xff]
        %v1520 = vld [vmem:[%s539 + $0x148] sm:$0xff]
        %v1521 = vld [vmem:[%s539 + $0x150] sm:$0xff]
        %v1522 = vld [vmem:[%s539 + $0x158] sm:$0xff]
        %v1523 = vld [vmem:[%s539 + $0x160] sm:$0xff]
        %v1524 = vld [vmem:[%s539 + $0x168] sm:$0xff]
        %v1525 = vld [vmem:[%s539 + $0x170] sm:$0xff]
        %v1526 = vld [vmem:[%s539 + $0x178] sm:$0xff]
        %v1527 = vld [vmem:[%s539 + $0x180] sm:$0xff]
        %v1528 = vld [vmem:[%s539 + $0x188] sm:$0xff]
        %v1529 = vld [vmem:[%s539 + $0x190] sm:$0xff]
        %v1530 = vld [vmem:[%s539 + $0x198] sm:$0xff]
        %v1531 = vld [vmem:[%s539 + $0x1a0] sm:$0xff]
        %v1532 = vld [vmem:[%s539 + $0x1a8] sm:$0xff]
        %v1533 = vld [vmem:[%s539 + $0x1b0] sm:$0xff]
        %v1534 = vld [vmem:[%s539 + $0x1b8] sm:$0xff]
        %v1535 = vld [vmem:[%s539 + $0x1c0] sm:$0xff]
        %v1536 = vld [vmem:[%s539 + $0x1c8] sm:$0xff]
        %v1537 = vld [vmem:[%s539 + $0x1d0] sm:$0xff]
        %v1538 = vld [vmem:[%s539 + $0x1d8] sm:$0xff]
        %v1539 = vld [vmem:[%s539 + $0x1e0] sm:$0xff]
        %v1540 = vld [vmem:[%s539 + $0x1e8] sm:$0xff]
        %v1541 = vld [vmem:[%s539 + $0x1f0] sm:$0xff]
        %v1542 = vld [vmem:[%s539 + $0x1f8] sm:$0xff]
        %v1543 = vld [vmem:[%s539 + $0x200] sm:$0xff]
        %v1544 = vld [vmem:[%s539 + $0x208] sm:$0xff]
        %v1545 = vld [vmem:[%s539 + $0x210] sm:$0xff]
        %v1546 = vld [vmem:[%s539 + $0x218] sm:$0xff]
        %v1547 = vld [vmem:[%s539 + $0x220] sm:$0xff]
        %v1548 = vld [vmem:[%s539 + $0x228] sm:$0xff]
        %v1549 = vld [vmem:[%s539 + $0x230] sm:$0xff]
        %v1550 = vld [vmem:[%s539 + $0x238] sm:$0xff]
        %v1551 = vld [vmem:[%s539 + $0x240] sm:$0xff]
        %v1552 = vld [vmem:[%s539 + $0x248] sm:$0xff]
        %v1553 = vld [vmem:[%s539 + $0x250] sm:$0xff]
        %v1554 = vld [vmem:[%s539 + $0x258] sm:$0xff]
        %v1555 = vld [vmem:[%s539 + $0x260] sm:$0xff]
        %v1556 = vld [vmem:[%s539 + $0x268] sm:$0xff]
        %v1557 = vld [vmem:[%s539 + $0x270] sm:$0xff]
        %v1558 = vld [vmem:[%s539 + $0x278] sm:$0xff]
        %v1559 = vld [vmem:[%s539 + $0x280] sm:$0xff]
        %v1560 = vld [vmem:[%s539 + $0x288] sm:$0xff]
        %v1561 = vld [vmem:[%s539 + $0x290] sm:$0xff]
        %v1562 = vld [vmem:[%s539 + $0x298] sm:$0xff]
        %v1563 = vld [vmem:[%s539 + $0x2a0] sm:$0xff]
        %v1564 = vld [vmem:[%s539 + $0x2a8] sm:$0xff]
        %v1565 = vld [vmem:[%s539 + $0x2b0] sm:$0xff]
        %v1566 = vld [vmem:[%s539 + $0x2b8] sm:$0xff]
        %v1567 = vld [vmem:[%s539 + $0x2c0] sm:$0xff]
        %v1568 = vld [vmem:[%s539 + $0x2c8] sm:$0xff]
        %v1569 = vld [vmem:[%s539 + $0x2d0] sm:$0xff]
        %v1570 = vld [vmem:[%s539 + $0x2d8] sm:$0xff]
        %v1571 = vld [vmem:[%s539 + $0x2e0] sm:$0xff]
        %v1572 = vld [vmem:[%s539 + $0x2e8] sm:$0xff]
        %v1573 = vld [vmem:[%s539 + $0x2f0] sm:$0xff]
        %v1574 = vld [vmem:[%s539 + $0x2f8] sm:$0xff]
        %v1575 = vld [vmem:[%s539 + $0x300] sm:$0xff]
        %v1576 = vld [vmem:[%s539 + $0x308] sm:$0xff]
        %v1577 = vld [vmem:[%s539 + $0x310] sm:$0xff]
        %v1578 = vld [vmem:[%s539 + $0x318] sm:$0xff]
        %v1579 = vld [vmem:[%s539 + $0x320] sm:$0xff]
        %v1580 = vld [vmem:[%s539 + $0x328] sm:$0xff]
        %v1581 = vld [vmem:[%s539 + $0x330] sm:$0xff]
        %v1582 = vld [vmem:[%s539 + $0x338] sm:$0xff]
        %v1583 = vld [vmem:[%s539 + $0x340] sm:$0xff]
        %v1584 = vld [vmem:[%s539 + $0x348] sm:$0xff]
        %v1585 = vld [vmem:[%s539 + $0x350] sm:$0xff]
        %v1586 = vld [vmem:[%s539 + $0x358] sm:$0xff]
        %v1587 = vld [vmem:[%s539 + $0x360] sm:$0xff]
        %v1588 = vld [vmem:[%s539 + $0x368] sm:$0xff]
        %v1589 = vld [vmem:[%s539 + $0x370] sm:$0xff]
        %v1590 = vld [vmem:[%s539 + $0x378] sm:$0xff]
        %v1591 = vld [vmem:[%s539 + $0x380] sm:$0xff]
        %v1592 = vld [vmem:[%s539 + $0x388] sm:$0xff]
        %v1593 = vld [vmem:[%s539 + $0x390] sm:$0xff]
        %v1594 = vld [vmem:[%s539 + $0x398] sm:$0xff]
        %v1595 = vld [vmem:[%s539 + $0x3a0] sm:$0xff]
        %v1596 = vld [vmem:[%s539 + $0x3a8] sm:$0xff]
        %v1597 = vld [vmem:[%s539 + $0x3b0] sm:$0xff]
        %v1598 = vld [vmem:[%s539 + $0x3b8] sm:$0xff]
        %v1599 = vld [vmem:[%s539 + $0x3c0] sm:$0xff]
        %v1600 = vld [vmem:[%s539 + $0x3c8] sm:$0xff]
        %v1601 = vld [vmem:[%s539 + $0x3d0] sm:$0xff]
        %v1602 = vld [vmem:[%s539 + $0x3d8] sm:$0xff]
        %v1603 = vld [vmem:[%s539 + $0x3e0] sm:$0xff]
        %v1604 = vld [vmem:[%s539 + $0x3e8] sm:$0xff]
        %v1605 = vld [vmem:[%s539 + $0x3f0] sm:$0xff]
        %v1606 = vld [vmem:[%s539 + $0x3f8] sm:$0xff]
        %v1607 = vld [vmem:[%s544] sm:$0xff]
        %v1609 = vlaneseq
        %v1610 = vshrl.u32 %v1609, 7
        %v1611 = vsub.s32 0, %v1610
        %v1612 = vrot.slane %v1607, %v1611
        %v1613 = vlaneseq
        %v1614 = vshrl.u32 %v1613, 7
        %v1615 = vsub.s32 1, %v1614
        %v1616 = vrot.slane %v1607, %v1615
        %v1617 = vlaneseq
        %v1618 = vshrl.u32 %v1617, 7
        %v1619 = vsub.s32 2, %v1618
        %v1620 = vrot.slane %v1607, %v1619
        %v1621 = vlaneseq
        %v1622 = vshrl.u32 %v1621, 7
        %v1623 = vsub.s32 3, %v1622
        %v1624 = vrot.slane %v1607, %v1623
        %v1625 = vlaneseq
        %v1626 = vshrl.u32 %v1625, 7
        %v1627 = vsub.s32 4, %v1626
        %v1628 = vrot.slane %v1607, %v1627
        %v1629 = vlaneseq
        %v1630 = vshrl.u32 %v1629, 7
        %v1631 = vsub.s32 5, %v1630
        %v1632 = vrot.slane %v1607, %v1631
        %v1633 = vlaneseq
        %v1634 = vshrl.u32 %v1633, 7
        %v1635 = vsub.s32 6, %v1634
        %v1636 = vrot.slane %v1607, %v1635
        %v1637 = vlaneseq
        %v1638 = vshrl.u32 %v1637, 7
        %v1639 = vsub.s32 7, %v1638
        %v1640 = vrot.slane %v1607, %v1639
        %v1650 = vunpack.c.l.b16 %v1478
        %v1651 = vunpack.c.h.b16 %v1478
        %v1652 = vpack.c.b16 %v1650, %v1650
        %v1653 = vpack.c.b16 %v1651, %v1651
        %v1784 = vunpack.c.l.b16 %v1479
        %v1785 = vunpack.c.h.b16 %v1479
        %v1786 = vunpack.c.l.b16 %v1480
        %v1787 = vunpack.c.h.b16 %v1480
        %v1788 = vunpack.c.l.b16 %v1481
        %v1789 = vunpack.c.h.b16 %v1481
        %v1790 = vunpack.c.l.b16 %v1482
        %v1791 = vunpack.c.h.b16 %v1482
        %v1792 = vunpack.c.l.b16 %v1483
        %v1793 = vunpack.c.h.b16 %v1483
        %v1794 = vunpack.c.l.b16 %v1484
        %v1795 = vunpack.c.h.b16 %v1484
        %v1796 = vunpack.c.l.b16 %v1485
        %v1797 = vunpack.c.h.b16 %v1485
        %v1798 = vunpack.c.l.b16 %v1486
        %v1799 = vunpack.c.h.b16 %v1486
        %v1800 = vunpack.c.l.b16 %v1487
        %v1801 = vunpack.c.h.b16 %v1487
        %v1802 = vunpack.c.l.b16 %v1488
        %v1803 = vunpack.c.h.b16 %v1488
        %v1804 = vunpack.c.l.b16 %v1489
        %v1805 = vunpack.c.h.b16 %v1489
        %v1806 = vunpack.c.l.b16 %v1490
        %v1807 = vunpack.c.h.b16 %v1490
        %v1808 = vunpack.c.l.b16 %v1491
        %v1809 = vunpack.c.h.b16 %v1491
        %v1810 = vunpack.c.l.b16 %v1492
        %v1811 = vunpack.c.h.b16 %v1492
        %v1812 = vunpack.c.l.b16 %v1493
        %v1813 = vunpack.c.h.b16 %v1493
        %v1814 = vunpack.c.l.b16 %v1494
        %v1815 = vunpack.c.h.b16 %v1494
        %v1816 = vunpack.c.l.b16 %v1495
        %v1817 = vunpack.c.h.b16 %v1495
        %v1818 = vunpack.c.l.b16 %v1496
        %v1819 = vunpack.c.h.b16 %v1496
        %v1820 = vunpack.c.l.b16 %v1497
        %v1821 = vunpack.c.h.b16 %v1497
        %v1822 = vunpack.c.l.b16 %v1498
        %v1823 = vunpack.c.h.b16 %v1498
        %v1824 = vunpack.c.l.b16 %v1499
        %v1825 = vunpack.c.h.b16 %v1499
        %v1826 = vunpack.c.l.b16 %v1500
        %v1827 = vunpack.c.h.b16 %v1500
        %v1828 = vunpack.c.l.b16 %v1501
        %v1829 = vunpack.c.h.b16 %v1501
        %v1830 = vunpack.c.l.b16 %v1502
        %v1831 = vunpack.c.h.b16 %v1502
        %v1832 = vunpack.c.l.b16 %v1503
        %v1833 = vunpack.c.h.b16 %v1503
        %v1834 = vunpack.c.l.b16 %v1504
        %v1835 = vunpack.c.h.b16 %v1504
        %v1836 = vunpack.c.l.b16 %v1505
        %v1837 = vunpack.c.h.b16 %v1505
        %v1838 = vunpack.c.l.b16 %v1506
        %v1839 = vunpack.c.h.b16 %v1506
        %v1840 = vunpack.c.l.b16 %v1507
        %v1841 = vunpack.c.h.b16 %v1507
        %v1842 = vunpack.c.l.b16 %v1508
        %v1843 = vunpack.c.h.b16 %v1508
        %v1844 = vunpack.c.l.b16 %v1509
        %v1845 = vunpack.c.h.b16 %v1509
        %v1846 = vunpack.c.l.b16 %v1510
        %v1847 = vunpack.c.h.b16 %v1510
        %v1848 = vunpack.c.l.b16 %v1511
        %v1849 = vunpack.c.h.b16 %v1511
        %v1850 = vunpack.c.l.b16 %v1512
        %v1851 = vunpack.c.h.b16 %v1512
        %v1852 = vunpack.c.l.b16 %v1513
        %v1853 = vunpack.c.h.b16 %v1513
        %v1854 = vunpack.c.l.b16 %v1514
        %v1855 = vunpack.c.h.b16 %v1514
        %v1856 = vunpack.c.l.b16 %v1515
        %v1857 = vunpack.c.h.b16 %v1515
        %v1858 = vunpack.c.l.b16 %v1516
        %v1859 = vunpack.c.h.b16 %v1516
        %v1860 = vunpack.c.l.b16 %v1517
        %v1861 = vunpack.c.h.b16 %v1517
        %v1862 = vunpack.c.l.b16 %v1518
        %v1863 = vunpack.c.h.b16 %v1518
        %v1864 = vunpack.c.l.b16 %v1519
        %v1865 = vunpack.c.h.b16 %v1519
        %v1866 = vunpack.c.l.b16 %v1520
        %v1867 = vunpack.c.h.b16 %v1520
        %v1868 = vunpack.c.l.b16 %v1521
        %v1869 = vunpack.c.h.b16 %v1521
        %v1870 = vunpack.c.l.b16 %v1522
        %v1871 = vunpack.c.h.b16 %v1522
        %v1872 = vunpack.c.l.b16 %v1523
        %v1873 = vunpack.c.h.b16 %v1523
        %v1874 = vunpack.c.l.b16 %v1524
        %v1875 = vunpack.c.h.b16 %v1524
        %v1876 = vunpack.c.l.b16 %v1525
        %v1877 = vunpack.c.h.b16 %v1525
        %v1878 = vunpack.c.l.b16 %v1526
        %v1879 = vunpack.c.h.b16 %v1526
        %v1880 = vunpack.c.l.b16 %v1527
        %v1881 = vunpack.c.h.b16 %v1527
        %v1882 = vunpack.c.l.b16 %v1528
        %v1883 = vunpack.c.h.b16 %v1528
        %v1884 = vunpack.c.l.b16 %v1529
        %v1885 = vunpack.c.h.b16 %v1529
        %v1886 = vunpack.c.l.b16 %v1530
        %v1887 = vunpack.c.h.b16 %v1530
        %v1888 = vunpack.c.l.b16 %v1531
        %v1889 = vunpack.c.h.b16 %v1531
        %v1890 = vunpack.c.l.b16 %v1532
        %v1891 = vunpack.c.h.b16 %v1532
        %v1892 = vunpack.c.l.b16 %v1533
        %v1893 = vunpack.c.h.b16 %v1533
        %v1894 = vunpack.c.l.b16 %v1534
        %v1895 = vunpack.c.h.b16 %v1534
        %v1896 = vunpack.c.l.b16 %v1535
        %v1897 = vunpack.c.h.b16 %v1535
        %v1898 = vunpack.c.l.b16 %v1536
        %v1899 = vunpack.c.h.b16 %v1536
        %v1900 = vunpack.c.l.b16 %v1537
        %v1901 = vunpack.c.h.b16 %v1537
        %v1902 = vunpack.c.l.b16 %v1538
        %v1903 = vunpack.c.h.b16 %v1538
        %v1904 = vunpack.c.l.b16 %v1539
        %v1905 = vunpack.c.h.b16 %v1539
        %v1906 = vunpack.c.l.b16 %v1540
        %v1907 = vunpack.c.h.b16 %v1540
        %v1908 = vunpack.c.l.b16 %v1541
        %v1909 = vunpack.c.h.b16 %v1541
        %v1910 = vunpack.c.l.b16 %v1542
        %v1911 = vunpack.c.h.b16 %v1542
        %v1912 = vunpack.c.l.b16 %v1543
        %v1913 = vunpack.c.h.b16 %v1543
        %v1914 = vunpack.c.l.b16 %v1544
        %v1915 = vunpack.c.h.b16 %v1544
        %v1916 = vunpack.c.l.b16 %v1545
        %v1917 = vunpack.c.h.b16 %v1545
        %v1918 = vunpack.c.l.b16 %v1546
        %v1919 = vunpack.c.h.b16 %v1546
        %v1920 = vunpack.c.l.b16 %v1547
        %v1921 = vunpack.c.h.b16 %v1547
        %v1922 = vunpack.c.l.b16 %v1548
        %v1923 = vunpack.c.h.b16 %v1548
        %v1924 = vunpack.c.l.b16 %v1549
        %v1925 = vunpack.c.h.b16 %v1549
        %v1926 = vunpack.c.l.b16 %v1550
        %v1927 = vunpack.c.h.b16 %v1550
        %v1928 = vunpack.c.l.b16 %v1551
        %v1929 = vunpack.c.h.b16 %v1551
        %v1930 = vunpack.c.l.b16 %v1552
        %v1931 = vunpack.c.h.b16 %v1552
        %v1932 = vunpack.c.l.b16 %v1553
        %v1933 = vunpack.c.h.b16 %v1553
        %v1934 = vunpack.c.l.b16 %v1554
        %v1935 = vunpack.c.h.b16 %v1554
        %v1936 = vunpack.c.l.b16 %v1555
        %v1937 = vunpack.c.h.b16 %v1555
        %v1938 = vunpack.c.l.b16 %v1556
        %v1939 = vunpack.c.h.b16 %v1556
        %v1940 = vunpack.c.l.b16 %v1557
        %v1941 = vunpack.c.h.b16 %v1557
        %v1942 = vunpack.c.l.b16 %v1558
        %v1943 = vunpack.c.h.b16 %v1558
        %v1944 = vunpack.c.l.b16 %v1559
        %v1945 = vunpack.c.h.b16 %v1559
        %v1946 = vunpack.c.l.b16 %v1560
        %v1947 = vunpack.c.h.b16 %v1560
        %v1948 = vunpack.c.l.b16 %v1561
        %v1949 = vunpack.c.h.b16 %v1561
        %v1950 = vunpack.c.l.b16 %v1562
        %v1951 = vunpack.c.h.b16 %v1562
        %v1952 = vunpack.c.l.b16 %v1563
        %v1953 = vunpack.c.h.b16 %v1563
        %v1954 = vunpack.c.l.b16 %v1564
        %v1955 = vunpack.c.h.b16 %v1564
        %v1956 = vunpack.c.l.b16 %v1565
        %v1957 = vunpack.c.h.b16 %v1565
        %v1958 = vunpack.c.l.b16 %v1566
        %v1959 = vunpack.c.h.b16 %v1566
        %v1960 = vunpack.c.l.b16 %v1567
        %v1961 = vunpack.c.h.b16 %v1567
        %v1962 = vunpack.c.l.b16 %v1568
        %v1963 = vunpack.c.h.b16 %v1568
        %v1964 = vunpack.c.l.b16 %v1569
        %v1965 = vunpack.c.h.b16 %v1569
        %v1966 = vunpack.c.l.b16 %v1570
        %v1967 = vunpack.c.h.b16 %v1570
        %v1968 = vunpack.c.l.b16 %v1571
        %v1969 = vunpack.c.h.b16 %v1571
        %v1970 = vunpack.c.l.b16 %v1572
        %v1971 = vunpack.c.h.b16 %v1572
        %v1972 = vunpack.c.l.b16 %v1573
        %v1973 = vunpack.c.h.b16 %v1573
        %v1974 = vunpack.c.l.b16 %v1574
        %v1975 = vunpack.c.h.b16 %v1574
        %v1976 = vunpack.c.l.b16 %v1575
        %v1977 = vunpack.c.h.b16 %v1575
        %v1978 = vunpack.c.l.b16 %v1576
        %v1979 = vunpack.c.h.b16 %v1576
        %v1980 = vunpack.c.l.b16 %v1577
        %v1981 = vunpack.c.h.b16 %v1577
        %v1982 = vunpack.c.l.b16 %v1578
        %v1983 = vunpack.c.h.b16 %v1578
        %v1984 = vunpack.c.l.b16 %v1579
        %v1985 = vunpack.c.h.b16 %v1579
        %v1986 = vunpack.c.l.b16 %v1580
        %v1987 = vunpack.c.h.b16 %v1580
        %v1988 = vunpack.c.l.b16 %v1581
        %v1989 = vunpack.c.h.b16 %v1581
        %v1990 = vunpack.c.l.b16 %v1582
        %v1991 = vunpack.c.h.b16 %v1582
        %v1992 = vunpack.c.l.b16 %v1583
        %v1993 = vunpack.c.h.b16 %v1583
        %v1994 = vunpack.c.l.b16 %v1584
        %v1995 = vunpack.c.h.b16 %v1584
        %v1996 = vunpack.c.l.b16 %v1585
        %v1997 = vunpack.c.h.b16 %v1585
        %v1998 = vunpack.c.l.b16 %v1586
        %v1999 = vunpack.c.h.b16 %v1586
        %v2000 = vunpack.c.l.b16 %v1587
        %v2001 = vunpack.c.h.b16 %v1587
        %v2002 = vunpack.c.l.b16 %v1588
        %v2003 = vunpack.c.h.b16 %v1588
        %v2004 = vunpack.c.l.b16 %v1589
        %v2005 = vunpack.c.h.b16 %v1589
        %v2006 = vunpack.c.l.b16 %v1590
        %v2007 = vunpack.c.h.b16 %v1590
        %v2008 = vunpack.c.l.b16 %v1591
        %v2009 = vunpack.c.h.b16 %v1591
        %v2010 = vunpack.c.l.b16 %v1592
        %v2011 = vunpack.c.h.b16 %v1592
        %v2012 = vunpack.c.l.b16 %v1593
        %v2013 = vunpack.c.h.b16 %v1593
        %v2014 = vunpack.c.l.b16 %v1594
        %v2015 = vunpack.c.h.b16 %v1594
        %v2016 = vunpack.c.l.b16 %v1595
        %v2017 = vunpack.c.h.b16 %v1595
        %v2018 = vunpack.c.l.b16 %v1596
        %v2019 = vunpack.c.h.b16 %v1596
        %v2020 = vunpack.c.l.b16 %v1597
        %v2021 = vunpack.c.h.b16 %v1597
        %v2022 = vunpack.c.l.b16 %v1598
        %v2023 = vunpack.c.h.b16 %v1598
        %v2024 = vunpack.c.l.b16 %v1599
        %v2025 = vunpack.c.h.b16 %v1599
        %v2026 = vunpack.c.l.b16 %v1600
        %v2027 = vunpack.c.h.b16 %v1600
        %v2028 = vunpack.c.l.b16 %v1601
        %v2029 = vunpack.c.h.b16 %v1601
        %v2030 = vunpack.c.l.b16 %v1602
        %v2031 = vunpack.c.h.b16 %v1602
        %v2032 = vunpack.c.l.b16 %v1603
        %v2033 = vunpack.c.h.b16 %v1603
        %v2034 = vunpack.c.l.b16 %v1604
        %v2035 = vunpack.c.h.b16 %v1604
        %v2036 = vunpack.c.l.b16 %v1605
        %v2037 = vunpack.c.h.b16 %v1605
        %v2038 = vunpack.c.l.b16 %v1606
        %v2039 = vunpack.c.h.b16 %v1606
        %v2040 = vpack.c.b16 %v1786, %v1784
        %v2041 = vpack.c.b16 %v1787, %v1785
        %v2042 = vpack.c.b16 %v1790, %v1788
        %v2043 = vpack.c.b16 %v1791, %v1789
        %v2044 = vpack.c.b16 %v1794, %v1792
        %v2045 = vpack.c.b16 %v1795, %v1793
        %v2046 = vpack.c.b16 %v1798, %v1796
        %v2047 = vpack.c.b16 %v1799, %v1797
        %v2048 = vpack.c.b16 %v1802, %v1800
        %v2049 = vpack.c.b16 %v1803, %v1801
        %v2050 = vpack.c.b16 %v1806, %v1804
        %v2051 = vpack.c.b16 %v1807, %v1805
        %v2052 = vpack.c.b16 %v1810, %v1808
        %v2053 = vpack.c.b16 %v1811, %v1809
        %v2054 = vpack.c.b16 %v1814, %v1812
        %v2055 = vpack.c.b16 %v1815, %v1813
        %v2056 = vpack.c.b16 %v1818, %v1816
        %v2057 = vpack.c.b16 %v1819, %v1817
        %v2058 = vpack.c.b16 %v1822, %v1820
        %v2059 = vpack.c.b16 %v1823, %v1821
        %v2060 = vpack.c.b16 %v1826, %v1824
        %v2061 = vpack.c.b16 %v1827, %v1825
        %v2062 = vpack.c.b16 %v1830, %v1828
        %v2063 = vpack.c.b16 %v1831, %v1829
        %v2064 = vpack.c.b16 %v1834, %v1832
        %v2065 = vpack.c.b16 %v1835, %v1833
        %v2066 = vpack.c.b16 %v1838, %v1836
        %v2067 = vpack.c.b16 %v1839, %v1837
        %v2068 = vpack.c.b16 %v1842, %v1840
        %v2069 = vpack.c.b16 %v1843, %v1841
        %v2070 = vpack.c.b16 %v1846, %v1844
        %v2071 = vpack.c.b16 %v1847, %v1845
        %v2072 = vpack.c.b16 %v1850, %v1848
        %v2073 = vpack.c.b16 %v1851, %v1849
        %v2074 = vpack.c.b16 %v1854, %v1852
        %v2075 = vpack.c.b16 %v1855, %v1853
        %v2076 = vpack.c.b16 %v1858, %v1856
        %v2077 = vpack.c.b16 %v1859, %v1857
        %v2078 = vpack.c.b16 %v1862, %v1860
        %v2079 = vpack.c.b16 %v1863, %v1861
        %v2080 = vpack.c.b16 %v1866, %v1864
        %v2081 = vpack.c.b16 %v1867, %v1865
        %v2082 = vpack.c.b16 %v1870, %v1868
        %v2083 = vpack.c.b16 %v1871, %v1869
        %v2084 = vpack.c.b16 %v1874, %v1872
        %v2085 = vpack.c.b16 %v1875, %v1873
        %v2086 = vpack.c.b16 %v1878, %v1876
        %v2087 = vpack.c.b16 %v1879, %v1877
        %v2088 = vpack.c.b16 %v1882, %v1880
        %v2089 = vpack.c.b16 %v1883, %v1881
        %v2090 = vpack.c.b16 %v1886, %v1884
        %v2091 = vpack.c.b16 %v1887, %v1885
        %v2092 = vpack.c.b16 %v1890, %v1888
        %v2093 = vpack.c.b16 %v1891, %v1889
        %v2094 = vpack.c.b16 %v1894, %v1892
        %v2095 = vpack.c.b16 %v1895, %v1893
        %v2096 = vpack.c.b16 %v1898, %v1896
        %v2097 = vpack.c.b16 %v1899, %v1897
        %v2098 = vpack.c.b16 %v1902, %v1900
        %v2099 = vpack.c.b16 %v1903, %v1901
        %v2100 = vpack.c.b16 %v1906, %v1904
        %v2101 = vpack.c.b16 %v1907, %v1905
        %v2102 = vpack.c.b16 %v1910, %v1908
        %v2103 = vpack.c.b16 %v1911, %v1909
        %v2104 = vpack.c.b16 %v1914, %v1912
        %v2105 = vpack.c.b16 %v1915, %v1913
        %v2106 = vpack.c.b16 %v1918, %v1916
        %v2107 = vpack.c.b16 %v1919, %v1917
        %v2108 = vpack.c.b16 %v1922, %v1920
        %v2109 = vpack.c.b16 %v1923, %v1921
        %v2110 = vpack.c.b16 %v1926, %v1924
        %v2111 = vpack.c.b16 %v1927, %v1925
        %v2112 = vpack.c.b16 %v1930, %v1928
        %v2113 = vpack.c.b16 %v1931, %v1929
        %v2114 = vpack.c.b16 %v1934, %v1932
        %v2115 = vpack.c.b16 %v1935, %v1933
        %v2116 = vpack.c.b16 %v1938, %v1936
        %v2117 = vpack.c.b16 %v1939, %v1937
        %v2118 = vpack.c.b16 %v1942, %v1940
        %v2119 = vpack.c.b16 %v1943, %v1941
        %v2120 = vpack.c.b16 %v1946, %v1944
        %v2121 = vpack.c.b16 %v1947, %v1945
        %v2122 = vpack.c.b16 %v1950, %v1948
        %v2123 = vpack.c.b16 %v1951, %v1949
        %v2124 = vpack.c.b16 %v1954, %v1952
        %v2125 = vpack.c.b16 %v1955, %v1953
        %v2126 = vpack.c.b16 %v1958, %v1956
        %v2127 = vpack.c.b16 %v1959, %v1957
        %v2128 = vpack.c.b16 %v1962, %v1960
        %v2129 = vpack.c.b16 %v1963, %v1961
        %v2130 = vpack.c.b16 %v1966, %v1964
        %v2131 = vpack.c.b16 %v1967, %v1965
        %v2132 = vpack.c.b16 %v1970, %v1968
        %v2133 = vpack.c.b16 %v1971, %v1969
        %v2134 = vpack.c.b16 %v1974, %v1972
        %v2135 = vpack.c.b16 %v1975, %v1973
        %v2136 = vpack.c.b16 %v1978, %v1976
        %v2137 = vpack.c.b16 %v1979, %v1977
        %v2138 = vpack.c.b16 %v1982, %v1980
        %v2139 = vpack.c.b16 %v1983, %v1981
        %v2140 = vpack.c.b16 %v1986, %v1984
        %v2141 = vpack.c.b16 %v1987, %v1985
        %v2142 = vpack.c.b16 %v1990, %v1988
        %v2143 = vpack.c.b16 %v1991, %v1989
        %v2144 = vpack.c.b16 %v1994, %v1992
        %v2145 = vpack.c.b16 %v1995, %v1993
        %v2146 = vpack.c.b16 %v1998, %v1996
        %v2147 = vpack.c.b16 %v1999, %v1997
        %v2148 = vpack.c.b16 %v2002, %v2000
        %v2149 = vpack.c.b16 %v2003, %v2001
        %v2150 = vpack.c.b16 %v2006, %v2004
        %v2151 = vpack.c.b16 %v2007, %v2005
        %v2152 = vpack.c.b16 %v2010, %v2008
        %v2153 = vpack.c.b16 %v2011, %v2009
        %v2154 = vpack.c.b16 %v2014, %v2012
        %v2155 = vpack.c.b16 %v2015, %v2013
        %v2156 = vpack.c.b16 %v2018, %v2016
        %v2157 = vpack.c.b16 %v2019, %v2017
        %v2158 = vpack.c.b16 %v2022, %v2020
        %v2159 = vpack.c.b16 %v2023, %v2021
        %v2160 = vpack.c.b16 %v2026, %v2024
        %v2161 = vpack.c.b16 %v2027, %v2025
        %v2162 = vpack.c.b16 %v2030, %v2028
        %v2163 = vpack.c.b16 %v2031, %v2029
        %v2164 = vpack.c.b16 %v2034, %v2032
        %v2165 = vpack.c.b16 %v2035, %v2033
        %v2166 = vpack.c.b16 %v2038, %v2036
        %v2167 = vpack.c.b16 %v2039, %v2037
        %2296 = vmatprep.subr.bf16.mxu0 %v2041
        %2297 = vmatpush1.bf16.xpose.msra.mxu0 %v2040
        %2298 = vmatprep.subr.bf16.mxu0 %v2043
        %2299 = vmatpush1.bf16.xpose.msra.mxu0 %v2042
        %2300 = vmatprep.subr.bf16.mxu0 %v2045
        %2301 = vmatpush1.bf16.xpose.msra.mxu0 %v2044
        %2302 = vmatprep.subr.bf16.mxu0 %v2047
        %2303 = vmatpush1.bf16.xpose.msra.mxu0 %v2046
        %2304 = vmatprep.subr.bf16.mxu0 %v2049
        %2305 = vmatpush1.bf16.xpose.msra.mxu0 %v2048
        %2306 = vmatprep.subr.bf16.mxu0 %v2051
        %2307 = vmatpush1.bf16.xpose.msra.mxu0 %v2050
        %2308 = vmatprep.subr.bf16.mxu0 %v2053
        %2309 = vmatpush1.bf16.xpose.msra.mxu0 %v2052
        %2310 = vmatprep.subr.bf16.mxu0 %v2055
        %2311 = vmatpush1.bf16.xpose.msra.mxu0 %v2054
        %2312 = vmatprep.subr.bf16.mxu0 %v2057
        %2313 = vmatpush1.bf16.xpose.msra.mxu0 %v2056
        %2314 = vmatprep.subr.bf16.mxu0 %v2059
        %2315 = vmatpush1.bf16.xpose.msra.mxu0 %v2058
        %2316 = vmatprep.subr.bf16.mxu0 %v2061
        %2317 = vmatpush1.bf16.xpose.msra.mxu0 %v2060
        %2318 = vmatprep.subr.bf16.mxu0 %v2063
        %2319 = vmatpush1.bf16.xpose.msra.mxu0 %v2062
        %2320 = vmatprep.subr.bf16.mxu0 %v2065
        %2321 = vmatpush1.bf16.xpose.msra.mxu0 %v2064
        %2322 = vmatprep.subr.bf16.mxu0 %v2067
        %2323 = vmatpush1.bf16.xpose.msra.mxu0 %v2066
        %2324 = vmatprep.subr.bf16.mxu0 %v2069
        %2325 = vmatpush1.bf16.xpose.msra.mxu0 %v2068
        %2326 = vmatprep.subr.bf16.mxu0 %v2071
        %2327 = vmatpush1.bf16.xpose.msra.mxu0 %v2070
        %2328 = vmatprep.mubr.bf16.mxu0 %v1653
        %2329 = vmatmul.mubr.bf16.gmra.mrb[0].mxu0 %v1652
        %v2330 = vpop.f32.mrb[0].mxu0
        %v2331 = vadd.f32 %v1612, %v2330
        %v2332 = vpop.f32.mrb[0].mxu0
        %v2333 = vadd.f32 %v1616, %v2332
        %v2334 = vpop.f32.mrb[0].mxu0
        %v2335 = vpop.f32.mrb[0].mxu0
        %2336 = vdwg.mxu0
        %2337 = vmatprep.subr.bf16.mxu0 %v2073
        %2338 = vmatpush1.bf16.xpose.msra.mxu0 %v2072
        %2339 = vmatprep.subr.bf16.mxu0 %v2075
        %2340 = vmatpush1.bf16.xpose.msra.mxu0 %v2074
        %2341 = vmatprep.subr.bf16.mxu0 %v2077
        %2342 = vmatpush1.bf16.xpose.msra.mxu0 %v2076
        %2343 = vmatprep.subr.bf16.mxu0 %v2079
        %2344 = vmatpush1.bf16.xpose.msra.mxu0 %v2078
        %2345 = vmatprep.subr.bf16.mxu0 %v2081
        %2346 = vmatpush1.bf16.xpose.msra.mxu0 %v2080
        %2347 = vmatprep.subr.bf16.mxu0 %v2083
        %2348 = vmatpush1.bf16.xpose.msra.mxu0 %v2082
        %2349 = vmatprep.subr.bf16.mxu0 %v2085
        %2350 = vmatpush1.bf16.xpose.msra.mxu0 %v2084
        %2351 = vmatprep.subr.bf16.mxu0 %v2087
        %2352 = vmatpush1.bf16.xpose.msra.mxu0 %v2086
        %2353 = vmatprep.subr.bf16.mxu0 %v2089
        %2354 = vmatpush1.bf16.xpose.msra.mxu0 %v2088
        %2355 = vmatprep.subr.bf16.mxu0 %v2091
        %2356 = vmatpush1.bf16.xpose.msra.mxu0 %v2090
        %2357 = vmatprep.subr.bf16.mxu0 %v2093
        %2358 = vmatpush1.bf16.xpose.msra.mxu0 %v2092
        %2359 = vmatprep.subr.bf16.mxu0 %v2095
        %2360 = vmatpush1.bf16.xpose.msra.mxu0 %v2094
        %2361 = vmatprep.subr.bf16.mxu0 %v2097
        %2362 = vmatpush1.bf16.xpose.msra.mxu0 %v2096
        %2363 = vmatprep.subr.bf16.mxu0 %v2099
        %2364 = vmatpush1.bf16.xpose.msra.mxu0 %v2098
        %2365 = vmatprep.subr.bf16.mxu0 %v2101
        %2366 = vmatpush1.bf16.xpose.msra.mxu0 %v2100
        %2367 = vmatprep.subr.bf16.mxu0 %v2103
        %2368 = vmatpush1.bf16.xpose.msra.mxu0 %v2102
        %2369 = vmatprep.mubr.bf16.mxu0 %v1653
        %2370 = vmatmul.mubr.bf16.gmra.mrb[0].mxu0 %v1652
        %v2371 = vpop.f32.mrb[0].mxu0
        %v2372 = vadd.f32 %v1620, %v2371
        %v2373 = vpop.f32.mrb[0].mxu0
        %v2374 = vadd.f32 %v1624, %v2373
        %v2375 = vpop.f32.mrb[0].mxu0
        %v2376 = vpop.f32.mrb[0].mxu0
        %2377 = vdwg.mxu0
        %2378 = vmatprep.subr.bf16.mxu0 %v2105
        %2379 = vmatpush1.bf16.xpose.msra.mxu0 %v2104
        %2380 = vmatprep.subr.bf16.mxu0 %v2107
        %2381 = vmatpush1.bf16.xpose.msra.mxu0 %v2106
        %2382 = vmatprep.subr.bf16.mxu0 %v2109
        %2383 = vmatpush1.bf16.xpose.msra.mxu0 %v2108
        %2384 = vmatprep.subr.bf16.mxu0 %v2111
        %2385 = vmatpush1.bf16.xpose.msra.mxu0 %v2110
        %2386 = vmatprep.subr.bf16.mxu0 %v2113
        %2387 = vmatpush1.bf16.xpose.msra.mxu0 %v2112
        %2388 = vmatprep.subr.bf16.mxu0 %v2115
        %2389 = vmatpush1.bf16.xpose.msra.mxu0 %v2114
        %2390 = vmatprep.subr.bf16.mxu0 %v2117
        %2391 = vmatpush1.bf16.xpose.msra.mxu0 %v2116
        %2392 = vmatprep.subr.bf16.mxu0 %v2119
        %2393 = vmatpush1.bf16.xpose.msra.mxu0 %v2118
        %2394 = vmatprep.subr.bf16.mxu0 %v2121
        %2395 = vmatpush1.bf16.xpose.msra.mxu0 %v2120
        %2396 = vmatprep.subr.bf16.mxu0 %v2123
        %2397 = vmatpush1.bf16.xpose.msra.mxu0 %v2122
        %2398 = vmatprep.subr.bf16.mxu0 %v2125
        %2399 = vmatpush1.bf16.xpose.msra.mxu0 %v2124
        %2400 = vmatprep.subr.bf16.mxu0 %v2127
        %2401 = vmatpush1.bf16.xpose.msra.mxu0 %v2126
        %2402 = vmatprep.subr.bf16.mxu0 %v2129
        %2403 = vmatpush1.bf16.xpose.msra.mxu0 %v2128
        %2404 = vmatprep.subr.bf16.mxu0 %v2131
        %2405 = vmatpush1.bf16.xpose.msra.mxu0 %v2130
        %2406 = vmatprep.subr.bf16.mxu0 %v2133
        %2407 = vmatpush1.bf16.xpose.msra.mxu0 %v2132
        %2408 = vmatprep.subr.bf16.mxu0 %v2135
        %2409 = vmatpush1.bf16.xpose.msra.mxu0 %v2134
        %2410 = vmatprep.mubr.bf16.mxu0 %v1653
        %2411 = vmatmul.mubr.bf16.gmra.mrb[0].mxu0 %v1652
        %v2412 = vpop.f32.mrb[0].mxu0
        %v2413 = vadd.f32 %v1628, %v2412
        %v2414 = vpop.f32.mrb[0].mxu0
        %v2415 = vadd.f32 %v1632, %v2414
        %v2416 = vpop.f32.mrb[0].mxu0
        %v2417 = vpop.f32.mrb[0].mxu0
        %2418 = vdwg.mxu0
        %2419 = vmatprep.subr.bf16.mxu0 %v2137
        %2420 = vmatpush1.bf16.xpose.msra.mxu0 %v2136
        %2421 = vmatprep.subr.bf16.mxu0 %v2139
        %2422 = vmatpush1.bf16.xpose.msra.mxu0 %v2138
        %2423 = vmatprep.subr.bf16.mxu0 %v2141
        %2424 = vmatpush1.bf16.xpose.msra.mxu0 %v2140
        %2425 = vmatprep.subr.bf16.mxu0 %v2143
        %2426 = vmatpush1.bf16.xpose.msra.mxu0 %v2142
        %2427 = vmatprep.subr.bf16.mxu0 %v2145
        %2428 = vmatpush1.bf16.xpose.msra.mxu0 %v2144
        %2429 = vmatprep.subr.bf16.mxu0 %v2147
        %2430 = vmatpush1.bf16.xpose.msra.mxu0 %v2146
        %2431 = vmatprep.subr.bf16.mxu0 %v2149
        %2432 = vmatpush1.bf16.xpose.msra.mxu0 %v2148
        %2433 = vmatprep.subr.bf16.mxu0 %v2151
        %2434 = vmatpush1.bf16.xpose.msra.mxu0 %v2150
        %2435 = vmatprep.subr.bf16.mxu0 %v2153
        %2436 = vmatpush1.bf16.xpose.msra.mxu0 %v2152
        %2437 = vmatprep.subr.bf16.mxu0 %v2155
        %2438 = vmatpush1.bf16.xpose.msra.mxu0 %v2154
        %2439 = vmatprep.subr.bf16.mxu0 %v2157
        %2440 = vmatpush1.bf16.xpose.msra.mxu0 %v2156
        %2441 = vmatprep.subr.bf16.mxu0 %v2159
        %2442 = vmatpush1.bf16.xpose.msra.mxu0 %v2158
        %2443 = vmatprep.subr.bf16.mxu0 %v2161
        %2444 = vmatpush1.bf16.xpose.msra.mxu0 %v2160
        %2445 = vmatprep.subr.bf16.mxu0 %v2163
        %2446 = vmatpush1.bf16.xpose.msra.mxu0 %v2162
        %2447 = vmatprep.subr.bf16.mxu0 %v2165
        %2448 = vmatpush1.bf16.xpose.msra.mxu0 %v2164
        %2449 = vmatprep.subr.bf16.mxu0 %v2167
        %2450 = vmatpush1.bf16.xpose.msra.mxu0 %v2166
        %2451 = vmatprep.mubr.bf16.mxu0 %v1653
        %2452 = vmatmul.mubr.bf16.gmra.mrb[0].mxu0 %v1652
        %v2453 = vpop.f32.mrb[0].mxu0
        %v2454 = vadd.f32 %v1636, %v2453
        %v2455 = vpop.f32.mrb[0].mxu0
        %v2456 = vadd.f32 %v1640, %v2455
        %v2457 = vpop.f32.mrb[0].mxu0
        %v2458 = vpop.f32.mrb[0].mxu0
        %2459 = vdwg.mxu0
        %2460 = vst [vmem:[%s514] sm:$0xff] %v2331
        %2461 = vst [vmem:[%s514 + $0x8] sm:$0xff] %v2333
        %2462 = vst [vmem:[%s514 + $0x10] sm:$0xff] %v2372
        %2463 = vst [vmem:[%s514 + $0x18] sm:$0xff] %v2374
        %2464 = vst [vmem:[%s514 + $0x20] sm:$0xff] %v2413
        %2465 = vst [vmem:[%s514 + $0x28] sm:$0xff] %v2415
        %2466 = vst [vmem:[%s514 + $0x30] sm:$0xff] %v2454
        %2467 = vst [vmem:[%s514 + $0x38] sm:$0xff] %v2456
        %s2468 = sand.u32 %s317, 1
        %s2469 = scalar_lea.sflag [#allocation4], %s2468
        %s2470 = sand.u32 %s317, 1
        %s2471 = smul.addr %s2470, 16
        %s2472 = scalar_lea.vmem [#allocation3], %s2471
        %s2473 = sand.u32 %s347, 1
        %s2474 = scalar_lea.sflag [#allocation6], %s2473
        %s2475 = sand.u32 %s347, 1
        %s2476 = smul.addr %s2475, 64
        %s2477 = scalar_lea.vmem [#allocation5], %s2476
        // Predicated region
        $region69: #{seq2seq_lm_forward.3} parent=63 // pred_check
          %p2478 = pneg %p327
        $region70: #{seq2seq_lm_forward.3} parent=63 // pred_check_branch
          %2480 = sbr.rel (%p2478) target = $region72
        $region71: #{seq2seq_lm_forward.3} parent=63 // pred_region
          %s2482 = ssub.s32 256, 256
          %2483 = vsyncadd %s2469, %s2482
          %s2484 = smul.addr %s36, 2
          %s2485 = smul.addr %s35, 2
          %s2486 = sadd.s32 %s2484, %s2485
          %s2487 = smul.addr %s2486, 128
          %s2488 = scalar_lea.hbm %s11, %s2487
          %s2490 = sshll.u32 %s2472, 4
          %s2491 = int_to_ptr.vmem [resolvable:$true] %s2490
          %2493 = dma.vmem_to_hbm [thread:$0]  %s2491, 256, %s2488, %s2469
        $region72: #{seq2seq_lm_forward.3} parent=63 // pred_fallthru
          _
        // Predicated region
        $region73: #{seq2seq_lm_forward.3} parent=63 // pred_check
          %p2494 = pneg %p357
        $region74: #{seq2seq_lm_forward.3} parent=63 // pred_check_branch
          %2496 = sbr.rel (%p2494) target = $region76
        $region75: #{seq2seq_lm_forward.3} parent=63 // pred_region
          %s2497 = smul.u32 8, %s37
          %s2499 = ssub.s32 1024, 1024
          %2500 = vsyncadd %s2474, %s2499
          %s2501 = smul.addr %s36, 8
          %s2502 = sadd.s32 %s2497, %s2501
          %s2503 = smul.addr %s35, 8
          %s2504 = sadd.s32 %s2502, %s2503
          %s2505 = smul.addr %s2504, 128
          %s2506 = scalar_lea.hbm %s12, %s2505
          %s2508 = sshll.u32 %s2477, 4
          %s2509 = int_to_ptr.vmem [resolvable:$true] %s2508
          %2511 = dma.vmem_to_hbm [thread:$0]  %s2509, 1024, %s2506, %s2474
        $region76: #{seq2seq_lm_forward.3} parent=63 // pred_fallthru
          _
      $region64: #{seq2seq_lm_forward.3} parent=5 // pred_fallthru
        _
      %p2512 = scmp.le.s32.totalorder 2, %s25
      // Predicated region
      $region77: #{seq2seq_lm_forward.3} parent=5 // pred_check
        %p2513 = pneg %p2512
      $region78: #{seq2seq_lm_forward.3} parent=5 // pred_check_branch
        %2515 = sbr.rel (%p2513) target = $region80
      $region79: #{seq2seq_lm_forward.3} parent=5 // pred_region
        %s2516 = ssub.s32 %s25, 2
        // Predicated region
        $region81: #{seq2seq_lm_forward.3} parent=79 // pred_check
          %p2517 = pneg %p333
        $region82: #{seq2seq_lm_forward.3} parent=79 // pred_check_branch
          %2519 = sbr.rel (%p2517) target = $region84
        $region83: #{seq2seq_lm_forward.3} parent=79 // pred_region
          %s2520 = sand.u32 %s318, 1
          %s2521 = scalar_lea.sflag [#allocation4], %s2520
          %s2522 = sand.u32 %s318, 1
          %s2523 = smul.addr %s2522, 16
          %s2524 = scalar_lea.vmem [#allocation3], %s2523
          %2525 = dma.done %s2521, 256
        $region84: #{seq2seq_lm_forward.3} parent=79 // pred_fallthru
          _
        // Predicated region
        $region85: #{seq2seq_lm_forward.3} parent=79 // pred_check
          %p2526 = pneg %p363
        $region86: #{seq2seq_lm_forward.3} parent=79 // pred_check_branch
          %2528 = sbr.rel (%p2526) target = $region88
        $region87: #{seq2seq_lm_forward.3} parent=79 // pred_region
          %s2529 = sand.u32 %s348, 1
          %s2530 = scalar_lea.sflag [#allocation6], %s2529
          %s2531 = sand.u32 %s348, 1
          %s2532 = smul.addr %s2531, 64
          %s2533 = scalar_lea.vmem [#allocation5], %s2532
          %2534 = dma.done %s2530, 1024
        $region88: #{seq2seq_lm_forward.3} parent=79 // pred_fallthru
          _
      $region80: #{seq2seq_lm_forward.3} parent=5 // pred_fallthru
        _
    $region6: #{seq2seq_lm_forward.3} parent=1 // loop_footer
      %s29 = sadd.s32 1, %s25
    $region7: #{seq2seq_lm_forward.3} parent=1 // loop_footer_branch
      %24 = sbr.rel target = $region3
    $region8: #{seq2seq_lm_forward.3} parent=1 // loop_exit
      _
    %2535 = vsyncpa [#allocation4], 1
    %s2536 = scalar_lea.sflag [#allocation4], 1
    %2537 = vsyncpa %s2536, 1
    %2538 = vsyncpa [#allocation6], 1
    %s2539 = scalar_lea.sflag [#allocation6], 1
    %2540 = vsyncpa %s2539, 1

</llo_original>
